<compile_context>
chip_gen: v5e
topology: v5e:2x2
jax: 0.10.0
libtpu: 0.0.40
codegen_flags: <defaults>
</compile_context>

<pallas_src>
import functools

import jax
import jax.numpy as jnp
from jax.experimental import pallas as pl
from jax.experimental.pallas import tpu as pltpu


# ----------------------------- small helpers (in-kernel) -----------------------------

def _dot(a, b):      # a @ b
    return jax.lax.dot_general(a, b, (((1,), (0,)), ((), ())),
                               preferred_element_type=jnp.float32)


def _dot_tn(a, b):   # a.T @ b  (contract leading dims)
    return jax.lax.dot_general(a, b, (((0,), (0,)), ((), ())),
                               preferred_element_type=jnp.float32)


def _dot_nt(a, b):   # a @ b.T  (contract trailing dims)
    return jax.lax.dot_general(a, b, (((1,), (1,)), ((), ())),
                               preferred_element_type=jnp.float32)


def _eye(k):
    r = jax.lax.broadcasted_iota(jnp.int32, (k, k), 0)
    c = jax.lax.broadcasted_iota(jnp.int32, (k, k), 1)
    return (r == c).astype(jnp.float32)


def _vmem():
    return pl.BlockSpec(memory_space=pltpu.MemorySpace.VMEM)


def _smem():
    return pl.BlockSpec(memory_space=pltpu.MemorySpace.SMEM)


# ----------------------------- fused EM kernel -----------------------------

def _pcca_em_kernel(y_ref, lam_ref, psi_ref, lam_out_ref, psi_out_ref, nll_ref,
                    *, n_iters, n_feat, k_eff):
    """Runs the entire EM fit (n_iters iterations) on VMEM-resident data.

    y:   (p, n)       observations
    lam: (p, k_pad)   tiled Lambda (zero-padded columns beyond k_eff)
    psi: (p, 1)       diagonal of Psi
    Outputs: updated lam (p, k_pad), psi (p, 1), nll trace (1, n_iters) in SMEM.
    """
    y = y_ref[...]                                     # (p, n)
    lam = lam_ref[...]                                 # (p, kp)
    psi = psi_ref[...]                                 # (p, 1)
    kp = lam.shape[1]
    nf = float(n_feat)                                 # true n_features (static)

    # ---- hoisted loop-invariant constants (JAX does not CSE iota/broadcast) ----
    eye_k = _eye(kp)
    subl = jax.lax.broadcasted_iota(jnp.int32, (kp, 1), 0)   # (kp,1) row indices
    yy_diag = jnp.sum(y * y, axis=1, keepdims=True)          # (p,1)

    def recip(x):
        # EUP approx reciprocal + one Newton refinement (~f32-accurate, off VALU).
        r = pl.reciprocal(x, approx=True)
        return r * (2.0 - x * r)

    def gj_inverse(a):
        """Pivot-free Gauss-Jordan inverse, eliminating only the first k_eff rows.

        Both matrices we invert are block-diagonal with a zero off-diagonal pad
        block, so the leading k_eff x k_eff block is inverted exactly; the pad
        rows/cols of the result stay identity rows, which is harmless because
        they only ever multiply zero-padded operands (yez pad cols, t2 pad rows).
        No pivoting: both matrices are SPD.
        """
        left = a
        right = eye_k
        for i in range(k_eff):                         # static -> fully unrolled
            prow_l = left[i:i + 1, :]                  # (1,kp) static sublane slice
            prow_r = right[i:i + 1, :]
            pivot = prow_l[:, i:i + 1]                 # (1,1) static lane slice
            inv_p = recip(pivot)
            prow_l = prow_l * inv_p
            prow_r = prow_r * inv_p
            # factor[j] = left[j,i] for j != i, and (pivot-1) for j == i, so a single
            # rank-1 update both eliminates column i and installs the scaled pivot row.
            factor = jnp.where(subl == i, pivot - 1.0, left[:, i:i + 1])   # (kp,1)
            left = left - factor * prow_l
            right = right - factor * prow_r
        return right

    def prep_estep(lam_c, psi_c):
        """Woodbury-factored E-step quantities for params (lam_c, psi_c)."""
        psi_inv = recip(psi_c)                         # (p,1)
        psi_inv_y = y * psi_inv                        # (p,n)  reused by the NLL
        psi_inv_l = lam_c * psi_inv                    # (p,kp)
        t1 = _dot_tn(lam_c, psi_inv_y)                 # (kp,n)  = L^T Psi^-1 y
        t2 = _dot_tn(lam_c, psi_inv_l)                 # (kp,kp) = L^T Psi^-1 L
        m_inv = gj_inverse(eye_k + t2)                 # Woodbury inner inverse
        tm = _dot(t2, m_inv)                           # (kp,kp)
        ez = t1 - _dot(tm, t1)                         # (kp,n)  = beta y
        bl = t2 - _dot(tm, t2)                         # (kp,kp) = beta L
        ezz = nf * (eye_k - bl) + _dot_nt(ez, ez)      # (kp,kp)
        return psi_inv_y, t2, ez, ezz

    def em_iter(it, state):
        lam_c, psi_c, ez, ezz = state
        del lam_c, psi_c                               # only needed as final outputs
        # ---- M-step: Lambda_new = (y Ez^T) Ezz^-1 ; Psi_new = diag residual / n ----
        yez = _dot_nt(y, ez)                           # (p,kp) = y @ Ez^T
        ezz_inv = gj_inverse(ezz)                      # Ezz is SPD & symmetric
        lam_n = _dot(yez, ezz_inv)                     # (p,kp)
        recon = _dot(lam_n, ez)                        # (p,n) = Lambda_new Ez
        psi_n = (yy_diag - jnp.sum(recon * y, axis=1, keepdims=True)) * (1.0 / nf)

        # ---- E-step with the UPDATED params: feeds this iteration's NLL AND the
        #      next iteration's M-step (computed once). ----
        psi_inv_y, t2, ez, ezz = prep_estep(lam_n, psi_n)

        # ---- negative log likelihood (Appendix A), A/B reductions fused ----
        lam_ez = _dot(lam_n, ez)                       # (p,n)
        rterm = (jnp.sum(psi_inv_y * (0.5 * y - lam_ez))     # sum(A) - sum(B)
                 + 0.5 * jnp.sum(t2 * ezz))                  # C = 0.5 tr(t2 Ezz^T)
        logdet = -(nf / 2.0) * jnp.sum(jnp.log(psi_n))
        nll_ref[0, it] = -(logdet - rterm)
        return (lam_n, psi_n, ez, ezz)

    # E-step with the initial params (feeds the first M-step).
    _piy0, _t20, ez0, ezz0 = prep_estep(lam, psi)
    state = (lam, psi, ez0, ezz0)

    if n_iters <= 8:
        # Small static trip count: full unroll for LLO scheduler visibility.
        for it in range(n_iters):
            state = em_iter(it, state)
    else:
        # Non-toy n_iters: bounded vreg live ranges / code size with fori_loop.
        state = jax.lax.fori_loop(0, n_iters, em_iter, state)

    lam_out_ref[...] = state[0]
    psi_out_ref[...] = state[1]


# ----------------------------- forward (EM driver) -----------------------------

@functools.partial(jax.jit, static_argnames=("latent_dim", "n_iters", "private_z"))
def pcca_forward(y, lambda1, lambda2, b1, b2, psi1, psi2,
                 latent_dim, n_iters, private_z):
    """Mirror of PCCAOpt.forward: runs EM, returns untiled new params + nll trace."""
    p1 = lambda1.shape[0]
    p2 = lambda2.shape[0]
    k = latent_dim

    # ---- tile_params (glue) ----
    if private_z:
        b12 = jnp.zeros((p1, k), jnp.float32)
        b21 = jnp.zeros((p2, k), jnp.float32)
        lam = jnp.concatenate(
            [jnp.concatenate([lambda1, b1, b12], axis=1),
             jnp.concatenate([lambda2, b21, b2], axis=1)], axis=0)
    else:
        lam = jnp.concatenate([lambda1, lambda2], axis=0)
    psi_col = jnp.concatenate([psi1, psi2]).reshape(-1, 1)

    p, n = y.shape
    k_eff = lam.shape[1]
    # Pad k to a full sublane tile (8); zero columns are mathematically transparent.
    k_pad = max(8, ((k_eff + 7) // 8) * 8)
    lam_pad = jnp.pad(lam, ((0, 0), (0, k_pad - k_eff)))

    kernel = functools.partial(_pcca_em_kernel, n_iters=n_iters, n_feat=n,
                               k_eff=k_eff)
    lam_out, psi_out, nll_row = pl.pallas_call(
        kernel,
        out_shape=(jax.ShapeDtypeStruct((p, k_pad), jnp.float32),
                   jax.ShapeDtypeStruct((p, 1), jnp.float32),
                   jax.ShapeDtypeStruct((1, n_iters), jnp.float32)),
        in_specs=[_vmem(), _vmem(), _vmem()],
        out_specs=(_vmem(), _vmem(), _smem()),
    )(y, lam_pad, psi_col)

    lam_new = lam_out[:, :k_eff]
    psi = psi_out[:, 0]
    nlls = nll_row[0]

    # ---- untile_params (glue) ----
    lambda1_new = lam_new[:p1, :k]
    lambda2_new = lam_new[p1:, :k]
    psi1_new = psi[:p1]
    psi2_new = psi[p1:]
    if private_z:
        b1_new = lam_new[:p1, k:2 * k]
        b2_new = lam_new[p1:, 2 * k:]
        return lambda1_new, lambda2_new, b1_new, b2_new, psi1_new, psi2_new, nlls
    return lambda1_new, lambda2_new, psi1_new, psi2_new, nlls


# ------------------- pure-JAX reference (literal torch formulas) -------------------

def _ref_em(y, lam0, psi0, n_iters):
    lam, psi = lam0, psi0
    p, n = y.shape
    k = lam.shape[1]
    nlls = []
    for _ in range(n_iters):
        psi_inv = jnp.diag(1.0 / psi)
        m = jnp.eye(k, dtype=jnp.float32) + lam.T @ psi_inv @ lam
        pll_inv = psi_inv - psi_inv @ lam @ jnp.linalg.inv(m) @ lam.T @ psi_inv
        beta = lam.T @ pll_inv
        ez = beta @ y
        ezz = n * (jnp.eye(k, dtype=jnp.float32) - beta @ lam) + ez @ ez.T
        lam_new = (y @ ez.T) @ jnp.linalg.inv(ezz)
        psi_new = jnp.diag(y @ y.T - (lam_new @ ez) @ y.T) / n
        lam, psi = lam_new, psi_new
        # nll with updated params
        psi_inv = jnp.diag(1.0 / psi)
        m = jnp.eye(k, dtype=jnp.float32) + lam.T @ psi_inv @ lam
        pll_inv = psi_inv - psi_inv @ lam @ jnp.linalg.inv(m) @ lam.T @ psi_inv
        beta = lam.T @ pll_inv
        ez = beta @ y
        ezz = n * (jnp.eye(k, dtype=jnp.float32) - beta @ lam) + ez @ ez.T
        A = 0.5 * jnp.diag(y.T @ psi_inv @ y)
        B = jnp.diag(y.T @ psi_inv @ lam @ ez)
        C = 0.5 * jnp.trace(lam.T @ psi_inv @ lam @ ezz.T)
        rterm = jnp.sum(A - B) + C
        logdet = -n / 2.0 * jnp.sum(jnp.log(psi))
        nlls.append(-(logdet - rterm))
    return lam, psi, jnp.stack(nlls)


def _relerr(a, b):
    return float(jnp.max(jnp.abs(a - b)) / (jnp.max(jnp.abs(b)) + 1e-6))


# ----------------------------- main -----------------------------

if __name__ == "__main__":
    latent_dim = 2
    p1, p2 = 8, 8
    n_feat = 32
    n_iters = 3
    private_z = True
    p = p1 + p2

    key = jax.random.PRNGKey(0)
    k1, k2, k3, k4, ky = jax.random.split(key, 5)
    # Deterministic parameter init matching PCCAOpt.init_params shapes.
    Lambda1 = jax.random.normal(k1, (p1, latent_dim), jnp.float32)
    Lambda2 = jax.random.normal(k2, (p2, latent_dim), jnp.float32)
    B1 = jax.random.normal(k3, (p1, latent_dim), jnp.float32)
    B2 = jax.random.normal(k4, (p2, latent_dim), jnp.float32)
    Psi1_diag = jnp.ones((p1,), jnp.float32)
    Psi2_diag = jnp.ones((p2,), jnp.float32)
    y = jax.random.normal(ky, (p, n_feat), jnp.float32)

    out = pcca_forward(y, Lambda1, Lambda2, B1, B2, Psi1_diag, Psi2_diag,
                       latent_dim, n_iters, private_z)
    out = jax.block_until_ready(out)
    L1n, L2n, B1n, B2n, Psi1n, Psi2n, nlls = out

    # Reference (same tiled params, literal torch-formula math in plain JAX).
    # This comparison also validates the k_eff-only Gauss-Jordan pad handling:
    # any leakage from the padded Ezz block would corrupt Lambda/Psi by iter 2.
    b12 = jnp.zeros((p1, latent_dim), jnp.float32)
    b21 = jnp.zeros((p2, latent_dim), jnp.float32)
    lam0 = jnp.concatenate(
        [jnp.concatenate([Lambda1, B1, b12], axis=1),
         jnp.concatenate([Lambda2, b21, B2], axis=1)], axis=0)
    psi0 = jnp.concatenate([Psi1_diag, Psi2_diag])
    lam_ref, psi_ref, nlls_ref = _ref_em(y, lam0, psi0, n_iters)

    # Compare Lambda1/Lambda2/B1/B2 slices, Psi, and nll trace (loose f32/MXU tol).
    assert jnp.all(jnp.isfinite(nlls)), "non-finite nll"
    assert _relerr(L1n, lam_ref[:p1, :latent_dim]) < 5e-2
    assert _relerr(L2n, lam_ref[p1:, :latent_dim]) < 5e-2
    assert _relerr(B1n, lam_ref[:p1, latent_dim:2 * latent_dim]) < 5e-2
    assert _relerr(B2n, lam_ref[p1:, 2 * latent_dim:]) < 5e-2
    assert _relerr(jnp.concatenate([Psi1n, Psi2n]), psi_ref) < 5e-2
    assert _relerr(nlls, nlls_ref) < 5e-2

    print("KERNEL_OK")
</pallas_src>

<mosaic_0001>
module attributes {stable_mosaic.version = 11 : i64} {
  func.func @_pcca_em_kernel(%arg0: memref<16x32xf32, #tpu.memory_space<vmem>>, %arg1: memref<16x8xf32, #tpu.memory_space<vmem>>, %arg2: memref<16x1xf32, #tpu.memory_space<vmem>>, %arg3: memref<16x8xf32, #tpu.memory_space<vmem>>, %arg4: memref<16x1xf32, #tpu.memory_space<vmem>>, %arg5: memref<1x3xf32, #tpu.memory_space<smem>>) attributes {dimension_semantics = [], scalar_prefetch = 0 : i64, scratch_operands = 0 : i64, tpu.core_type = #tpu.core_type<tc>} {
    %c0 = arith.constant 0 : index
    %c0_0 = arith.constant 0 : index
    %0 = vector.load %arg0[%c0, %c0_0] : memref<16x32xf32, #tpu.memory_space<vmem>>, vector<16x32xf32>
    %c0_1 = arith.constant 0 : index
    %c0_2 = arith.constant 0 : index
    %1 = vector.load %arg1[%c0_1, %c0_2] : memref<16x8xf32, #tpu.memory_space<vmem>>, vector<16x8xf32>
    %c0_3 = arith.constant 0 : index
    %c0_4 = arith.constant 0 : index
    %2 = vector.load %arg2[%c0_3, %c0_4] : memref<16x1xf32, #tpu.memory_space<vmem>>, vector<16x1xf32>
    %3 = tpu.iota {dimensions = array<i32: 0>} : vector<8x8xi32>
    %4 = tpu.iota {dimensions = array<i32: 1>} : vector<8x8xi32>
    %5 = arith.cmpi eq, %3, %4 : vector<8x8xi32>
    %6 = arith.extui %5 : vector<8x8xi1> to vector<8x8xi32>
    %7 = arith.sitofp %6 : vector<8x8xi32> to vector<8x8xf32>
    %8 = tpu.iota {dimensions = array<i32: 0>} : vector<8x1xi32>
    %9 = arith.mulf %0, %0 : vector<16x32xf32>
    %cst = arith.constant dense<0.000000e+00> : vector<16xf32>
    %10 = vector.multi_reduction <add>, %9, %cst [1] : vector<16x32xf32> to vector<16xf32>
    %11 = vector.shape_cast %10 : vector<16xf32> to vector<16x1xf32>
    %12 = tpu.reciprocal %2 {approx = true} : vector<16x1xf32> -> vector<16x1xf32>
    %13 = arith.mulf %2, %12 : vector<16x1xf32>
    %cst_5 = arith.constant 2.000000e+00 : f32
    %14 = vector.broadcast %cst_5 : f32 to vector<16x1xf32>
    %15 = arith.subf %14, %13 : vector<16x1xf32>
    %16 = arith.mulf %12, %15 : vector<16x1xf32>
    %17 = vector.broadcast %16 : vector<16x1xf32> to vector<16x32xf32>
    %18 = arith.mulf %0, %17 : vector<16x32xf32>
    %19 = vector.broadcast %16 : vector<16x1xf32> to vector<16x8xf32>
    %20 = arith.mulf %1, %19 : vector<16x8xf32>
    %cst_6 = arith.constant dense<0.000000e+00> : vector<8x32xf32>
    %21 = tpu.matmul %1, %18, %cst_6 {dimension_numbers = #tpu.dot_dimension_numbers<[0], [0], [1], [1], [0, 1, 1, 1], [], []>} : vector<16x8xf32>, vector<16x32xf32>, vector<8x32xf32> -> vector<8x32xf32>
    %cst_7 = arith.constant dense<0.000000e+00> : vector<8x8xf32>
    %22 = tpu.matmul %1, %20, %cst_7 {dimension_numbers = #tpu.dot_dimension_numbers<[0], [0], [1], [1], [0, 1, 1, 1], [], []>} : vector<16x8xf32>, vector<16x8xf32>, vector<8x8xf32> -> vector<8x8xf32>
    %23 = arith.addf %7, %22 : vector<8x8xf32>
    %24 = vector.extract_strided_slice %23 {offsets = [0, 0], sizes = [1, 8], strides = [1, 1]} : vector<8x8xf32> to vector<1x8xf32>
    %25 = vector.extract_strided_slice %7 {offsets = [0, 0], sizes = [1, 8], strides = [1, 1]} : vector<8x8xf32> to vector<1x8xf32>
    %26 = vector.extract_strided_slice %24 {offsets = [0, 0], sizes = [1, 1], strides = [1, 1]} : vector<1x8xf32> to vector<1x1xf32>
    %27 = tpu.reciprocal %26 {approx = true} : vector<1x1xf32> -> vector<1x1xf32>
    %28 = arith.mulf %26, %27 : vector<1x1xf32>
    %cst_8 = arith.constant 2.000000e+00 : f32
    %29 = vector.broadcast %cst_8 : f32 to vector<1x1xf32>
    %30 = arith.subf %29, %28 : vector<1x1xf32>
    %31 = arith.mulf %27, %30 : vector<1x1xf32>
    %32 = vector.broadcast %31 : vector<1x1xf32> to vector<1x8xf32>
    %33 = arith.mulf %24, %32 : vector<1x8xf32>
    %34 = vector.broadcast %31 : vector<1x1xf32> to vector<1x8xf32>
    %35 = arith.mulf %25, %34 : vector<1x8xf32>
    %c0_i32 = arith.constant 0 : i32
    %36 = vector.broadcast %c0_i32 : i32 to vector<8x1xi32>
    %37 = arith.cmpi eq, %8, %36 : vector<8x1xi32>
    %cst_9 = arith.constant 1.000000e+00 : f32
    %38 = vector.broadcast %cst_9 : f32 to vector<1x1xf32>
    %39 = arith.subf %26, %38 : vector<1x1xf32>
    %40 = vector.extract_strided_slice %23 {offsets = [0, 0], sizes = [8, 1], strides = [1, 1]} : vector<8x8xf32> to vector<8x1xf32>
    %41 = vector.shape_cast %39 : vector<1x1xf32> to vector<1x1xf32>
    %42 = vector.broadcast %41 : vector<1x1xf32> to vector<8x1xf32>
    %43 = arith.select %37, %42, %40 : vector<8x1xi1>, vector<8x1xf32>
    %44 = vector.broadcast %43 : vector<8x1xf32> to vector<8x8xf32>
    %45 = vector.broadcast %33 : vector<1x8xf32> to vector<8x8xf32>
    %46 = arith.mulf %44, %45 : vector<8x8xf32>
    %47 = arith.subf %23, %46 : vector<8x8xf32>
    %48 = vector.broadcast %43 : vector<8x1xf32> to vector<8x8xf32>
    %49 = vector.broadcast %35 : vector<1x8xf32> to vector<8x8xf32>
    %50 = arith.mulf %48, %49 : vector<8x8xf32>
    %51 = arith.subf %7, %50 : vector<8x8xf32>
    %52 = vector.extract_strided_slice %47 {offsets = [1, 0], sizes = [1, 8], strides = [1, 1]} : vector<8x8xf32> to vector<1x8xf32>
    %53 = vector.extract_strided_slice %51 {offsets = [1, 0], sizes = [1, 8], strides = [1, 1]} : vector<8x8xf32> to vector<1x8xf32>
    %54 = vector.extract_strided_slice %52 {offsets = [0, 1], sizes = [1, 1], strides = [1, 1]} : vector<1x8xf32> to vector<1x1xf32>
    %55 = tpu.reciprocal %54 {approx = true} : vector<1x1xf32> -> vector<1x1xf32>
    %56 = arith.mulf %54, %55 : vector<1x1xf32>
    %cst_10 = arith.constant 2.000000e+00 : f32
    %57 = vector.broadcast %cst_10 : f32 to vector<1x1xf32>
    %58 = arith.subf %57, %56 : vector<1x1xf32>
    %59 = arith.mulf %55, %58 : vector<1x1xf32>
    %60 = vector.broadcast %59 : vector<1x1xf32> to vector<1x8xf32>
    %61 = arith.mulf %52, %60 : vector<1x8xf32>
    %62 = vector.broadcast %59 : vector<1x1xf32> to vector<1x8xf32>
    %63 = arith.mulf %53, %62 : vector<1x8xf32>
    %c1_i32 = arith.constant 1 : i32
    %64 = vector.broadcast %c1_i32 : i32 to vector<8x1xi32>
    %65 = arith.cmpi eq, %8, %64 : vector<8x1xi32>
    %cst_11 = arith.constant 1.000000e+00 : f32
    %66 = vector.broadcast %cst_11 : f32 to vector<1x1xf32>
    %67 = arith.subf %54, %66 : vector<1x1xf32>
    %68 = vector.extract_strided_slice %47 {offsets = [0, 1], sizes = [8, 1], strides = [1, 1]} : vector<8x8xf32> to vector<8x1xf32>
    %69 = vector.shape_cast %67 : vector<1x1xf32> to vector<1x1xf32>
    %70 = vector.broadcast %69 : vector<1x1xf32> to vector<8x1xf32>
    %71 = arith.select %65, %70, %68 : vector<8x1xi1>, vector<8x1xf32>
    %72 = vector.broadcast %71 : vector<8x1xf32> to vector<8x8xf32>
    %73 = vector.broadcast %61 : vector<1x8xf32> to vector<8x8xf32>
    %74 = arith.mulf %72, %73 : vector<8x8xf32>
    %75 = arith.subf %47, %74 : vector<8x8xf32>
    %76 = vector.broadcast %71 : vector<8x1xf32> to vector<8x8xf32>
    %77 = vector.broadcast %63 : vector<1x8xf32> to vector<8x8xf32>
    %78 = arith.mulf %76, %77 : vector<8x8xf32>
    %79 = arith.subf %51, %78 : vector<8x8xf32>
    %80 = vector.extract_strided_slice %75 {offsets = [2, 0], sizes = [1, 8], strides = [1, 1]} : vector<8x8xf32> to vector<1x8xf32>
    %81 = vector.extract_strided_slice %79 {offsets = [2, 0], sizes = [1, 8], strides = [1, 1]} : vector<8x8xf32> to vector<1x8xf32>
    %82 = vector.extract_strided_slice %80 {offsets = [0, 2], sizes = [1, 1], strides = [1, 1]} : vector<1x8xf32> to vector<1x1xf32>
    %83 = tpu.reciprocal %82 {approx = true} : vector<1x1xf32> -> vector<1x1xf32>
    %84 = arith.mulf %82, %83 : vector<1x1xf32>
    %cst_12 = arith.constant 2.000000e+00 : f32
    %85 = vector.broadcast %cst_12 : f32 to vector<1x1xf32>
    %86 = arith.subf %85, %84 : vector<1x1xf32>
    %87 = arith.mulf %83, %86 : vector<1x1xf32>
    %88 = vector.broadcast %87 : vector<1x1xf32> to vector<1x8xf32>
    %89 = arith.mulf %80, %88 : vector<1x8xf32>
    %90 = vector.broadcast %87 : vector<1x1xf32> to vector<1x8xf32>
    %91 = arith.mulf %81, %90 : vector<1x8xf32>
    %c2_i32 = arith.constant 2 : i32
    %92 = vector.broadcast %c2_i32 : i32 to vector<8x1xi32>
    %93 = arith.cmpi eq, %8, %92 : vector<8x1xi32>
    %cst_13 = arith.constant 1.000000e+00 : f32
    %94 = vector.broadcast %cst_13 : f32 to vector<1x1xf32>
    %95 = arith.subf %82, %94 : vector<1x1xf32>
    %96 = vector.extract_strided_slice %75 {offsets = [0, 2], sizes = [8, 1], strides = [1, 1]} : vector<8x8xf32> to vector<8x1xf32>
    %97 = vector.shape_cast %95 : vector<1x1xf32> to vector<1x1xf32>
    %98 = vector.broadcast %97 : vector<1x1xf32> to vector<8x1xf32>
    %99 = arith.select %93, %98, %96 : vector<8x1xi1>, vector<8x1xf32>
    %100 = vector.broadcast %99 : vector<8x1xf32> to vector<8x8xf32>
    %101 = vector.broadcast %89 : vector<1x8xf32> to vector<8x8xf32>
    %102 = arith.mulf %100, %101 : vector<8x8xf32>
    %103 = arith.subf %75, %102 : vector<8x8xf32>
    %104 = vector.broadcast %99 : vector<8x1xf32> to vector<8x8xf32>
    %105 = vector.broadcast %91 : vector<1x8xf32> to vector<8x8xf32>
    %106 = arith.mulf %104, %105 : vector<8x8xf32>
    %107 = arith.subf %79, %106 : vector<8x8xf32>
    %108 = vector.extract_strided_slice %103 {offsets = [3, 0], sizes = [1, 8], strides = [1, 1]} : vector<8x8xf32> to vector<1x8xf32>
    %109 = vector.extract_strided_slice %107 {offsets = [3, 0], sizes = [1, 8], strides = [1, 1]} : vector<8x8xf32> to vector<1x8xf32>
    %110 = vector.extract_strided_slice %108 {offsets = [0, 3], sizes = [1, 1], strides = [1, 1]} : vector<1x8xf32> to vector<1x1xf32>
    %111 = tpu.reciprocal %110 {approx = true} : vector<1x1xf32> -> vector<1x1xf32>
    %112 = arith.mulf %110, %111 : vector<1x1xf32>
    %cst_14 = arith.constant 2.000000e+00 : f32
    %113 = vector.broadcast %cst_14 : f32 to vector<1x1xf32>
    %114 = arith.subf %113, %112 : vector<1x1xf32>
    %115 = arith.mulf %111, %114 : vector<1x1xf32>
    %116 = vector.broadcast %115 : vector<1x1xf32> to vector<1x8xf32>
    %117 = arith.mulf %108, %116 : vector<1x8xf32>
    %118 = vector.broadcast %115 : vector<1x1xf32> to vector<1x8xf32>
    %119 = arith.mulf %109, %118 : vector<1x8xf32>
    %c3_i32 = arith.constant 3 : i32
    %120 = vector.broadcast %c3_i32 : i32 to vector<8x1xi32>
    %121 = arith.cmpi eq, %8, %120 : vector<8x1xi32>
    %cst_15 = arith.constant 1.000000e+00 : f32
    %122 = vector.broadcast %cst_15 : f32 to vector<1x1xf32>
    %123 = arith.subf %110, %122 : vector<1x1xf32>
    %124 = vector.extract_strided_slice %103 {offsets = [0, 3], sizes = [8, 1], strides = [1, 1]} : vector<8x8xf32> to vector<8x1xf32>
    %125 = vector.shape_cast %123 : vector<1x1xf32> to vector<1x1xf32>
    %126 = vector.broadcast %125 : vector<1x1xf32> to vector<8x1xf32>
    %127 = arith.select %121, %126, %124 : vector<8x1xi1>, vector<8x1xf32>
    %128 = vector.broadcast %127 : vector<8x1xf32> to vector<8x8xf32>
    %129 = vector.broadcast %117 : vector<1x8xf32> to vector<8x8xf32>
    %130 = arith.mulf %128, %129 : vector<8x8xf32>
    %131 = arith.subf %103, %130 : vector<8x8xf32>
    %132 = vector.broadcast %127 : vector<8x1xf32> to vector<8x8xf32>
    %133 = vector.broadcast %119 : vector<1x8xf32> to vector<8x8xf32>
    %134 = arith.mulf %132, %133 : vector<8x8xf32>
    %135 = arith.subf %107, %134 : vector<8x8xf32>
    %136 = vector.extract_strided_slice %131 {offsets = [4, 0], sizes = [1, 8], strides = [1, 1]} : vector<8x8xf32> to vector<1x8xf32>
    %137 = vector.extract_strided_slice %135 {offsets = [4, 0], sizes = [1, 8], strides = [1, 1]} : vector<8x8xf32> to vector<1x8xf32>
    %138 = vector.extract_strided_slice %136 {offsets = [0, 4], sizes = [1, 1], strides = [1, 1]} : vector<1x8xf32> to vector<1x1xf32>
    %139 = tpu.reciprocal %138 {approx = true} : vector<1x1xf32> -> vector<1x1xf32>
    %140 = arith.mulf %138, %139 : vector<1x1xf32>
    %cst_16 = arith.constant 2.000000e+00 : f32
    %141 = vector.broadcast %cst_16 : f32 to vector<1x1xf32>
    %142 = arith.subf %141, %140 : vector<1x1xf32>
    %143 = arith.mulf %139, %142 : vector<1x1xf32>
    %144 = vector.broadcast %143 : vector<1x1xf32> to vector<1x8xf32>
    %145 = arith.mulf %136, %144 : vector<1x8xf32>
    %146 = vector.broadcast %143 : vector<1x1xf32> to vector<1x8xf32>
    %147 = arith.mulf %137, %146 : vector<1x8xf32>
    %c4_i32 = arith.constant 4 : i32
    %148 = vector.broadcast %c4_i32 : i32 to vector<8x1xi32>
    %149 = arith.cmpi eq, %8, %148 : vector<8x1xi32>
    %cst_17 = arith.constant 1.000000e+00 : f32
    %150 = vector.broadcast %cst_17 : f32 to vector<1x1xf32>
    %151 = arith.subf %138, %150 : vector<1x1xf32>
    %152 = vector.extract_strided_slice %131 {offsets = [0, 4], sizes = [8, 1], strides = [1, 1]} : vector<8x8xf32> to vector<8x1xf32>
    %153 = vector.shape_cast %151 : vector<1x1xf32> to vector<1x1xf32>
    %154 = vector.broadcast %153 : vector<1x1xf32> to vector<8x1xf32>
    %155 = arith.select %149, %154, %152 : vector<8x1xi1>, vector<8x1xf32>
    %156 = vector.broadcast %155 : vector<8x1xf32> to vector<8x8xf32>
    %157 = vector.broadcast %145 : vector<1x8xf32> to vector<8x8xf32>
    %158 = arith.mulf %156, %157 : vector<8x8xf32>
    %159 = arith.subf %131, %158 : vector<8x8xf32>
    %160 = vector.broadcast %155 : vector<8x1xf32> to vector<8x8xf32>
    %161 = vector.broadcast %147 : vector<1x8xf32> to vector<8x8xf32>
    %162 = arith.mulf %160, %161 : vector<8x8xf32>
    %163 = arith.subf %135, %162 : vector<8x8xf32>
    %164 = vector.extract_strided_slice %159 {offsets = [5, 0], sizes = [1, 8], strides = [1, 1]} : vector<8x8xf32> to vector<1x8xf32>
    %165 = vector.extract_strided_slice %163 {offsets = [5, 0], sizes = [1, 8], strides = [1, 1]} : vector<8x8xf32> to vector<1x8xf32>
    %166 = vector.extract_strided_slice %164 {offsets = [0, 5], sizes = [1, 1], strides = [1, 1]} : vector<1x8xf32> to vector<1x1xf32>
    %167 = tpu.reciprocal %166 {approx = true} : vector<1x1xf32> -> vector<1x1xf32>
    %168 = arith.mulf %166, %167 : vector<1x1xf32>
    %cst_18 = arith.constant 2.000000e+00 : f32
    %169 = vector.broadcast %cst_18 : f32 to vector<1x1xf32>
    %170 = arith.subf %169, %168 : vector<1x1xf32>
    %171 = arith.mulf %167, %170 : vector<1x1xf32>
    %172 = vector.broadcast %171 : vector<1x1xf32> to vector<1x8xf32>
    %173 = arith.mulf %165, %172 : vector<1x8xf32>
    %c5_i32 = arith.constant 5 : i32
    %174 = vector.broadcast %c5_i32 : i32 to vector<8x1xi32>
    %175 = arith.cmpi eq, %8, %174 : vector<8x1xi32>
    %cst_19 = arith.constant 1.000000e+00 : f32
    %176 = vector.broadcast %cst_19 : f32 to vector<1x1xf32>
    %177 = arith.subf %166, %176 : vector<1x1xf32>
    %178 = vector.extract_strided_slice %159 {offsets = [0, 5], sizes = [8, 1], strides = [1, 1]} : vector<8x8xf32> to vector<8x1xf32>
    %179 = vector.shape_cast %177 : vector<1x1xf32> to vector<1x1xf32>
    %180 = vector.broadcast %179 : vector<1x1xf32> to vector<8x1xf32>
    %181 = arith.select %175, %180, %178 : vector<8x1xi1>, vector<8x1xf32>
    %182 = vector.broadcast %181 : vector<8x1xf32> to vector<8x8xf32>
    %183 = vector.broadcast %173 : vector<1x8xf32> to vector<8x8xf32>
    %184 = arith.mulf %182, %183 : vector<8x8xf32>
    %185 = arith.subf %163, %184 : vector<8x8xf32>
    %cst_20 = arith.constant dense<0.000000e+00> : vector<8x8xf32>
    %186 = tpu.matmul %22, %185, %cst_20 {dimension_numbers = #tpu.dot_dimension_numbers<[1], [0], [0], [1], [0, 0, 1, 1], [], []>} : vector<8x8xf32>, vector<8x8xf32>, vector<8x8xf32> -> vector<8x8xf32>
    %cst_21 = arith.constant dense<0.000000e+00> : vector<8x32xf32>
    %187 = tpu.matmul %186, %21, %cst_21 {dimension_numbers = #tpu.dot_dimension_numbers<[1], [0], [0], [1], [0, 0, 1, 1], [], []>} : vector<8x8xf32>, vector<8x32xf32>, vector<8x32xf32> -> vector<8x32xf32>
    %188 = arith.subf %21, %187 : vector<8x32xf32>
    %cst_22 = arith.constant dense<0.000000e+00> : vector<8x8xf32>
    %189 = tpu.matmul %186, %22, %cst_22 {dimension_numbers = #tpu.dot_dimension_numbers<[1], [0], [0], [1], [0, 0, 1, 1], [], []>} : vector<8x8xf32>, vector<8x8xf32>, vector<8x8xf32> -> vector<8x8xf32>
    %190 = arith.subf %22, %189 : vector<8x8xf32>
    %191 = arith.subf %7, %190 : vector<8x8xf32>
    %cst_23 = arith.constant 3.200000e+01 : f32
    %192 = vector.broadcast %cst_23 : f32 to vector<8x8xf32>
    %193 = arith.mulf %192, %191 : vector<8x8xf32>
    %cst_24 = arith.constant dense<0.000000e+00> : vector<8x8xf32>
    %194 = tpu.matmul %188, %188, %cst_24 {dimension_numbers = #tpu.dot_dimension_numbers<[1], [1], [0], [0], [0, 0, 1, 0], [], []>} : vector<8x32xf32>, vector<8x32xf32>, vector<8x8xf32> -> vector<8x8xf32>
    %195 = arith.addf %193, %194 : vector<8x8xf32>
    %cst_25 = arith.constant dense<0.000000e+00> : vector<16x8xf32>
    %196 = tpu.matmul %0, %188, %cst_25 {dimension_numbers = #tpu.dot_dimension_numbers<[1], [1], [0], [0], [0, 0, 1, 0], [], []>} : vector<16x32xf32>, vector<8x32xf32>, vector<16x8xf32> -> vector<16x8xf32>
    %197 = vector.extract_strided_slice %195 {offsets = [0, 0], sizes = [1, 8], strides = [1, 1]} : vector<8x8xf32> to vector<1x8xf32>
    %198 = vector.extract_strided_slice %7 {offsets = [0, 0], sizes = [1, 8], strides = [1, 1]} : vector<8x8xf32> to vector<1x8xf32>
    %199 = vector.extract_strided_slice %197 {offsets = [0, 0], sizes = [1, 1], strides = [1, 1]} : vector<1x8xf32> to vector<1x1xf32>
    %200 = tpu.reciprocal %199 {approx = true} : vector<1x1xf32> -> vector<1x1xf32>
    %201 = arith.mulf %199, %200 : vector<1x1xf32>
    %cst_26 = arith.constant 2.000000e+00 : f32
    %202 = vector.broadcast %cst_26 : f32 to vector<1x1xf32>
    %203 = arith.subf %202, %201 : vector<1x1xf32>
    %204 = arith.mulf %200, %203 : vector<1x1xf32>
    %205 = vector.broadcast %204 : vector<1x1xf32> to vector<1x8xf32>
    %206 = arith.mulf %197, %205 : vector<1x8xf32>
    %207 = vector.broadcast %204 : vector<1x1xf32> to vector<1x8xf32>
    %208 = arith.mulf %198, %207 : vector<1x8xf32>
    %c0_i32_27 = arith.constant 0 : i32
    %209 = vector.broadcast %c0_i32_27 : i32 to vector<8x1xi32>
    %210 = arith.cmpi eq, %8, %209 : vector<8x1xi32>
    %cst_28 = arith.constant 1.000000e+00 : f32
    %211 = vector.broadcast %cst_28 : f32 to vector<1x1xf32>
    %212 = arith.subf %199, %211 : vector<1x1xf32>
    %213 = vector.extract_strided_slice %195 {offsets = [0, 0], sizes = [8, 1], strides = [1, 1]} : vector<8x8xf32> to vector<8x1xf32>
    %214 = vector.shape_cast %212 : vector<1x1xf32> to vector<1x1xf32>
    %215 = vector.broadcast %214 : vector<1x1xf32> to vector<8x1xf32>
    %216 = arith.select %210, %215, %213 : vector<8x1xi1>, vector<8x1xf32>
    %217 = vector.broadcast %216 : vector<8x1xf32> to vector<8x8xf32>
    %218 = vector.broadcast %206 : vector<1x8xf32> to vector<8x8xf32>
    %219 = arith.mulf %217, %218 : vector<8x8xf32>
    %220 = arith.subf %195, %219 : vector<8x8xf32>
    %221 = vector.broadcast %216 : vector<8x1xf32> to vector<8x8xf32>
    %222 = vector.broadcast %208 : vector<1x8xf32> to vector<8x8xf32>
    %223 = arith.mulf %221, %222 : vector<8x8xf32>
    %224 = arith.subf %7, %223 : vector<8x8xf32>
    %225 = vector.extract_strided_slice %220 {offsets = [1, 0], sizes = [1, 8], strides = [1, 1]} : vector<8x8xf32> to vector<1x8xf32>
    %226 = vector.extract_strided_slice %224 {offsets = [1, 0], sizes = [1, 8], strides = [1, 1]} : vector<8x8xf32> to vector<1x8xf32>
    %227 = vector.extract_strided_slice %225 {offsets = [0, 1], sizes = [1, 1], strides = [1, 1]} : vector<1x8xf32> to vector<1x1xf32>
    %228 = tpu.reciprocal %227 {approx = true} : vector<1x1xf32> -> vector<1x1xf32>
    %229 = arith.mulf %227, %228 : vector<1x1xf32>
    %cst_29 = arith.constant 2.000000e+00 : f32
    %230 = vector.broadcast %cst_29 : f32 to vector<1x1xf32>
    %231 = arith.subf %230, %229 : vector<1x1xf32>
    %232 = arith.mulf %228, %231 : vector<1x1xf32>
    %233 = vector.broadcast %232 : vector<1x1xf32> to vector<1x8xf32>
    %234 = arith.mulf %225, %233 : vector<1x8xf32>
    %235 = vector.broadcast %232 : vector<1x1xf32> to vector<1x8xf32>
    %236 = arith.mulf %226, %235 : vector<1x8xf32>
    %c1_i32_30 = arith.constant 1 : i32
    %237 = vector.broadcast %c1_i32_30 : i32 to vector<8x1xi32>
    %238 = arith.cmpi eq, %8, %237 : vector<8x1xi32>
    %cst_31 = arith.constant 1.000000e+00 : f32
    %239 = vector.broadcast %cst_31 : f32 to vector<1x1xf32>
    %240 = arith.subf %227, %239 : vector<1x1xf32>
    %241 = vector.extract_strided_slice %220 {offsets = [0, 1], sizes = [8, 1], strides = [1, 1]} : vector<8x8xf32> to vector<8x1xf32>
    %242 = vector.shape_cast %240 : vector<1x1xf32> to vector<1x1xf32>
    %243 = vector.broadcast %242 : vector<1x1xf32> to vector<8x1xf32>
    %244 = arith.select %238, %243, %241 : vector<8x1xi1>, vector<8x1xf32>
    %245 = vector.broadcast %244 : vector<8x1xf32> to vector<8x8xf32>
    %246 = vector.broadcast %234 : vector<1x8xf32> to vector<8x8xf32>
    %247 = arith.mulf %245, %246 : vector<8x8xf32>
    %248 = arith.subf %220, %247 : vector<8x8xf32>
    %249 = vector.broadcast %244 : vector<8x1xf32> to vector<8x8xf32>
    %250 = vector.broadcast %236 : vector<1x8xf32> to vector<8x8xf32>
    %251 = arith.mulf %249, %250 : vector<8x8xf32>
    %252 = arith.subf %224, %251 : vector<8x8xf32>
    %253 = vector.extract_strided_slice %248 {offsets = [2, 0], sizes = [1, 8], strides = [1, 1]} : vector<8x8xf32> to vector<1x8xf32>
    %254 = vector.extract_strided_slice %252 {offsets = [2, 0], sizes = [1, 8], strides = [1, 1]} : vector<8x8xf32> to vector<1x8xf32>
    %255 = vector.extract_strided_slice %253 {offsets = [0, 2], sizes = [1, 1], strides = [1, 1]} : vector<1x8xf32> to vector<1x1xf32>
    %256 = tpu.reciprocal %255 {approx = true} : vector<1x1xf32> -> vector<1x1xf32>
    %257 = arith.mulf %255, %256 : vector<1x1xf32>
    %cst_32 = arith.constant 2.000000e+00 : f32
    %258 = vector.broadcast %cst_32 : f32 to vector<1x1xf32>
    %259 = arith.subf %258, %257 : vector<1x1xf32>
    %260 = arith.mulf %256, %259 : vector<1x1xf32>
    %261 = vector.broadcast %260 : vector<1x1xf32> to vector<1x8xf32>
    %262 = arith.mulf %253, %261 : vector<1x8xf32>
    %263 = vector.broadcast %260 : vector<1x1xf32> to vector<1x8xf32>
    %264 = arith.mulf %254, %263 : vector<1x8xf32>
    %c2_i32_33 = arith.constant 2 : i32
    %265 = vector.broadcast %c2_i32_33 : i32 to vector<8x1xi32>
    %266 = arith.cmpi eq, %8, %265 : vector<8x1xi32>
    %cst_34 = arith.constant 1.000000e+00 : f32
    %267 = vector.broadcast %cst_34 : f32 to vector<1x1xf32>
    %268 = arith.subf %255, %267 : vector<1x1xf32>
    %269 = vector.extract_strided_slice %248 {offsets = [0, 2], sizes = [8, 1], strides = [1, 1]} : vector<8x8xf32> to vector<8x1xf32>
    %270 = vector.shape_cast %268 : vector<1x1xf32> to vector<1x1xf32>
    %271 = vector.broadcast %270 : vector<1x1xf32> to vector<8x1xf32>
    %272 = arith.select %266, %271, %269 : vector<8x1xi1>, vector<8x1xf32>
    %273 = vector.broadcast %272 : vector<8x1xf32> to vector<8x8xf32>
    %274 = vector.broadcast %262 : vector<1x8xf32> to vector<8x8xf32>
    %275 = arith.mulf %273, %274 : vector<8x8xf32>
    %276 = arith.subf %248, %275 : vector<8x8xf32>
    %277 = vector.broadcast %272 : vector<8x1xf32> to vector<8x8xf32>
    %278 = vector.broadcast %264 : vector<1x8xf32> to vector<8x8xf32>
    %279 = arith.mulf %277, %278 : vector<8x8xf32>
    %280 = arith.subf %252, %279 : vector<8x8xf32>
    %281 = vector.extract_strided_slice %276 {offsets = [3, 0], sizes = [1, 8], strides = [1, 1]} : vector<8x8xf32> to vector<1x8xf32>
    %282 = vector.extract_strided_slice %280 {offsets = [3, 0], sizes = [1, 8], strides = [1, 1]} : vector<8x8xf32> to vector<1x8xf32>
    %283 = vector.extract_strided_slice %281 {offsets = [0, 3], sizes = [1, 1], strides = [1, 1]} : vector<1x8xf32> to vector<1x1xf32>
    %284 = tpu.reciprocal %283 {approx = true} : vector<1x1xf32> -> vector<1x1xf32>
    %285 = arith.mulf %283, %284 : vector<1x1xf32>
    %cst_35 = arith.constant 2.000000e+00 : f32
    %286 = vector.broadcast %cst_35 : f32 to vector<1x1xf32>
    %287 = arith.subf %286, %285 : vector<1x1xf32>
    %288 = arith.mulf %284, %287 : vector<1x1xf32>
    %289 = vector.broadcast %288 : vector<1x1xf32> to vector<1x8xf32>
    %290 = arith.mulf %281, %289 : vector<1x8xf32>
    %291 = vector.broadcast %288 : vector<1x1xf32> to vector<1x8xf32>
    %292 = arith.mulf %282, %291 : vector<1x8xf32>
    %c3_i32_36 = arith.constant 3 : i32
    %293 = vector.broadcast %c3_i32_36 : i32 to vector<8x1xi32>
    %294 = arith.cmpi eq, %8, %293 : vector<8x1xi32>
    %cst_37 = arith.constant 1.000000e+00 : f32
    %295 = vector.broadcast %cst_37 : f32 to vector<1x1xf32>
    %296 = arith.subf %283, %295 : vector<1x1xf32>
    %297 = vector.extract_strided_slice %276 {offsets = [0, 3], sizes = [8, 1], strides = [1, 1]} : vector<8x8xf32> to vector<8x1xf32>
    %298 = vector.shape_cast %296 : vector<1x1xf32> to vector<1x1xf32>
    %299 = vector.broadcast %298 : vector<1x1xf32> to vector<8x1xf32>
    %300 = arith.select %294, %299, %297 : vector<8x1xi1>, vector<8x1xf32>
    %301 = vector.broadcast %300 : vector<8x1xf32> to vector<8x8xf32>
    %302 = vector.broadcast %290 : vector<1x8xf32> to vector<8x8xf32>
    %303 = arith.mulf %301, %302 : vector<8x8xf32>
    %304 = arith.subf %276, %303 : vector<8x8xf32>
    %305 = vector.broadcast %300 : vector<8x1xf32> to vector<8x8xf32>
    %306 = vector.broadcast %292 : vector<1x8xf32> to vector<8x8xf32>
    %307 = arith.mulf %305, %306 : vector<8x8xf32>
    %308 = arith.subf %280, %307 : vector<8x8xf32>
    %309 = vector.extract_strided_slice %304 {offsets = [4, 0], sizes = [1, 8], strides = [1, 1]} : vector<8x8xf32> to vector<1x8xf32>
    %310 = vector.extract_strided_slice %308 {offsets = [4, 0], sizes = [1, 8], strides = [1, 1]} : vector<8x8xf32> to vector<1x8xf32>
    %311 = vector.extract_strided_slice %309 {offsets = [0, 4], sizes = [1, 1], strides = [1, 1]} : vector<1x8xf32> to vector<1x1xf32>
    %312 = tpu.reciprocal %311 {approx = true} : vector<1x1xf32> -> vector<1x1xf32>
    %313 = arith.mulf %311, %312 : vector<1x1xf32>
    %cst_38 = arith.constant 2.000000e+00 : f32
    %314 = vector.broadcast %cst_38 : f32 to vector<1x1xf32>
    %315 = arith.subf %314, %313 : vector<1x1xf32>
    %316 = arith.mulf %312, %315 : vector<1x1xf32>
    %317 = vector.broadcast %316 : vector<1x1xf32> to vector<1x8xf32>
    %318 = arith.mulf %309, %317 : vector<1x8xf32>
    %319 = vector.broadcast %316 : vector<1x1xf32> to vector<1x8xf32>
    %320 = arith.mulf %310, %319 : vector<1x8xf32>
    %c4_i32_39 = arith.constant 4 : i32
    %321 = vector.broadcast %c4_i32_39 : i32 to vector<8x1xi32>
    %322 = arith.cmpi eq, %8, %321 : vector<8x1xi32>
    %cst_40 = arith.constant 1.000000e+00 : f32
    %323 = vector.broadcast %cst_40 : f32 to vector<1x1xf32>
    %324 = arith.subf %311, %323 : vector<1x1xf32>
    %325 = vector.extract_strided_slice %304 {offsets = [0, 4], sizes = [8, 1], strides = [1, 1]} : vector<8x8xf32> to vector<8x1xf32>
    %326 = vector.shape_cast %324 : vector<1x1xf32> to vector<1x1xf32>
    %327 = vector.broadcast %326 : vector<1x1xf32> to vector<8x1xf32>
    %328 = arith.select %322, %327, %325 : vector<8x1xi1>, vector<8x1xf32>
    %329 = vector.broadcast %328 : vector<8x1xf32> to vector<8x8xf32>
    %330 = vector.broadcast %318 : vector<1x8xf32> to vector<8x8xf32>
    %331 = arith.mulf %329, %330 : vector<8x8xf32>
    %332 = arith.subf %304, %331 : vector<8x8xf32>
    %333 = vector.broadcast %328 : vector<8x1xf32> to vector<8x8xf32>
    %334 = vector.broadcast %320 : vector<1x8xf32> to vector<8x8xf32>
    %335 = arith.mulf %333, %334 : vector<8x8xf32>
    %336 = arith.subf %308, %335 : vector<8x8xf32>
    %337 = vector.extract_strided_slice %332 {offsets = [5, 0], sizes = [1, 8], strides = [1, 1]} : vector<8x8xf32> to vector<1x8xf32>
    %338 = vector.extract_strided_slice %336 {offsets = [5, 0], sizes = [1, 8], strides = [1, 1]} : vector<8x8xf32> to vector<1x8xf32>
    %339 = vector.extract_strided_slice %337 {offsets = [0, 5], sizes = [1, 1], strides = [1, 1]} : vector<1x8xf32> to vector<1x1xf32>
    %340 = tpu.reciprocal %339 {approx = true} : vector<1x1xf32> -> vector<1x1xf32>
    %341 = arith.mulf %339, %340 : vector<1x1xf32>
    %cst_41 = arith.constant 2.000000e+00 : f32
    %342 = vector.broadcast %cst_41 : f32 to vector<1x1xf32>
    %343 = arith.subf %342, %341 : vector<1x1xf32>
    %344 = arith.mulf %340, %343 : vector<1x1xf32>
    %345 = vector.broadcast %344 : vector<1x1xf32> to vector<1x8xf32>
    %346 = arith.mulf %338, %345 : vector<1x8xf32>
    %c5_i32_42 = arith.constant 5 : i32
    %347 = vector.broadcast %c5_i32_42 : i32 to vector<8x1xi32>
    %348 = arith.cmpi eq, %8, %347 : vector<8x1xi32>
    %cst_43 = arith.constant 1.000000e+00 : f32
    %349 = vector.broadcast %cst_43 : f32 to vector<1x1xf32>
    %350 = arith.subf %339, %349 : vector<1x1xf32>
    %351 = vector.extract_strided_slice %332 {offsets = [0, 5], sizes = [8, 1], strides = [1, 1]} : vector<8x8xf32> to vector<8x1xf32>
    %352 = vector.shape_cast %350 : vector<1x1xf32> to vector<1x1xf32>
    %353 = vector.broadcast %352 : vector<1x1xf32> to vector<8x1xf32>
    %354 = arith.select %348, %353, %351 : vector<8x1xi1>, vector<8x1xf32>
    %355 = vector.broadcast %354 : vector<8x1xf32> to vector<8x8xf32>
    %356 = vector.broadcast %346 : vector<1x8xf32> to vector<8x8xf32>
    %357 = arith.mulf %355, %356 : vector<8x8xf32>
    %358 = arith.subf %336, %357 : vector<8x8xf32>
    %cst_44 = arith.constant dense<0.000000e+00> : vector<16x8xf32>
    %359 = tpu.matmul %196, %358, %cst_44 {dimension_numbers = #tpu.dot_dimension_numbers<[1], [0], [0], [1], [0, 0, 1, 1], [], []>} : vector<16x8xf32>, vector<8x8xf32>, vector<16x8xf32> -> vector<16x8xf32>
    %cst_45 = arith.constant dense<0.000000e+00> : vector<16x32xf32>
    %360 = tpu.matmul %359, %188, %cst_45 {dimension_numbers = #tpu.dot_dimension_numbers<[1], [0], [0], [1], [0, 0, 1, 1], [], []>} : vector<16x8xf32>, vector<8x32xf32>, vector<16x32xf32> -> vector<16x32xf32>
    %361 = arith.mulf %360, %0 : vector<16x32xf32>
    %cst_46 = arith.constant dense<0.000000e+00> : vector<16xf32>
    %362 = vector.multi_reduction <add>, %361, %cst_46 [1] : vector<16x32xf32> to vector<16xf32>
    %363 = vector.shape_cast %362 : vector<16xf32> to vector<16x1xf32>
    %364 = arith.subf %11, %363 : vector<16x1xf32>
    %cst_47 = arith.constant 3.125000e-02 : f32
    %365 = vector.broadcast %cst_47 : f32 to vector<16x1xf32>
    %366 = arith.mulf %364, %365 : vector<16x1xf32>
    %367 = tpu.reciprocal %366 {approx = true} : vector<16x1xf32> -> vector<16x1xf32>
    %368 = arith.mulf %366, %367 : vector<16x1xf32>
    %cst_48 = arith.constant 2.000000e+00 : f32
    %369 = vector.broadcast %cst_48 : f32 to vector<16x1xf32>
    %370 = arith.subf %369, %368 : vector<16x1xf32>
    %371 = arith.mulf %367, %370 : vector<16x1xf32>
    %372 = vector.broadcast %371 : vector<16x1xf32> to vector<16x32xf32>
    %373 = arith.mulf %0, %372 : vector<16x32xf32>
    %374 = vector.broadcast %371 : vector<16x1xf32> to vector<16x8xf32>
    %375 = arith.mulf %359, %374 : vector<16x8xf32>
    %cst_49 = arith.constant dense<0.000000e+00> : vector<8x32xf32>
    %376 = tpu.matmul %359, %373, %cst_49 {dimension_numbers = #tpu.dot_dimension_numbers<[0], [0], [1], [1], [0, 1, 1, 1], [], []>} : vector<16x8xf32>, vector<16x32xf32>, vector<8x32xf32> -> vector<8x32xf32>
    %cst_50 = arith.constant dense<0.000000e+00> : vector<8x8xf32>
    %377 = tpu.matmul %359, %375, %cst_50 {dimension_numbers = #tpu.dot_dimension_numbers<[0], [0], [1], [1], [0, 1, 1, 1], [], []>} : vector<16x8xf32>, vector<16x8xf32>, vector<8x8xf32> -> vector<8x8xf32>
    %378 = arith.addf %7, %377 : vector<8x8xf32>
    %379 = vector.extract_strided_slice %378 {offsets = [0, 0], sizes = [1, 8], strides = [1, 1]} : vector<8x8xf32> to vector<1x8xf32>
    %380 = vector.extract_strided_slice %7 {offsets = [0, 0], sizes = [1, 8], strides = [1, 1]} : vector<8x8xf32> to vector<1x8xf32>
    %381 = vector.extract_strided_slice %379 {offsets = [0, 0], sizes = [1, 1], strides = [1, 1]} : vector<1x8xf32> to vector<1x1xf32>
    %382 = tpu.reciprocal %381 {approx = true} : vector<1x1xf32> -> vector<1x1xf32>
    %383 = arith.mulf %381, %382 : vector<1x1xf32>
    %cst_51 = arith.constant 2.000000e+00 : f32
    %384 = vector.broadcast %cst_51 : f32 to vector<1x1xf32>
    %385 = arith.subf %384, %383 : vector<1x1xf32>
    %386 = arith.mulf %382, %385 : vector<1x1xf32>
    %387 = vector.broadcast %386 : vector<1x1xf32> to vector<1x8xf32>
    %388 = arith.mulf %379, %387 : vector<1x8xf32>
    %389 = vector.broadcast %386 : vector<1x1xf32> to vector<1x8xf32>
    %390 = arith.mulf %380, %389 : vector<1x8xf32>
    %c0_i32_52 = arith.constant 0 : i32
    %391 = vector.broadcast %c0_i32_52 : i32 to vector<8x1xi32>
    %392 = arith.cmpi eq, %8, %391 : vector<8x1xi32>
    %cst_53 = arith.constant 1.000000e+00 : f32
    %393 = vector.broadcast %cst_53 : f32 to vector<1x1xf32>
    %394 = arith.subf %381, %393 : vector<1x1xf32>
    %395 = vector.extract_strided_slice %378 {offsets = [0, 0], sizes = [8, 1], strides = [1, 1]} : vector<8x8xf32> to vector<8x1xf32>
    %396 = vector.shape_cast %394 : vector<1x1xf32> to vector<1x1xf32>
    %397 = vector.broadcast %396 : vector<1x1xf32> to vector<8x1xf32>
    %398 = arith.select %392, %397, %395 : vector<8x1xi1>, vector<8x1xf32>
    %399 = vector.broadcast %398 : vector<8x1xf32> to vector<8x8xf32>
    %400 = vector.broadcast %388 : vector<1x8xf32> to vector<8x8xf32>
    %401 = arith.mulf %399, %400 : vector<8x8xf32>
    %402 = arith.subf %378, %401 : vector<8x8xf32>
    %403 = vector.broadcast %398 : vector<8x1xf32> to vector<8x8xf32>
    %404 = vector.broadcast %390 : vector<1x8xf32> to vector<8x8xf32>
    %405 = arith.mulf %403, %404 : vector<8x8xf32>
    %406 = arith.subf %7, %405 : vector<8x8xf32>
    %407 = vector.extract_strided_slice %402 {offsets = [1, 0], sizes = [1, 8], strides = [1, 1]} : vector<8x8xf32> to vector<1x8xf32>
    %408 = vector.extract_strided_slice %406 {offsets = [1, 0], sizes = [1, 8], strides = [1, 1]} : vector<8x8xf32> to vector<1x8xf32>
    %409 = vector.extract_strided_slice %407 {offsets = [0, 1], sizes = [1, 1], strides = [1, 1]} : vector<1x8xf32> to vector<1x1xf32>
    %410 = tpu.reciprocal %409 {approx = true} : vector<1x1xf32> -> vector<1x1xf32>
    %411 = arith.mulf %409, %410 : vector<1x1xf32>
    %cst_54 = arith.constant 2.000000e+00 : f32
    %412 = vector.broadcast %cst_54 : f32 to vector<1x1xf32>
    %413 = arith.subf %412, %411 : vector<1x1xf32>
    %414 = arith.mulf %410, %413 : vector<1x1xf32>
    %415 = vector.broadcast %414 : vector<1x1xf32> to vector<1x8xf32>
    %416 = arith.mulf %407, %415 : vector<1x8xf32>
    %417 = vector.broadcast %414 : vector<1x1xf32> to vector<1x8xf32>
    %418 = arith.mulf %408, %417 : vector<1x8xf32>
    %c1_i32_55 = arith.constant 1 : i32
    %419 = vector.broadcast %c1_i32_55 : i32 to vector<8x1xi32>
    %420 = arith.cmpi eq, %8, %419 : vector<8x1xi32>
    %cst_56 = arith.constant 1.000000e+00 : f32
    %421 = vector.broadcast %cst_56 : f32 to vector<1x1xf32>
    %422 = arith.subf %409, %421 : vector<1x1xf32>
    %423 = vector.extract_strided_slice %402 {offsets = [0, 1], sizes = [8, 1], strides = [1, 1]} : vector<8x8xf32> to vector<8x1xf32>
    %424 = vector.shape_cast %422 : vector<1x1xf32> to vector<1x1xf32>
    %425 = vector.broadcast %424 : vector<1x1xf32> to vector<8x1xf32>
    %426 = arith.select %420, %425, %423 : vector<8x1xi1>, vector<8x1xf32>
    %427 = vector.broadcast %426 : vector<8x1xf32> to vector<8x8xf32>
    %428 = vector.broadcast %416 : vector<1x8xf32> to vector<8x8xf32>
    %429 = arith.mulf %427, %428 : vector<8x8xf32>
    %430 = arith.subf %402, %429 : vector<8x8xf32>
    %431 = vector.broadcast %426 : vector<8x1xf32> to vector<8x8xf32>
    %432 = vector.broadcast %418 : vector<1x8xf32> to vector<8x8xf32>
    %433 = arith.mulf %431, %432 : vector<8x8xf32>
    %434 = arith.subf %406, %433 : vector<8x8xf32>
    %435 = vector.extract_strided_slice %430 {offsets = [2, 0], sizes = [1, 8], strides = [1, 1]} : vector<8x8xf32> to vector<1x8xf32>
    %436 = vector.extract_strided_slice %434 {offsets = [2, 0], sizes = [1, 8], strides = [1, 1]} : vector<8x8xf32> to vector<1x8xf32>
    %437 = vector.extract_strided_slice %435 {offsets = [0, 2], sizes = [1, 1], strides = [1, 1]} : vector<1x8xf32> to vector<1x1xf32>
    %438 = tpu.reciprocal %437 {approx = true} : vector<1x1xf32> -> vector<1x1xf32>
    %439 = arith.mulf %437, %438 : vector<1x1xf32>
    %cst_57 = arith.constant 2.000000e+00 : f32
    %440 = vector.broadcast %cst_57 : f32 to vector<1x1xf32>
    %441 = arith.subf %440, %439 : vector<1x1xf32>
    %442 = arith.mulf %438, %441 : vector<1x1xf32>
    %443 = vector.broadcast %442 : vector<1x1xf32> to vector<1x8xf32>
    %444 = arith.mulf %435, %443 : vector<1x8xf32>
    %445 = vector.broadcast %442 : vector<1x1xf32> to vector<1x8xf32>
    %446 = arith.mulf %436, %445 : vector<1x8xf32>
    %c2_i32_58 = arith.constant 2 : i32
    %447 = vector.broadcast %c2_i32_58 : i32 to vector<8x1xi32>
    %448 = arith.cmpi eq, %8, %447 : vector<8x1xi32>
    %cst_59 = arith.constant 1.000000e+00 : f32
    %449 = vector.broadcast %cst_59 : f32 to vector<1x1xf32>
    %450 = arith.subf %437, %449 : vector<1x1xf32>
    %451 = vector.extract_strided_slice %430 {offsets = [0, 2], sizes = [8, 1], strides = [1, 1]} : vector<8x8xf32> to vector<8x1xf32>
    %452 = vector.shape_cast %450 : vector<1x1xf32> to vector<1x1xf32>
    %453 = vector.broadcast %452 : vector<1x1xf32> to vector<8x1xf32>
    %454 = arith.select %448, %453, %451 : vector<8x1xi1>, vector<8x1xf32>
    %455 = vector.broadcast %454 : vector<8x1xf32> to vector<8x8xf32>
    %456 = vector.broadcast %444 : vector<1x8xf32> to vector<8x8xf32>
    %457 = arith.mulf %455, %456 : vector<8x8xf32>
    %458 = arith.subf %430, %457 : vector<8x8xf32>
    %459 = vector.broadcast %454 : vector<8x1xf32> to vector<8x8xf32>
    %460 = vector.broadcast %446 : vector<1x8xf32> to vector<8x8xf32>
    %461 = arith.mulf %459, %460 : vector<8x8xf32>
    %462 = arith.subf %434, %461 : vector<8x8xf32>
    %463 = vector.extract_strided_slice %458 {offsets = [3, 0], sizes = [1, 8], strides = [1, 1]} : vector<8x8xf32> to vector<1x8xf32>
    %464 = vector.extract_strided_slice %462 {offsets = [3, 0], sizes = [1, 8], strides = [1, 1]} : vector<8x8xf32> to vector<1x8xf32>
    %465 = vector.extract_strided_slice %463 {offsets = [0, 3], sizes = [1, 1], strides = [1, 1]} : vector<1x8xf32> to vector<1x1xf32>
    %466 = tpu.reciprocal %465 {approx = true} : vector<1x1xf32> -> vector<1x1xf32>
    %467 = arith.mulf %465, %466 : vector<1x1xf32>
    %cst_60 = arith.constant 2.000000e+00 : f32
    %468 = vector.broadcast %cst_60 : f32 to vector<1x1xf32>
    %469 = arith.subf %468, %467 : vector<1x1xf32>
    %470 = arith.mulf %466, %469 : vector<1x1xf32>
    %471 = vector.broadcast %470 : vector<1x1xf32> to vector<1x8xf32>
    %472 = arith.mulf %463, %471 : vector<1x8xf32>
    %473 = vector.broadcast %470 : vector<1x1xf32> to vector<1x8xf32>
    %474 = arith.mulf %464, %473 : vector<1x8xf32>
    %c3_i32_61 = arith.constant 3 : i32
    %475 = vector.broadcast %c3_i32_61 : i32 to vector<8x1xi32>
    %476 = arith.cmpi eq, %8, %475 : vector<8x1xi32>
    %cst_62 = arith.constant 1.000000e+00 : f32
    %477 = vector.broadcast %cst_62 : f32 to vector<1x1xf32>
    %478 = arith.subf %465, %477 : vector<1x1xf32>
    %479 = vector.extract_strided_slice %458 {offsets = [0, 3], sizes = [8, 1], strides = [1, 1]} : vector<8x8xf32> to vector<8x1xf32>
    %480 = vector.shape_cast %478 : vector<1x1xf32> to vector<1x1xf32>
    %481 = vector.broadcast %480 : vector<1x1xf32> to vector<8x1xf32>
    %482 = arith.select %476, %481, %479 : vector<8x1xi1>, vector<8x1xf32>
    %483 = vector.broadcast %482 : vector<8x1xf32> to vector<8x8xf32>
    %484 = vector.broadcast %472 : vector<1x8xf32> to vector<8x8xf32>
    %485 = arith.mulf %483, %484 : vector<8x8xf32>
    %486 = arith.subf %458, %485 : vector<8x8xf32>
    %487 = vector.broadcast %482 : vector<8x1xf32> to vector<8x8xf32>
    %488 = vector.broadcast %474 : vector<1x8xf32> to vector<8x8xf32>
    %489 = arith.mulf %487, %488 : vector<8x8xf32>
    %490 = arith.subf %462, %489 : vector<8x8xf32>
    %491 = vector.extract_strided_slice %486 {offsets = [4, 0], sizes = [1, 8], strides = [1, 1]} : vector<8x8xf32> to vector<1x8xf32>
    %492 = vector.extract_strided_slice %490 {offsets = [4, 0], sizes = [1, 8], strides = [1, 1]} : vector<8x8xf32> to vector<1x8xf32>
    %493 = vector.extract_strided_slice %491 {offsets = [0, 4], sizes = [1, 1], strides = [1, 1]} : vector<1x8xf32> to vector<1x1xf32>
    %494 = tpu.reciprocal %493 {approx = true} : vector<1x1xf32> -> vector<1x1xf32>
    %495 = arith.mulf %493, %494 : vector<1x1xf32>
    %cst_63 = arith.constant 2.000000e+00 : f32
    %496 = vector.broadcast %cst_63 : f32 to vector<1x1xf32>
    %497 = arith.subf %496, %495 : vector<1x1xf32>
    %498 = arith.mulf %494, %497 : vector<1x1xf32>
    %499 = vector.broadcast %498 : vector<1x1xf32> to vector<1x8xf32>
    %500 = arith.mulf %491, %499 : vector<1x8xf32>
    %501 = vector.broadcast %498 : vector<1x1xf32> to vector<1x8xf32>
    %502 = arith.mulf %492, %501 : vector<1x8xf32>
    %c4_i32_64 = arith.constant 4 : i32
    %503 = vector.broadcast %c4_i32_64 : i32 to vector<8x1xi32>
    %504 = arith.cmpi eq, %8, %503 : vector<8x1xi32>
    %cst_65 = arith.constant 1.000000e+00 : f32
    %505 = vector.broadcast %cst_65 : f32 to vector<1x1xf32>
    %506 = arith.subf %493, %505 : vector<1x1xf32>
    %507 = vector.extract_strided_slice %486 {offsets = [0, 4], sizes = [8, 1], strides = [1, 1]} : vector<8x8xf32> to vector<8x1xf32>
    %508 = vector.shape_cast %506 : vector<1x1xf32> to vector<1x1xf32>
    %509 = vector.broadcast %508 : vector<1x1xf32> to vector<8x1xf32>
    %510 = arith.select %504, %509, %507 : vector<8x1xi1>, vector<8x1xf32>
    %511 = vector.broadcast %510 : vector<8x1xf32> to vector<8x8xf32>
    %512 = vector.broadcast %500 : vector<1x8xf32> to vector<8x8xf32>
    %513 = arith.mulf %511, %512 : vector<8x8xf32>
    %514 = arith.subf %486, %513 : vector<8x8xf32>
    %515 = vector.broadcast %510 : vector<8x1xf32> to vector<8x8xf32>
    %516 = vector.broadcast %502 : vector<1x8xf32> to vector<8x8xf32>
    %517 = arith.mulf %515, %516 : vector<8x8xf32>
    %518 = arith.subf %490, %517 : vector<8x8xf32>
    %519 = vector.extract_strided_slice %514 {offsets = [5, 0], sizes = [1, 8], strides = [1, 1]} : vector<8x8xf32> to vector<1x8xf32>
    %520 = vector.extract_strided_slice %518 {offsets = [5, 0], sizes = [1, 8], strides = [1, 1]} : vector<8x8xf32> to vector<1x8xf32>
    %521 = vector.extract_strided_slice %519 {offsets = [0, 5], sizes = [1, 1], strides = [1, 1]} : vector<1x8xf32> to vector<1x1xf32>
    %522 = tpu.reciprocal %521 {approx = true} : vector<1x1xf32> -> vector<1x1xf32>
    %523 = arith.mulf %521, %522 : vector<1x1xf32>
    %cst_66 = arith.constant 2.000000e+00 : f32
    %524 = vector.broadcast %cst_66 : f32 to vector<1x1xf32>
    %525 = arith.subf %524, %523 : vector<1x1xf32>
    %526 = arith.mulf %522, %525 : vector<1x1xf32>
    %527 = vector.broadcast %526 : vector<1x1xf32> to vector<1x8xf32>
    %528 = arith.mulf %520, %527 : vector<1x8xf32>
    %c5_i32_67 = arith.constant 5 : i32
    %529 = vector.broadcast %c5_i32_67 : i32 to vector<8x1xi32>
    %530 = arith.cmpi eq, %8, %529 : vector<8x1xi32>
    %cst_68 = arith.constant 1.000000e+00 : f32
    %531 = vector.broadcast %cst_68 : f32 to vector<1x1xf32>
    %532 = arith.subf %521, %531 : vector<1x1xf32>
    %533 = vector.extract_strided_slice %514 {offsets = [0, 5], sizes = [8, 1], strides = [1, 1]} : vector<8x8xf32> to vector<8x1xf32>
    %534 = vector.shape_cast %532 : vector<1x1xf32> to vector<1x1xf32>
    %535 = vector.broadcast %534 : vector<1x1xf32> to vector<8x1xf32>
    %536 = arith.select %530, %535, %533 : vector<8x1xi1>, vector<8x1xf32>
    %537 = vector.broadcast %536 : vector<8x1xf32> to vector<8x8xf32>
    %538 = vector.broadcast %528 : vector<1x8xf32> to vector<8x8xf32>
    %539 = arith.mulf %537, %538 : vector<8x8xf32>
    %540 = arith.subf %518, %539 : vector<8x8xf32>
    %cst_69 = arith.constant dense<0.000000e+00> : vector<8x8xf32>
    %541 = tpu.matmul %377, %540, %cst_69 {dimension_numbers = #tpu.dot_dimension_numbers<[1], [0], [0], [1], [0, 0, 1, 1], [], []>} : vector<8x8xf32>, vector<8x8xf32>, vector<8x8xf32> -> vector<8x8xf32>
    %cst_70 = arith.constant dense<0.000000e+00> : vector<8x32xf32>
    %542 = tpu.matmul %541, %376, %cst_70 {dimension_numbers = #tpu.dot_dimension_numbers<[1], [0], [0], [1], [0, 0, 1, 1], [], []>} : vector<8x8xf32>, vector<8x32xf32>, vector<8x32xf32> -> vector<8x32xf32>
    %543 = arith.subf %376, %542 : vector<8x32xf32>
    %cst_71 = arith.constant dense<0.000000e+00> : vector<8x8xf32>
    %544 = tpu.matmul %541, %377, %cst_71 {dimension_numbers = #tpu.dot_dimension_numbers<[1], [0], [0], [1], [0, 0, 1, 1], [], []>} : vector<8x8xf32>, vector<8x8xf32>, vector<8x8xf32> -> vector<8x8xf32>
    %545 = arith.subf %377, %544 : vector<8x8xf32>
    %546 = arith.subf %7, %545 : vector<8x8xf32>
    %cst_72 = arith.constant 3.200000e+01 : f32
    %547 = vector.broadcast %cst_72 : f32 to vector<8x8xf32>
    %548 = arith.mulf %547, %546 : vector<8x8xf32>
    %cst_73 = arith.constant dense<0.000000e+00> : vector<8x8xf32>
    %549 = tpu.matmul %543, %543, %cst_73 {dimension_numbers = #tpu.dot_dimension_numbers<[1], [1], [0], [0], [0, 0, 1, 0], [], []>} : vector<8x32xf32>, vector<8x32xf32>, vector<8x8xf32> -> vector<8x8xf32>
    %550 = arith.addf %548, %549 : vector<8x8xf32>
    %cst_74 = arith.constant dense<0.000000e+00> : vector<16x32xf32>
    %551 = tpu.matmul %359, %543, %cst_74 {dimension_numbers = #tpu.dot_dimension_numbers<[1], [0], [0], [1], [0, 0, 1, 1], [], []>} : vector<16x8xf32>, vector<8x32xf32>, vector<16x32xf32> -> vector<16x32xf32>
    %cst_75 = arith.constant 5.000000e-01 : f32
    %552 = vector.broadcast %cst_75 : f32 to vector<16x32xf32>
    %553 = arith.mulf %552, %0 : vector<16x32xf32>
    %554 = arith.subf %553, %551 : vector<16x32xf32>
    %555 = arith.mulf %373, %554 : vector<16x32xf32>
    %556 = vector.shape_cast %555 : vector<16x32xf32> to vector<1x16x32xf32>
    %cst_76 = arith.constant dense<0.000000e+00> : vector<1xf32>
    %557 = vector.multi_reduction <add>, %556, %cst_76 [1, 2] : vector<1x16x32xf32> to vector<1xf32>
    %558 = vector.shape_cast %557 : vector<1xf32> to vector<1x1x1xf32>
    %559 = vector.extract %558[0, 0, 0] : f32 from vector<1x1x1xf32>
    %560 = arith.mulf %377, %550 : vector<8x8xf32>
    %561 = vector.shape_cast %560 : vector<8x8xf32> to vector<1x8x8xf32>
    %cst_77 = arith.constant dense<0.000000e+00> : vector<1xf32>
    %562 = vector.multi_reduction <add>, %561, %cst_77 [1, 2] : vector<1x8x8xf32> to vector<1xf32>
    %563 = vector.shape_cast %562 : vector<1xf32> to vector<1x1x1xf32>
    %564 = vector.extract %563[0, 0, 0] : f32 from vector<1x1x1xf32>
    %cst_78 = arith.constant 5.000000e-01 : f32
    %565 = arith.mulf %cst_78, %564 : f32
    %566 = arith.addf %559, %565 : f32
    %567 = math.log %366 : vector<16x1xf32>
    %568 = vector.shape_cast %567 : vector<16x1xf32> to vector<1x16x1xf32>
    %cst_79 = arith.constant dense<0.000000e+00> : vector<1xf32>
    %569 = vector.multi_reduction <add>, %568, %cst_79 [1, 2] : vector<1x16x1xf32> to vector<1xf32>
    %570 = vector.shape_cast %569 : vector<1xf32> to vector<1x1x1xf32>
    %571 = vector.extract %570[0, 0, 0] : f32 from vector<1x1x1xf32>
    %cst_80 = arith.constant -1.600000e+01 : f32
    %572 = arith.mulf %cst_80, %571 : f32
    %573 = arith.subf %572, %566 : f32
    %cst_81 = arith.constant 0.000000e+00 : f32
    %574 = arith.subf %cst_81, %573 : f32
    %c0_82 = arith.constant 0 : index
    %c0_83 = arith.constant 0 : index
    %575 = memref.load %arg5[%c0_82, %c0_83] : memref<1x3xf32, #tpu.memory_space<smem>>
    memref.store %574, %arg5[%c0_82, %c0_83] : memref<1x3xf32, #tpu.memory_space<smem>>
    %cst_84 = arith.constant dense<0.000000e+00> : vector<16x8xf32>
    %576 = tpu.matmul %0, %543, %cst_84 {dimension_numbers = #tpu.dot_dimension_numbers<[1], [1], [0], [0], [0, 0, 1, 0], [], []>} : vector<16x32xf32>, vector<8x32xf32>, vector<16x8xf32> -> vector<16x8xf32>
    %577 = vector.extract_strided_slice %550 {offsets = [0, 0], sizes = [1, 8], strides = [1, 1]} : vector<8x8xf32> to vector<1x8xf32>
    %578 = vector.extract_strided_slice %7 {offsets = [0, 0], sizes = [1, 8], strides = [1, 1]} : vector<8x8xf32> to vector<1x8xf32>
    %579 = vector.extract_strided_slice %577 {offsets = [0, 0], sizes = [1, 1], strides = [1, 1]} : vector<1x8xf32> to vector<1x1xf32>
    %580 = tpu.reciprocal %579 {approx = true} : vector<1x1xf32> -> vector<1x1xf32>
    %581 = arith.mulf %579, %580 : vector<1x1xf32>
    %cst_85 = arith.constant 2.000000e+00 : f32
    %582 = vector.broadcast %cst_85 : f32 to vector<1x1xf32>
    %583 = arith.subf %582, %581 : vector<1x1xf32>
    %584 = arith.mulf %580, %583 : vector<1x1xf32>
    %585 = vector.broadcast %584 : vector<1x1xf32> to vector<1x8xf32>
    %586 = arith.mulf %577, %585 : vector<1x8xf32>
    %587 = vector.broadcast %584 : vector<1x1xf32> to vector<1x8xf32>
    %588 = arith.mulf %578, %587 : vector<1x8xf32>
    %c0_i32_86 = arith.constant 0 : i32
    %589 = vector.broadcast %c0_i32_86 : i32 to vector<8x1xi32>
    %590 = arith.cmpi eq, %8, %589 : vector<8x1xi32>
    %cst_87 = arith.constant 1.000000e+00 : f32
    %591 = vector.broadcast %cst_87 : f32 to vector<1x1xf32>
    %592 = arith.subf %579, %591 : vector<1x1xf32>
    %593 = vector.extract_strided_slice %550 {offsets = [0, 0], sizes = [8, 1], strides = [1, 1]} : vector<8x8xf32> to vector<8x1xf32>
    %594 = vector.shape_cast %592 : vector<1x1xf32> to vector<1x1xf32>
    %595 = vector.broadcast %594 : vector<1x1xf32> to vector<8x1xf32>
    %596 = arith.select %590, %595, %593 : vector<8x1xi1>, vector<8x1xf32>
    %597 = vector.broadcast %596 : vector<8x1xf32> to vector<8x8xf32>
    %598 = vector.broadcast %586 : vector<1x8xf32> to vector<8x8xf32>
    %599 = arith.mulf %597, %598 : vector<8x8xf32>
    %600 = arith.subf %550, %599 : vector<8x8xf32>
    %601 = vector.broadcast %596 : vector<8x1xf32> to vector<8x8xf32>
    %602 = vector.broadcast %588 : vector<1x8xf32> to vector<8x8xf32>
    %603 = arith.mulf %601, %602 : vector<8x8xf32>
    %604 = arith.subf %7, %603 : vector<8x8xf32>
    %605 = vector.extract_strided_slice %600 {offsets = [1, 0], sizes = [1, 8], strides = [1, 1]} : vector<8x8xf32> to vector<1x8xf32>
    %606 = vector.extract_strided_slice %604 {offsets = [1, 0], sizes = [1, 8], strides = [1, 1]} : vector<8x8xf32> to vector<1x8xf32>
    %607 = vector.extract_strided_slice %605 {offsets = [0, 1], sizes = [1, 1], strides = [1, 1]} : vector<1x8xf32> to vector<1x1xf32>
    %608 = tpu.reciprocal %607 {approx = true} : vector<1x1xf32> -> vector<1x1xf32>
    %609 = arith.mulf %607, %608 : vector<1x1xf32>
    %cst_88 = arith.constant 2.000000e+00 : f32
    %610 = vector.broadcast %cst_88 : f32 to vector<1x1xf32>
    %611 = arith.subf %610, %609 : vector<1x1xf32>
    %612 = arith.mulf %608, %611 : vector<1x1xf32>
    %613 = vector.broadcast %612 : vector<1x1xf32> to vector<1x8xf32>
    %614 = arith.mulf %605, %613 : vector<1x8xf32>
    %615 = vector.broadcast %612 : vector<1x1xf32> to vector<1x8xf32>
    %616 = arith.mulf %606, %615 : vector<1x8xf32>
    %c1_i32_89 = arith.constant 1 : i32
    %617 = vector.broadcast %c1_i32_89 : i32 to vector<8x1xi32>
    %618 = arith.cmpi eq, %8, %617 : vector<8x1xi32>
    %cst_90 = arith.constant 1.000000e+00 : f32
    %619 = vector.broadcast %cst_90 : f32 to vector<1x1xf32>
    %620 = arith.subf %607, %619 : vector<1x1xf32>
    %621 = vector.extract_strided_slice %600 {offsets = [0, 1], sizes = [8, 1], strides = [1, 1]} : vector<8x8xf32> to vector<8x1xf32>
    %622 = vector.shape_cast %620 : vector<1x1xf32> to vector<1x1xf32>
    %623 = vector.broadcast %622 : vector<1x1xf32> to vector<8x1xf32>
    %624 = arith.select %618, %623, %621 : vector<8x1xi1>, vector<8x1xf32>
    %625 = vector.broadcast %624 : vector<8x1xf32> to vector<8x8xf32>
    %626 = vector.broadcast %614 : vector<1x8xf32> to vector<8x8xf32>
    %627 = arith.mulf %625, %626 : vector<8x8xf32>
    %628 = arith.subf %600, %627 : vector<8x8xf32>
    %629 = vector.broadcast %624 : vector<8x1xf32> to vector<8x8xf32>
    %630 = vector.broadcast %616 : vector<1x8xf32> to vector<8x8xf32>
    %631 = arith.mulf %629, %630 : vector<8x8xf32>
    %632 = arith.subf %604, %631 : vector<8x8xf32>
    %633 = vector.extract_strided_slice %628 {offsets = [2, 0], sizes = [1, 8], strides = [1, 1]} : vector<8x8xf32> to vector<1x8xf32>
    %634 = vector.extract_strided_slice %632 {offsets = [2, 0], sizes = [1, 8], strides = [1, 1]} : vector<8x8xf32> to vector<1x8xf32>
    %635 = vector.extract_strided_slice %633 {offsets = [0, 2], sizes = [1, 1], strides = [1, 1]} : vector<1x8xf32> to vector<1x1xf32>
    %636 = tpu.reciprocal %635 {approx = true} : vector<1x1xf32> -> vector<1x1xf32>
    %637 = arith.mulf %635, %636 : vector<1x1xf32>
    %cst_91 = arith.constant 2.000000e+00 : f32
    %638 = vector.broadcast %cst_91 : f32 to vector<1x1xf32>
    %639 = arith.subf %638, %637 : vector<1x1xf32>
    %640 = arith.mulf %636, %639 : vector<1x1xf32>
    %641 = vector.broadcast %640 : vector<1x1xf32> to vector<1x8xf32>
    %642 = arith.mulf %633, %641 : vector<1x8xf32>
    %643 = vector.broadcast %640 : vector<1x1xf32> to vector<1x8xf32>
    %644 = arith.mulf %634, %643 : vector<1x8xf32>
    %c2_i32_92 = arith.constant 2 : i32
    %645 = vector.broadcast %c2_i32_92 : i32 to vector<8x1xi32>
    %646 = arith.cmpi eq, %8, %645 : vector<8x1xi32>
    %cst_93 = arith.constant 1.000000e+00 : f32
    %647 = vector.broadcast %cst_93 : f32 to vector<1x1xf32>
    %648 = arith.subf %635, %647 : vector<1x1xf32>
    %649 = vector.extract_strided_slice %628 {offsets = [0, 2], sizes = [8, 1], strides = [1, 1]} : vector<8x8xf32> to vector<8x1xf32>
    %650 = vector.shape_cast %648 : vector<1x1xf32> to vector<1x1xf32>
    %651 = vector.broadcast %650 : vector<1x1xf32> to vector<8x1xf32>
    %652 = arith.select %646, %651, %649 : vector<8x1xi1>, vector<8x1xf32>
    %653 = vector.broadcast %652 : vector<8x1xf32> to vector<8x8xf32>
    %654 = vector.broadcast %642 : vector<1x8xf32> to vector<8x8xf32>
    %655 = arith.mulf %653, %654 : vector<8x8xf32>
    %656 = arith.subf %628, %655 : vector<8x8xf32>
    %657 = vector.broadcast %652 : vector<8x1xf32> to vector<8x8xf32>
    %658 = vector.broadcast %644 : vector<1x8xf32> to vector<8x8xf32>
    %659 = arith.mulf %657, %658 : vector<8x8xf32>
    %660 = arith.subf %632, %659 : vector<8x8xf32>
    %661 = vector.extract_strided_slice %656 {offsets = [3, 0], sizes = [1, 8], strides = [1, 1]} : vector<8x8xf32> to vector<1x8xf32>
    %662 = vector.extract_strided_slice %660 {offsets = [3, 0], sizes = [1, 8], strides = [1, 1]} : vector<8x8xf32> to vector<1x8xf32>
    %663 = vector.extract_strided_slice %661 {offsets = [0, 3], sizes = [1, 1], strides = [1, 1]} : vector<1x8xf32> to vector<1x1xf32>
    %664 = tpu.reciprocal %663 {approx = true} : vector<1x1xf32> -> vector<1x1xf32>
    %665 = arith.mulf %663, %664 : vector<1x1xf32>
    %cst_94 = arith.constant 2.000000e+00 : f32
    %666 = vector.broadcast %cst_94 : f32 to vector<1x1xf32>
    %667 = arith.subf %666, %665 : vector<1x1xf32>
    %668 = arith.mulf %664, %667 : vector<1x1xf32>
    %669 = vector.broadcast %668 : vector<1x1xf32> to vector<1x8xf32>
    %670 = arith.mulf %661, %669 : vector<1x8xf32>
    %671 = vector.broadcast %668 : vector<1x1xf32> to vector<1x8xf32>
    %672 = arith.mulf %662, %671 : vector<1x8xf32>
    %c3_i32_95 = arith.constant 3 : i32
    %673 = vector.broadcast %c3_i32_95 : i32 to vector<8x1xi32>
    %674 = arith.cmpi eq, %8, %673 : vector<8x1xi32>
    %cst_96 = arith.constant 1.000000e+00 : f32
    %675 = vector.broadcast %cst_96 : f32 to vector<1x1xf32>
    %676 = arith.subf %663, %675 : vector<1x1xf32>
    %677 = vector.extract_strided_slice %656 {offsets = [0, 3], sizes = [8, 1], strides = [1, 1]} : vector<8x8xf32> to vector<8x1xf32>
    %678 = vector.shape_cast %676 : vector<1x1xf32> to vector<1x1xf32>
    %679 = vector.broadcast %678 : vector<1x1xf32> to vector<8x1xf32>
    %680 = arith.select %674, %679, %677 : vector<8x1xi1>, vector<8x1xf32>
    %681 = vector.broadcast %680 : vector<8x1xf32> to vector<8x8xf32>
    %682 = vector.broadcast %670 : vector<1x8xf32> to vector<8x8xf32>
    %683 = arith.mulf %681, %682 : vector<8x8xf32>
    %684 = arith.subf %656, %683 : vector<8x8xf32>
    %685 = vector.broadcast %680 : vector<8x1xf32> to vector<8x8xf32>
    %686 = vector.broadcast %672 : vector<1x8xf32> to vector<8x8xf32>
    %687 = arith.mulf %685, %686 : vector<8x8xf32>
    %688 = arith.subf %660, %687 : vector<8x8xf32>
    %689 = vector.extract_strided_slice %684 {offsets = [4, 0], sizes = [1, 8], strides = [1, 1]} : vector<8x8xf32> to vector<1x8xf32>
    %690 = vector.extract_strided_slice %688 {offsets = [4, 0], sizes = [1, 8], strides = [1, 1]} : vector<8x8xf32> to vector<1x8xf32>
    %691 = vector.extract_strided_slice %689 {offsets = [0, 4], sizes = [1, 1], strides = [1, 1]} : vector<1x8xf32> to vector<1x1xf32>
    %692 = tpu.reciprocal %691 {approx = true} : vector<1x1xf32> -> vector<1x1xf32>
    %693 = arith.mulf %691, %692 : vector<1x1xf32>
    %cst_97 = arith.constant 2.000000e+00 : f32
    %694 = vector.broadcast %cst_97 : f32 to vector<1x1xf32>
    %695 = arith.subf %694, %693 : vector<1x1xf32>
    %696 = arith.mulf %692, %695 : vector<1x1xf32>
    %697 = vector.broadcast %696 : vector<1x1xf32> to vector<1x8xf32>
    %698 = arith.mulf %689, %697 : vector<1x8xf32>
    %699 = vector.broadcast %696 : vector<1x1xf32> to vector<1x8xf32>
    %700 = arith.mulf %690, %699 : vector<1x8xf32>
    %c4_i32_98 = arith.constant 4 : i32
    %701 = vector.broadcast %c4_i32_98 : i32 to vector<8x1xi32>
    %702 = arith.cmpi eq, %8, %701 : vector<8x1xi32>
    %cst_99 = arith.constant 1.000000e+00 : f32
    %703 = vector.broadcast %cst_99 : f32 to vector<1x1xf32>
    %704 = arith.subf %691, %703 : vector<1x1xf32>
    %705 = vector.extract_strided_slice %684 {offsets = [0, 4], sizes = [8, 1], strides = [1, 1]} : vector<8x8xf32> to vector<8x1xf32>
    %706 = vector.shape_cast %704 : vector<1x1xf32> to vector<1x1xf32>
    %707 = vector.broadcast %706 : vector<1x1xf32> to vector<8x1xf32>
    %708 = arith.select %702, %707, %705 : vector<8x1xi1>, vector<8x1xf32>
    %709 = vector.broadcast %708 : vector<8x1xf32> to vector<8x8xf32>
    %710 = vector.broadcast %698 : vector<1x8xf32> to vector<8x8xf32>
    %711 = arith.mulf %709, %710 : vector<8x8xf32>
    %712 = arith.subf %684, %711 : vector<8x8xf32>
    %713 = vector.broadcast %708 : vector<8x1xf32> to vector<8x8xf32>
    %714 = vector.broadcast %700 : vector<1x8xf32> to vector<8x8xf32>
    %715 = arith.mulf %713, %714 : vector<8x8xf32>
    %716 = arith.subf %688, %715 : vector<8x8xf32>
    %717 = vector.extract_strided_slice %712 {offsets = [5, 0], sizes = [1, 8], strides = [1, 1]} : vector<8x8xf32> to vector<1x8xf32>
    %718 = vector.extract_strided_slice %716 {offsets = [5, 0], sizes = [1, 8], strides = [1, 1]} : vector<8x8xf32> to vector<1x8xf32>
    %719 = vector.extract_strided_slice %717 {offsets = [0, 5], sizes = [1, 1], strides = [1, 1]} : vector<1x8xf32> to vector<1x1xf32>
    %720 = tpu.reciprocal %719 {approx = true} : vector<1x1xf32> -> vector<1x1xf32>
    %721 = arith.mulf %719, %720 : vector<1x1xf32>
    %cst_100 = arith.constant 2.000000e+00 : f32
    %722 = vector.broadcast %cst_100 : f32 to vector<1x1xf32>
    %723 = arith.subf %722, %721 : vector<1x1xf32>
    %724 = arith.mulf %720, %723 : vector<1x1xf32>
    %725 = vector.broadcast %724 : vector<1x1xf32> to vector<1x8xf32>
    %726 = arith.mulf %718, %725 : vector<1x8xf32>
    %c5_i32_101 = arith.constant 5 : i32
    %727 = vector.broadcast %c5_i32_101 : i32 to vector<8x1xi32>
    %728 = arith.cmpi eq, %8, %727 : vector<8x1xi32>
    %cst_102 = arith.constant 1.000000e+00 : f32
    %729 = vector.broadcast %cst_102 : f32 to vector<1x1xf32>
    %730 = arith.subf %719, %729 : vector<1x1xf32>
    %731 = vector.extract_strided_slice %712 {offsets = [0, 5], sizes = [8, 1], strides = [1, 1]} : vector<8x8xf32> to vector<8x1xf32>
    %732 = vector.shape_cast %730 : vector<1x1xf32> to vector<1x1xf32>
    %733 = vector.broadcast %732 : vector<1x1xf32> to vector<8x1xf32>
    %734 = arith.select %728, %733, %731 : vector<8x1xi1>, vector<8x1xf32>
    %735 = vector.broadcast %734 : vector<8x1xf32> to vector<8x8xf32>
    %736 = vector.broadcast %726 : vector<1x8xf32> to vector<8x8xf32>
    %737 = arith.mulf %735, %736 : vector<8x8xf32>
    %738 = arith.subf %716, %737 : vector<8x8xf32>
    %cst_103 = arith.constant dense<0.000000e+00> : vector<16x8xf32>
    %739 = tpu.matmul %576, %738, %cst_103 {dimension_numbers = #tpu.dot_dimension_numbers<[1], [0], [0], [1], [0, 0, 1, 1], [], []>} : vector<16x8xf32>, vector<8x8xf32>, vector<16x8xf32> -> vector<16x8xf32>
    %cst_104 = arith.constant dense<0.000000e+00> : vector<16x32xf32>
    %740 = tpu.matmul %739, %543, %cst_104 {dimension_numbers = #tpu.dot_dimension_numbers<[1], [0], [0], [1], [0, 0, 1, 1], [], []>} : vector<16x8xf32>, vector<8x32xf32>, vector<16x32xf32> -> vector<16x32xf32>
    %741 = arith.mulf %740, %0 : vector<16x32xf32>
    %cst_105 = arith.constant dense<0.000000e+00> : vector<16xf32>
    %742 = vector.multi_reduction <add>, %741, %cst_105 [1] : vector<16x32xf32> to vector<16xf32>
    %743 = vector.shape_cast %742 : vector<16xf32> to vector<16x1xf32>
    %744 = arith.subf %11, %743 : vector<16x1xf32>
    %cst_106 = arith.constant 3.125000e-02 : f32
    %745 = vector.broadcast %cst_106 : f32 to vector<16x1xf32>
    %746 = arith.mulf %744, %745 : vector<16x1xf32>
    %747 = tpu.reciprocal %746 {approx = true} : vector<16x1xf32> -> vector<16x1xf32>
    %748 = arith.mulf %746, %747 : vector<16x1xf32>
    %cst_107 = arith.constant 2.000000e+00 : f32
    %749 = vector.broadcast %cst_107 : f32 to vector<16x1xf32>
    %750 = arith.subf %749, %748 : vector<16x1xf32>
    %751 = arith.mulf %747, %750 : vector<16x1xf32>
    %752 = vector.broadcast %751 : vector<16x1xf32> to vector<16x32xf32>
    %753 = arith.mulf %0, %752 : vector<16x32xf32>
    %754 = vector.broadcast %751 : vector<16x1xf32> to vector<16x8xf32>
    %755 = arith.mulf %739, %754 : vector<16x8xf32>
    %cst_108 = arith.constant dense<0.000000e+00> : vector<8x32xf32>
    %756 = tpu.matmul %739, %753, %cst_108 {dimension_numbers = #tpu.dot_dimension_numbers<[0], [0], [1], [1], [0, 1, 1, 1], [], []>} : vector<16x8xf32>, vector<16x32xf32>, vector<8x32xf32> -> vector<8x32xf32>
    %cst_109 = arith.constant dense<0.000000e+00> : vector<8x8xf32>
    %757 = tpu.matmul %739, %755, %cst_109 {dimension_numbers = #tpu.dot_dimension_numbers<[0], [0], [1], [1], [0, 1, 1, 1], [], []>} : vector<16x8xf32>, vector<16x8xf32>, vector<8x8xf32> -> vector<8x8xf32>
    %758 = arith.addf %7, %757 : vector<8x8xf32>
    %759 = vector.extract_strided_slice %758 {offsets = [0, 0], sizes = [1, 8], strides = [1, 1]} : vector<8x8xf32> to vector<1x8xf32>
    %760 = vector.extract_strided_slice %7 {offsets = [0, 0], sizes = [1, 8], strides = [1, 1]} : vector<8x8xf32> to vector<1x8xf32>
    %761 = vector.extract_strided_slice %759 {offsets = [0, 0], sizes = [1, 1], strides = [1, 1]} : vector<1x8xf32> to vector<1x1xf32>
    %762 = tpu.reciprocal %761 {approx = true} : vector<1x1xf32> -> vector<1x1xf32>
    %763 = arith.mulf %761, %762 : vector<1x1xf32>
    %cst_110 = arith.constant 2.000000e+00 : f32
    %764 = vector.broadcast %cst_110 : f32 to vector<1x1xf32>
    %765 = arith.subf %764, %763 : vector<1x1xf32>
    %766 = arith.mulf %762, %765 : vector<1x1xf32>
    %767 = vector.broadcast %766 : vector<1x1xf32> to vector<1x8xf32>
    %768 = arith.mulf %759, %767 : vector<1x8xf32>
    %769 = vector.broadcast %766 : vector<1x1xf32> to vector<1x8xf32>
    %770 = arith.mulf %760, %769 : vector<1x8xf32>
    %c0_i32_111 = arith.constant 0 : i32
    %771 = vector.broadcast %c0_i32_111 : i32 to vector<8x1xi32>
    %772 = arith.cmpi eq, %8, %771 : vector<8x1xi32>
    %cst_112 = arith.constant 1.000000e+00 : f32
    %773 = vector.broadcast %cst_112 : f32 to vector<1x1xf32>
    %774 = arith.subf %761, %773 : vector<1x1xf32>
    %775 = vector.extract_strided_slice %758 {offsets = [0, 0], sizes = [8, 1], strides = [1, 1]} : vector<8x8xf32> to vector<8x1xf32>
    %776 = vector.shape_cast %774 : vector<1x1xf32> to vector<1x1xf32>
    %777 = vector.broadcast %776 : vector<1x1xf32> to vector<8x1xf32>
    %778 = arith.select %772, %777, %775 : vector<8x1xi1>, vector<8x1xf32>
    %779 = vector.broadcast %778 : vector<8x1xf32> to vector<8x8xf32>
    %780 = vector.broadcast %768 : vector<1x8xf32> to vector<8x8xf32>
    %781 = arith.mulf %779, %780 : vector<8x8xf32>
    %782 = arith.subf %758, %781 : vector<8x8xf32>
    %783 = vector.broadcast %778 : vector<8x1xf32> to vector<8x8xf32>
    %784 = vector.broadcast %770 : vector<1x8xf32> to vector<8x8xf32>
    %785 = arith.mulf %783, %784 : vector<8x8xf32>
    %786 = arith.subf %7, %785 : vector<8x8xf32>
    %787 = vector.extract_strided_slice %782 {offsets = [1, 0], sizes = [1, 8], strides = [1, 1]} : vector<8x8xf32> to vector<1x8xf32>
    %788 = vector.extract_strided_slice %786 {offsets = [1, 0], sizes = [1, 8], strides = [1, 1]} : vector<8x8xf32> to vector<1x8xf32>
    %789 = vector.extract_strided_slice %787 {offsets = [0, 1], sizes = [1, 1], strides = [1, 1]} : vector<1x8xf32> to vector<1x1xf32>
    %790 = tpu.reciprocal %789 {approx = true} : vector<1x1xf32> -> vector<1x1xf32>
    %791 = arith.mulf %789, %790 : vector<1x1xf32>
    %cst_113 = arith.constant 2.000000e+00 : f32
    %792 = vector.broadcast %cst_113 : f32 to vector<1x1xf32>
    %793 = arith.subf %792, %791 : vector<1x1xf32>
    %794 = arith.mulf %790, %793 : vector<1x1xf32>
    %795 = vector.broadcast %794 : vector<1x1xf32> to vector<1x8xf32>
    %796 = arith.mulf %787, %795 : vector<1x8xf32>
    %797 = vector.broadcast %794 : vector<1x1xf32> to vector<1x8xf32>
    %798 = arith.mulf %788, %797 : vector<1x8xf32>
    %c1_i32_114 = arith.constant 1 : i32
    %799 = vector.broadcast %c1_i32_114 : i32 to vector<8x1xi32>
    %800 = arith.cmpi eq, %8, %799 : vector<8x1xi32>
    %cst_115 = arith.constant 1.000000e+00 : f32
    %801 = vector.broadcast %cst_115 : f32 to vector<1x1xf32>
    %802 = arith.subf %789, %801 : vector<1x1xf32>
    %803 = vector.extract_strided_slice %782 {offsets = [0, 1], sizes = [8, 1], strides = [1, 1]} : vector<8x8xf32> to vector<8x1xf32>
    %804 = vector.shape_cast %802 : vector<1x1xf32> to vector<1x1xf32>
    %805 = vector.broadcast %804 : vector<1x1xf32> to vector<8x1xf32>
    %806 = arith.select %800, %805, %803 : vector<8x1xi1>, vector<8x1xf32>
    %807 = vector.broadcast %806 : vector<8x1xf32> to vector<8x8xf32>
    %808 = vector.broadcast %796 : vector<1x8xf32> to vector<8x8xf32>
    %809 = arith.mulf %807, %808 : vector<8x8xf32>
    %810 = arith.subf %782, %809 : vector<8x8xf32>
    %811 = vector.broadcast %806 : vector<8x1xf32> to vector<8x8xf32>
    %812 = vector.broadcast %798 : vector<1x8xf32> to vector<8x8xf32>
    %813 = arith.mulf %811, %812 : vector<8x8xf32>
    %814 = arith.subf %786, %813 : vector<8x8xf32>
    %815 = vector.extract_strided_slice %810 {offsets = [2, 0], sizes = [1, 8], strides = [1, 1]} : vector<8x8xf32> to vector<1x8xf32>
    %816 = vector.extract_strided_slice %814 {offsets = [2, 0], sizes = [1, 8], strides = [1, 1]} : vector<8x8xf32> to vector<1x8xf32>
    %817 = vector.extract_strided_slice %815 {offsets = [0, 2], sizes = [1, 1], strides = [1, 1]} : vector<1x8xf32> to vector<1x1xf32>
    %818 = tpu.reciprocal %817 {approx = true} : vector<1x1xf32> -> vector<1x1xf32>
    %819 = arith.mulf %817, %818 : vector<1x1xf32>
    %cst_116 = arith.constant 2.000000e+00 : f32
    %820 = vector.broadcast %cst_116 : f32 to vector<1x1xf32>
    %821 = arith.subf %820, %819 : vector<1x1xf32>
    %822 = arith.mulf %818, %821 : vector<1x1xf32>
    %823 = vector.broadcast %822 : vector<1x1xf32> to vector<1x8xf32>
    %824 = arith.mulf %815, %823 : vector<1x8xf32>
    %825 = vector.broadcast %822 : vector<1x1xf32> to vector<1x8xf32>
    %826 = arith.mulf %816, %825 : vector<1x8xf32>
    %c2_i32_117 = arith.constant 2 : i32
    %827 = vector.broadcast %c2_i32_117 : i32 to vector<8x1xi32>
    %828 = arith.cmpi eq, %8, %827 : vector<8x1xi32>
    %cst_118 = arith.constant 1.000000e+00 : f32
    %829 = vector.broadcast %cst_118 : f32 to vector<1x1xf32>
    %830 = arith.subf %817, %829 : vector<1x1xf32>
    %831 = vector.extract_strided_slice %810 {offsets = [0, 2], sizes = [8, 1], strides = [1, 1]} : vector<8x8xf32> to vector<8x1xf32>
    %832 = vector.shape_cast %830 : vector<1x1xf32> to vector<1x1xf32>
    %833 = vector.broadcast %832 : vector<1x1xf32> to vector<8x1xf32>
    %834 = arith.select %828, %833, %831 : vector<8x1xi1>, vector<8x1xf32>
    %835 = vector.broadcast %834 : vector<8x1xf32> to vector<8x8xf32>
    %836 = vector.broadcast %824 : vector<1x8xf32> to vector<8x8xf32>
    %837 = arith.mulf %835, %836 : vector<8x8xf32>
    %838 = arith.subf %810, %837 : vector<8x8xf32>
    %839 = vector.broadcast %834 : vector<8x1xf32> to vector<8x8xf32>
    %840 = vector.broadcast %826 : vector<1x8xf32> to vector<8x8xf32>
    %841 = arith.mulf %839, %840 : vector<8x8xf32>
    %842 = arith.subf %814, %841 : vector<8x8xf32>
    %843 = vector.extract_strided_slice %838 {offsets = [3, 0], sizes = [1, 8], strides = [1, 1]} : vector<8x8xf32> to vector<1x8xf32>
    %844 = vector.extract_strided_slice %842 {offsets = [3, 0], sizes = [1, 8], strides = [1, 1]} : vector<8x8xf32> to vector<1x8xf32>
    %845 = vector.extract_strided_slice %843 {offsets = [0, 3], sizes = [1, 1], strides = [1, 1]} : vector<1x8xf32> to vector<1x1xf32>
    %846 = tpu.reciprocal %845 {approx = true} : vector<1x1xf32> -> vector<1x1xf32>
    %847 = arith.mulf %845, %846 : vector<1x1xf32>
    %cst_119 = arith.constant 2.000000e+00 : f32
    %848 = vector.broadcast %cst_119 : f32 to vector<1x1xf32>
    %849 = arith.subf %848, %847 : vector<1x1xf32>
    %850 = arith.mulf %846, %849 : vector<1x1xf32>
    %851 = vector.broadcast %850 : vector<1x1xf32> to vector<1x8xf32>
    %852 = arith.mulf %843, %851 : vector<1x8xf32>
    %853 = vector.broadcast %850 : vector<1x1xf32> to vector<1x8xf32>
    %854 = arith.mulf %844, %853 : vector<1x8xf32>
    %c3_i32_120 = arith.constant 3 : i32
    %855 = vector.broadcast %c3_i32_120 : i32 to vector<8x1xi32>
    %856 = arith.cmpi eq, %8, %855 : vector<8x1xi32>
    %cst_121 = arith.constant 1.000000e+00 : f32
    %857 = vector.broadcast %cst_121 : f32 to vector<1x1xf32>
    %858 = arith.subf %845, %857 : vector<1x1xf32>
    %859 = vector.extract_strided_slice %838 {offsets = [0, 3], sizes = [8, 1], strides = [1, 1]} : vector<8x8xf32> to vector<8x1xf32>
    %860 = vector.shape_cast %858 : vector<1x1xf32> to vector<1x1xf32>
    %861 = vector.broadcast %860 : vector<1x1xf32> to vector<8x1xf32>
    %862 = arith.select %856, %861, %859 : vector<8x1xi1>, vector<8x1xf32>
    %863 = vector.broadcast %862 : vector<8x1xf32> to vector<8x8xf32>
    %864 = vector.broadcast %852 : vector<1x8xf32> to vector<8x8xf32>
    %865 = arith.mulf %863, %864 : vector<8x8xf32>
    %866 = arith.subf %838, %865 : vector<8x8xf32>
    %867 = vector.broadcast %862 : vector<8x1xf32> to vector<8x8xf32>
    %868 = vector.broadcast %854 : vector<1x8xf32> to vector<8x8xf32>
    %869 = arith.mulf %867, %868 : vector<8x8xf32>
    %870 = arith.subf %842, %869 : vector<8x8xf32>
    %871 = vector.extract_strided_slice %866 {offsets = [4, 0], sizes = [1, 8], strides = [1, 1]} : vector<8x8xf32> to vector<1x8xf32>
    %872 = vector.extract_strided_slice %870 {offsets = [4, 0], sizes = [1, 8], strides = [1, 1]} : vector<8x8xf32> to vector<1x8xf32>
    %873 = vector.extract_strided_slice %871 {offsets = [0, 4], sizes = [1, 1], strides = [1, 1]} : vector<1x8xf32> to vector<1x1xf32>
    %874 = tpu.reciprocal %873 {approx = true} : vector<1x1xf32> -> vector<1x1xf32>
    %875 = arith.mulf %873, %874 : vector<1x1xf32>
    %cst_122 = arith.constant 2.000000e+00 : f32
    %876 = vector.broadcast %cst_122 : f32 to vector<1x1xf32>
    %877 = arith.subf %876, %875 : vector<1x1xf32>
    %878 = arith.mulf %874, %877 : vector<1x1xf32>
    %879 = vector.broadcast %878 : vector<1x1xf32> to vector<1x8xf32>
    %880 = arith.mulf %871, %879 : vector<1x8xf32>
    %881 = vector.broadcast %878 : vector<1x1xf32> to vector<1x8xf32>
    %882 = arith.mulf %872, %881 : vector<1x8xf32>
    %c4_i32_123 = arith.constant 4 : i32
    %883 = vector.broadcast %c4_i32_123 : i32 to vector<8x1xi32>
    %884 = arith.cmpi eq, %8, %883 : vector<8x1xi32>
    %cst_124 = arith.constant 1.000000e+00 : f32
    %885 = vector.broadcast %cst_124 : f32 to vector<1x1xf32>
    %886 = arith.subf %873, %885 : vector<1x1xf32>
    %887 = vector.extract_strided_slice %866 {offsets = [0, 4], sizes = [8, 1], strides = [1, 1]} : vector<8x8xf32> to vector<8x1xf32>
    %888 = vector.shape_cast %886 : vector<1x1xf32> to vector<1x1xf32>
    %889 = vector.broadcast %888 : vector<1x1xf32> to vector<8x1xf32>
    %890 = arith.select %884, %889, %887 : vector<8x1xi1>, vector<8x1xf32>
    %891 = vector.broadcast %890 : vector<8x1xf32> to vector<8x8xf32>
    %892 = vector.broadcast %880 : vector<1x8xf32> to vector<8x8xf32>
    %893 = arith.mulf %891, %892 : vector<8x8xf32>
    %894 = arith.subf %866, %893 : vector<8x8xf32>
    %895 = vector.broadcast %890 : vector<8x1xf32> to vector<8x8xf32>
    %896 = vector.broadcast %882 : vector<1x8xf32> to vector<8x8xf32>
    %897 = arith.mulf %895, %896 : vector<8x8xf32>
    %898 = arith.subf %870, %897 : vector<8x8xf32>
    %899 = vector.extract_strided_slice %894 {offsets = [5, 0], sizes = [1, 8], strides = [1, 1]} : vector<8x8xf32> to vector<1x8xf32>
    %900 = vector.extract_strided_slice %898 {offsets = [5, 0], sizes = [1, 8], strides = [1, 1]} : vector<8x8xf32> to vector<1x8xf32>
    %901 = vector.extract_strided_slice %899 {offsets = [0, 5], sizes = [1, 1], strides = [1, 1]} : vector<1x8xf32> to vector<1x1xf32>
    %902 = tpu.reciprocal %901 {approx = true} : vector<1x1xf32> -> vector<1x1xf32>
    %903 = arith.mulf %901, %902 : vector<1x1xf32>
    %cst_125 = arith.constant 2.000000e+00 : f32
    %904 = vector.broadcast %cst_125 : f32 to vector<1x1xf32>
    %905 = arith.subf %904, %903 : vector<1x1xf32>
    %906 = arith.mulf %902, %905 : vector<1x1xf32>
    %907 = vector.broadcast %906 : vector<1x1xf32> to vector<1x8xf32>
    %908 = arith.mulf %900, %907 : vector<1x8xf32>
    %c5_i32_126 = arith.constant 5 : i32
    %909 = vector.broadcast %c5_i32_126 : i32 to vector<8x1xi32>
    %910 = arith.cmpi eq, %8, %909 : vector<8x1xi32>
    %cst_127 = arith.constant 1.000000e+00 : f32
    %911 = vector.broadcast %cst_127 : f32 to vector<1x1xf32>
    %912 = arith.subf %901, %911 : vector<1x1xf32>
    %913 = vector.extract_strided_slice %894 {offsets = [0, 5], sizes = [8, 1], strides = [1, 1]} : vector<8x8xf32> to vector<8x1xf32>
    %914 = vector.shape_cast %912 : vector<1x1xf32> to vector<1x1xf32>
    %915 = vector.broadcast %914 : vector<1x1xf32> to vector<8x1xf32>
    %916 = arith.select %910, %915, %913 : vector<8x1xi1>, vector<8x1xf32>
    %917 = vector.broadcast %916 : vector<8x1xf32> to vector<8x8xf32>
    %918 = vector.broadcast %908 : vector<1x8xf32> to vector<8x8xf32>
    %919 = arith.mulf %917, %918 : vector<8x8xf32>
    %920 = arith.subf %898, %919 : vector<8x8xf32>
    %cst_128 = arith.constant dense<0.000000e+00> : vector<8x8xf32>
    %921 = tpu.matmul %757, %920, %cst_128 {dimension_numbers = #tpu.dot_dimension_numbers<[1], [0], [0], [1], [0, 0, 1, 1], [], []>} : vector<8x8xf32>, vector<8x8xf32>, vector<8x8xf32> -> vector<8x8xf32>
    %cst_129 = arith.constant dense<0.000000e+00> : vector<8x32xf32>
    %922 = tpu.matmul %921, %756, %cst_129 {dimension_numbers = #tpu.dot_dimension_numbers<[1], [0], [0], [1], [0, 0, 1, 1], [], []>} : vector<8x8xf32>, vector<8x32xf32>, vector<8x32xf32> -> vector<8x32xf32>
    %923 = arith.subf %756, %922 : vector<8x32xf32>
    %cst_130 = arith.constant dense<0.000000e+00> : vector<8x8xf32>
    %924 = tpu.matmul %921, %757, %cst_130 {dimension_numbers = #tpu.dot_dimension_numbers<[1], [0], [0], [1], [0, 0, 1, 1], [], []>} : vector<8x8xf32>, vector<8x8xf32>, vector<8x8xf32> -> vector<8x8xf32>
    %925 = arith.subf %757, %924 : vector<8x8xf32>
    %926 = arith.subf %7, %925 : vector<8x8xf32>
    %cst_131 = arith.constant 3.200000e+01 : f32
    %927 = vector.broadcast %cst_131 : f32 to vector<8x8xf32>
    %928 = arith.mulf %927, %926 : vector<8x8xf32>
    %cst_132 = arith.constant dense<0.000000e+00> : vector<8x8xf32>
    %929 = tpu.matmul %923, %923, %cst_132 {dimension_numbers = #tpu.dot_dimension_numbers<[1], [1], [0], [0], [0, 0, 1, 0], [], []>} : vector<8x32xf32>, vector<8x32xf32>, vector<8x8xf32> -> vector<8x8xf32>
    %930 = arith.addf %928, %929 : vector<8x8xf32>
    %cst_133 = arith.constant dense<0.000000e+00> : vector<16x32xf32>
    %931 = tpu.matmul %739, %923, %cst_133 {dimension_numbers = #tpu.dot_dimension_numbers<[1], [0], [0], [1], [0, 0, 1, 1], [], []>} : vector<16x8xf32>, vector<8x32xf32>, vector<16x32xf32> -> vector<16x32xf32>
    %cst_134 = arith.constant 5.000000e-01 : f32
    %932 = vector.broadcast %cst_134 : f32 to vector<16x32xf32>
    %933 = arith.mulf %932, %0 : vector<16x32xf32>
    %934 = arith.subf %933, %931 : vector<16x32xf32>
    %935 = arith.mulf %753, %934 : vector<16x32xf32>
    %936 = vector.shape_cast %935 : vector<16x32xf32> to vector<1x16x32xf32>
    %cst_135 = arith.constant dense<0.000000e+00> : vector<1xf32>
    %937 = vector.multi_reduction <add>, %936, %cst_135 [1, 2] : vector<1x16x32xf32> to vector<1xf32>
    %938 = vector.shape_cast %937 : vector<1xf32> to vector<1x1x1xf32>
    %939 = vector.extract %938[0, 0, 0] : f32 from vector<1x1x1xf32>
    %940 = arith.mulf %757, %930 : vector<8x8xf32>
    %941 = vector.shape_cast %940 : vector<8x8xf32> to vector<1x8x8xf32>
    %cst_136 = arith.constant dense<0.000000e+00> : vector<1xf32>
    %942 = vector.multi_reduction <add>, %941, %cst_136 [1, 2] : vector<1x8x8xf32> to vector<1xf32>
    %943 = vector.shape_cast %942 : vector<1xf32> to vector<1x1x1xf32>
    %944 = vector.extract %943[0, 0, 0] : f32 from vector<1x1x1xf32>
    %cst_137 = arith.constant 5.000000e-01 : f32
    %945 = arith.mulf %cst_137, %944 : f32
    %946 = arith.addf %939, %945 : f32
    %947 = math.log %746 : vector<16x1xf32>
    %948 = vector.shape_cast %947 : vector<16x1xf32> to vector<1x16x1xf32>
    %cst_138 = arith.constant dense<0.000000e+00> : vector<1xf32>
    %949 = vector.multi_reduction <add>, %948, %cst_138 [1, 2] : vector<1x16x1xf32> to vector<1xf32>
    %950 = vector.shape_cast %949 : vector<1xf32> to vector<1x1x1xf32>
    %951 = vector.extract %950[0, 0, 0] : f32 from vector<1x1x1xf32>
    %cst_139 = arith.constant -1.600000e+01 : f32
    %952 = arith.mulf %cst_139, %951 : f32
    %953 = arith.subf %952, %946 : f32
    %cst_140 = arith.constant 0.000000e+00 : f32
    %954 = arith.subf %cst_140, %953 : f32
    %c0_141 = arith.constant 0 : index
    %c1 = arith.constant 1 : index
    %955 = memref.load %arg5[%c0_141, %c1] : memref<1x3xf32, #tpu.memory_space<smem>>
    memref.store %954, %arg5[%c0_141, %c1] : memref<1x3xf32, #tpu.memory_space<smem>>
    %cst_142 = arith.constant dense<0.000000e+00> : vector<16x8xf32>
    %956 = tpu.matmul %0, %923, %cst_142 {dimension_numbers = #tpu.dot_dimension_numbers<[1], [1], [0], [0], [0, 0, 1, 0], [], []>} : vector<16x32xf32>, vector<8x32xf32>, vector<16x8xf32> -> vector<16x8xf32>
    %957 = vector.extract_strided_slice %930 {offsets = [0, 0], sizes = [1, 8], strides = [1, 1]} : vector<8x8xf32> to vector<1x8xf32>
    %958 = vector.extract_strided_slice %7 {offsets = [0, 0], sizes = [1, 8], strides = [1, 1]} : vector<8x8xf32> to vector<1x8xf32>
    %959 = vector.extract_strided_slice %957 {offsets = [0, 0], sizes = [1, 1], strides = [1, 1]} : vector<1x8xf32> to vector<1x1xf32>
    %960 = tpu.reciprocal %959 {approx = true} : vector<1x1xf32> -> vector<1x1xf32>
    %961 = arith.mulf %959, %960 : vector<1x1xf32>
    %cst_143 = arith.constant 2.000000e+00 : f32
    %962 = vector.broadcast %cst_143 : f32 to vector<1x1xf32>
    %963 = arith.subf %962, %961 : vector<1x1xf32>
    %964 = arith.mulf %960, %963 : vector<1x1xf32>
    %965 = vector.broadcast %964 : vector<1x1xf32> to vector<1x8xf32>
    %966 = arith.mulf %957, %965 : vector<1x8xf32>
    %967 = vector.broadcast %964 : vector<1x1xf32> to vector<1x8xf32>
    %968 = arith.mulf %958, %967 : vector<1x8xf32>
    %c0_i32_144 = arith.constant 0 : i32
    %969 = vector.broadcast %c0_i32_144 : i32 to vector<8x1xi32>
    %970 = arith.cmpi eq, %8, %969 : vector<8x1xi32>
    %cst_145 = arith.constant 1.000000e+00 : f32
    %971 = vector.broadcast %cst_145 : f32 to vector<1x1xf32>
    %972 = arith.subf %959, %971 : vector<1x1xf32>
    %973 = vector.extract_strided_slice %930 {offsets = [0, 0], sizes = [8, 1], strides = [1, 1]} : vector<8x8xf32> to vector<8x1xf32>
    %974 = vector.shape_cast %972 : vector<1x1xf32> to vector<1x1xf32>
    %975 = vector.broadcast %974 : vector<1x1xf32> to vector<8x1xf32>
    %976 = arith.select %970, %975, %973 : vector<8x1xi1>, vector<8x1xf32>
    %977 = vector.broadcast %976 : vector<8x1xf32> to vector<8x8xf32>
    %978 = vector.broadcast %966 : vector<1x8xf32> to vector<8x8xf32>
    %979 = arith.mulf %977, %978 : vector<8x8xf32>
    %980 = arith.subf %930, %979 : vector<8x8xf32>
    %981 = vector.broadcast %976 : vector<8x1xf32> to vector<8x8xf32>
    %982 = vector.broadcast %968 : vector<1x8xf32> to vector<8x8xf32>
    %983 = arith.mulf %981, %982 : vector<8x8xf32>
    %984 = arith.subf %7, %983 : vector<8x8xf32>
    %985 = vector.extract_strided_slice %980 {offsets = [1, 0], sizes = [1, 8], strides = [1, 1]} : vector<8x8xf32> to vector<1x8xf32>
    %986 = vector.extract_strided_slice %984 {offsets = [1, 0], sizes = [1, 8], strides = [1, 1]} : vector<8x8xf32> to vector<1x8xf32>
    %987 = vector.extract_strided_slice %985 {offsets = [0, 1], sizes = [1, 1], strides = [1, 1]} : vector<1x8xf32> to vector<1x1xf32>
    %988 = tpu.reciprocal %987 {approx = true} : vector<1x1xf32> -> vector<1x1xf32>
    %989 = arith.mulf %987, %988 : vector<1x1xf32>
    %cst_146 = arith.constant 2.000000e+00 : f32
    %990 = vector.broadcast %cst_146 : f32 to vector<1x1xf32>
    %991 = arith.subf %990, %989 : vector<1x1xf32>
    %992 = arith.mulf %988, %991 : vector<1x1xf32>
    %993 = vector.broadcast %992 : vector<1x1xf32> to vector<1x8xf32>
    %994 = arith.mulf %985, %993 : vector<1x8xf32>
    %995 = vector.broadcast %992 : vector<1x1xf32> to vector<1x8xf32>
    %996 = arith.mulf %986, %995 : vector<1x8xf32>
    %c1_i32_147 = arith.constant 1 : i32
    %997 = vector.broadcast %c1_i32_147 : i32 to vector<8x1xi32>
    %998 = arith.cmpi eq, %8, %997 : vector<8x1xi32>
    %cst_148 = arith.constant 1.000000e+00 : f32
    %999 = vector.broadcast %cst_148 : f32 to vector<1x1xf32>
    %1000 = arith.subf %987, %999 : vector<1x1xf32>
    %1001 = vector.extract_strided_slice %980 {offsets = [0, 1], sizes = [8, 1], strides = [1, 1]} : vector<8x8xf32> to vector<8x1xf32>
    %1002 = vector.shape_cast %1000 : vector<1x1xf32> to vector<1x1xf32>
    %1003 = vector.broadcast %1002 : vector<1x1xf32> to vector<8x1xf32>
    %1004 = arith.select %998, %1003, %1001 : vector<8x1xi1>, vector<8x1xf32>
    %1005 = vector.broadcast %1004 : vector<8x1xf32> to vector<8x8xf32>
    %1006 = vector.broadcast %994 : vector<1x8xf32> to vector<8x8xf32>
    %1007 = arith.mulf %1005, %1006 : vector<8x8xf32>
    %1008 = arith.subf %980, %1007 : vector<8x8xf32>
    %1009 = vector.broadcast %1004 : vector<8x1xf32> to vector<8x8xf32>
    %1010 = vector.broadcast %996 : vector<1x8xf32> to vector<8x8xf32>
    %1011 = arith.mulf %1009, %1010 : vector<8x8xf32>
    %1012 = arith.subf %984, %1011 : vector<8x8xf32>
    %1013 = vector.extract_strided_slice %1008 {offsets = [2, 0], sizes = [1, 8], strides = [1, 1]} : vector<8x8xf32> to vector<1x8xf32>
    %1014 = vector.extract_strided_slice %1012 {offsets = [2, 0], sizes = [1, 8], strides = [1, 1]} : vector<8x8xf32> to vector<1x8xf32>
    %1015 = vector.extract_strided_slice %1013 {offsets = [0, 2], sizes = [1, 1], strides = [1, 1]} : vector<1x8xf32> to vector<1x1xf32>
    %1016 = tpu.reciprocal %1015 {approx = true} : vector<1x1xf32> -> vector<1x1xf32>
    %1017 = arith.mulf %1015, %1016 : vector<1x1xf32>
    %cst_149 = arith.constant 2.000000e+00 : f32
    %1018 = vector.broadcast %cst_149 : f32 to vector<1x1xf32>
    %1019 = arith.subf %1018, %1017 : vector<1x1xf32>
    %1020 = arith.mulf %1016, %1019 : vector<1x1xf32>
    %1021 = vector.broadcast %1020 : vector<1x1xf32> to vector<1x8xf32>
    %1022 = arith.mulf %1013, %1021 : vector<1x8xf32>
    %1023 = vector.broadcast %1020 : vector<1x1xf32> to vector<1x8xf32>
    %1024 = arith.mulf %1014, %1023 : vector<1x8xf32>
    %c2_i32_150 = arith.constant 2 : i32
    %1025 = vector.broadcast %c2_i32_150 : i32 to vector<8x1xi32>
    %1026 = arith.cmpi eq, %8, %1025 : vector<8x1xi32>
    %cst_151 = arith.constant 1.000000e+00 : f32
    %1027 = vector.broadcast %cst_151 : f32 to vector<1x1xf32>
    %1028 = arith.subf %1015, %1027 : vector<1x1xf32>
    %1029 = vector.extract_strided_slice %1008 {offsets = [0, 2], sizes = [8, 1], strides = [1, 1]} : vector<8x8xf32> to vector<8x1xf32>
    %1030 = vector.shape_cast %1028 : vector<1x1xf32> to vector<1x1xf32>
    %1031 = vector.broadcast %1030 : vector<1x1xf32> to vector<8x1xf32>
    %1032 = arith.select %1026, %1031, %1029 : vector<8x1xi1>, vector<8x1xf32>
    %1033 = vector.broadcast %1032 : vector<8x1xf32> to vector<8x8xf32>
    %1034 = vector.broadcast %1022 : vector<1x8xf32> to vector<8x8xf32>
    %1035 = arith.mulf %1033, %1034 : vector<8x8xf32>
    %1036 = arith.subf %1008, %1035 : vector<8x8xf32>
    %1037 = vector.broadcast %1032 : vector<8x1xf32> to vector<8x8xf32>
    %1038 = vector.broadcast %1024 : vector<1x8xf32> to vector<8x8xf32>
    %1039 = arith.mulf %1037, %1038 : vector<8x8xf32>
    %1040 = arith.subf %1012, %1039 : vector<8x8xf32>
    %1041 = vector.extract_strided_slice %1036 {offsets = [3, 0], sizes = [1, 8], strides = [1, 1]} : vector<8x8xf32> to vector<1x8xf32>
    %1042 = vector.extract_strided_slice %1040 {offsets = [3, 0], sizes = [1, 8], strides = [1, 1]} : vector<8x8xf32> to vector<1x8xf32>
    %1043 = vector.extract_strided_slice %1041 {offsets = [0, 3], sizes = [1, 1], strides = [1, 1]} : vector<1x8xf32> to vector<1x1xf32>
    %1044 = tpu.reciprocal %1043 {approx = true} : vector<1x1xf32> -> vector<1x1xf32>
    %1045 = arith.mulf %1043, %1044 : vector<1x1xf32>
    %cst_152 = arith.constant 2.000000e+00 : f32
    %1046 = vector.broadcast %cst_152 : f32 to vector<1x1xf32>
    %1047 = arith.subf %1046, %1045 : vector<1x1xf32>
    %1048 = arith.mulf %1044, %1047 : vector<1x1xf32>
    %1049 = vector.broadcast %1048 : vector<1x1xf32> to vector<1x8xf32>
    %1050 = arith.mulf %1041, %1049 : vector<1x8xf32>
    %1051 = vector.broadcast %1048 : vector<1x1xf32> to vector<1x8xf32>
    %1052 = arith.mulf %1042, %1051 : vector<1x8xf32>
    %c3_i32_153 = arith.constant 3 : i32
    %1053 = vector.broadcast %c3_i32_153 : i32 to vector<8x1xi32>
    %1054 = arith.cmpi eq, %8, %1053 : vector<8x1xi32>
    %cst_154 = arith.constant 1.000000e+00 : f32
    %1055 = vector.broadcast %cst_154 : f32 to vector<1x1xf32>
    %1056 = arith.subf %1043, %1055 : vector<1x1xf32>
    %1057 = vector.extract_strided_slice %1036 {offsets = [0, 3], sizes = [8, 1], strides = [1, 1]} : vector<8x8xf32> to vector<8x1xf32>
    %1058 = vector.shape_cast %1056 : vector<1x1xf32> to vector<1x1xf32>
    %1059 = vector.broadcast %1058 : vector<1x1xf32> to vector<8x1xf32>
    %1060 = arith.select %1054, %1059, %1057 : vector<8x1xi1>, vector<8x1xf32>
    %1061 = vector.broadcast %1060 : vector<8x1xf32> to vector<8x8xf32>
    %1062 = vector.broadcast %1050 : vector<1x8xf32> to vector<8x8xf32>
    %1063 = arith.mulf %1061, %1062 : vector<8x8xf32>
    %1064 = arith.subf %1036, %1063 : vector<8x8xf32>
    %1065 = vector.broadcast %1060 : vector<8x1xf32> to vector<8x8xf32>
    %1066 = vector.broadcast %1052 : vector<1x8xf32> to vector<8x8xf32>
    %1067 = arith.mulf %1065, %1066 : vector<8x8xf32>
    %1068 = arith.subf %1040, %1067 : vector<8x8xf32>
    %1069 = vector.extract_strided_slice %1064 {offsets = [4, 0], sizes = [1, 8], strides = [1, 1]} : vector<8x8xf32> to vector<1x8xf32>
    %1070 = vector.extract_strided_slice %1068 {offsets = [4, 0], sizes = [1, 8], strides = [1, 1]} : vector<8x8xf32> to vector<1x8xf32>
    %1071 = vector.extract_strided_slice %1069 {offsets = [0, 4], sizes = [1, 1], strides = [1, 1]} : vector<1x8xf32> to vector<1x1xf32>
    %1072 = tpu.reciprocal %1071 {approx = true} : vector<1x1xf32> -> vector<1x1xf32>
    %1073 = arith.mulf %1071, %1072 : vector<1x1xf32>
    %cst_155 = arith.constant 2.000000e+00 : f32
    %1074 = vector.broadcast %cst_155 : f32 to vector<1x1xf32>
    %1075 = arith.subf %1074, %1073 : vector<1x1xf32>
    %1076 = arith.mulf %1072, %1075 : vector<1x1xf32>
    %1077 = vector.broadcast %1076 : vector<1x1xf32> to vector<1x8xf32>
    %1078 = arith.mulf %1069, %1077 : vector<1x8xf32>
    %1079 = vector.broadcast %1076 : vector<1x1xf32> to vector<1x8xf32>
    %1080 = arith.mulf %1070, %1079 : vector<1x8xf32>
    %c4_i32_156 = arith.constant 4 : i32
    %1081 = vector.broadcast %c4_i32_156 : i32 to vector<8x1xi32>
    %1082 = arith.cmpi eq, %8, %1081 : vector<8x1xi32>
    %cst_157 = arith.constant 1.000000e+00 : f32
    %1083 = vector.broadcast %cst_157 : f32 to vector<1x1xf32>
    %1084 = arith.subf %1071, %1083 : vector<1x1xf32>
    %1085 = vector.extract_strided_slice %1064 {offsets = [0, 4], sizes = [8, 1], strides = [1, 1]} : vector<8x8xf32> to vector<8x1xf32>
    %1086 = vector.shape_cast %1084 : vector<1x1xf32> to vector<1x1xf32>
    %1087 = vector.broadcast %1086 : vector<1x1xf32> to vector<8x1xf32>
    %1088 = arith.select %1082, %1087, %1085 : vector<8x1xi1>, vector<8x1xf32>
    %1089 = vector.broadcast %1088 : vector<8x1xf32> to vector<8x8xf32>
    %1090 = vector.broadcast %1078 : vector<1x8xf32> to vector<8x8xf32>
    %1091 = arith.mulf %1089, %1090 : vector<8x8xf32>
    %1092 = arith.subf %1064, %1091 : vector<8x8xf32>
    %1093 = vector.broadcast %1088 : vector<8x1xf32> to vector<8x8xf32>
    %1094 = vector.broadcast %1080 : vector<1x8xf32> to vector<8x8xf32>
    %1095 = arith.mulf %1093, %1094 : vector<8x8xf32>
    %1096 = arith.subf %1068, %1095 : vector<8x8xf32>
    %1097 = vector.extract_strided_slice %1092 {offsets = [5, 0], sizes = [1, 8], strides = [1, 1]} : vector<8x8xf32> to vector<1x8xf32>
    %1098 = vector.extract_strided_slice %1096 {offsets = [5, 0], sizes = [1, 8], strides = [1, 1]} : vector<8x8xf32> to vector<1x8xf32>
    %1099 = vector.extract_strided_slice %1097 {offsets = [0, 5], sizes = [1, 1], strides = [1, 1]} : vector<1x8xf32> to vector<1x1xf32>
    %1100 = tpu.reciprocal %1099 {approx = true} : vector<1x1xf32> -> vector<1x1xf32>
    %1101 = arith.mulf %1099, %1100 : vector<1x1xf32>
    %cst_158 = arith.constant 2.000000e+00 : f32
    %1102 = vector.broadcast %cst_158 : f32 to vector<1x1xf32>
    %1103 = arith.subf %1102, %1101 : vector<1x1xf32>
    %1104 = arith.mulf %1100, %1103 : vector<1x1xf32>
    %1105 = vector.broadcast %1104 : vector<1x1xf32> to vector<1x8xf32>
    %1106 = arith.mulf %1098, %1105 : vector<1x8xf32>
    %c5_i32_159 = arith.constant 5 : i32
    %1107 = vector.broadcast %c5_i32_159 : i32 to vector<8x1xi32>
    %1108 = arith.cmpi eq, %8, %1107 : vector<8x1xi32>
    %cst_160 = arith.constant 1.000000e+00 : f32
    %1109 = vector.broadcast %cst_160 : f32 to vector<1x1xf32>
    %1110 = arith.subf %1099, %1109 : vector<1x1xf32>
    %1111 = vector.extract_strided_slice %1092 {offsets = [0, 5], sizes = [8, 1], strides = [1, 1]} : vector<8x8xf32> to vector<8x1xf32>
    %1112 = vector.shape_cast %1110 : vector<1x1xf32> to vector<1x1xf32>
    %1113 = vector.broadcast %1112 : vector<1x1xf32> to vector<8x1xf32>
    %1114 = arith.select %1108, %1113, %1111 : vector<8x1xi1>, vector<8x1xf32>
    %1115 = vector.broadcast %1114 : vector<8x1xf32> to vector<8x8xf32>
    %1116 = vector.broadcast %1106 : vector<1x8xf32> to vector<8x8xf32>
    %1117 = arith.mulf %1115, %1116 : vector<8x8xf32>
    %1118 = arith.subf %1096, %1117 : vector<8x8xf32>
    %cst_161 = arith.constant dense<0.000000e+00> : vector<16x8xf32>
    %1119 = tpu.matmul %956, %1118, %cst_161 {dimension_numbers = #tpu.dot_dimension_numbers<[1], [0], [0], [1], [0, 0, 1, 1], [], []>} : vector<16x8xf32>, vector<8x8xf32>, vector<16x8xf32> -> vector<16x8xf32>
    %cst_162 = arith.constant dense<0.000000e+00> : vector<16x32xf32>
    %1120 = tpu.matmul %1119, %923, %cst_162 {dimension_numbers = #tpu.dot_dimension_numbers<[1], [0], [0], [1], [0, 0, 1, 1], [], []>} : vector<16x8xf32>, vector<8x32xf32>, vector<16x32xf32> -> vector<16x32xf32>
    %1121 = arith.mulf %1120, %0 : vector<16x32xf32>
    %cst_163 = arith.constant dense<0.000000e+00> : vector<16xf32>
    %1122 = vector.multi_reduction <add>, %1121, %cst_163 [1] : vector<16x32xf32> to vector<16xf32>
    %1123 = vector.shape_cast %1122 : vector<16xf32> to vector<16x1xf32>
    %1124 = arith.subf %11, %1123 : vector<16x1xf32>
    %cst_164 = arith.constant 3.125000e-02 : f32
    %1125 = vector.broadcast %cst_164 : f32 to vector<16x1xf32>
    %1126 = arith.mulf %1124, %1125 : vector<16x1xf32>
    %1127 = tpu.reciprocal %1126 {approx = true} : vector<16x1xf32> -> vector<16x1xf32>
    %1128 = arith.mulf %1126, %1127 : vector<16x1xf32>
    %cst_165 = arith.constant 2.000000e+00 : f32
    %1129 = vector.broadcast %cst_165 : f32 to vector<16x1xf32>
    %1130 = arith.subf %1129, %1128 : vector<16x1xf32>
    %1131 = arith.mulf %1127, %1130 : vector<16x1xf32>
    %1132 = vector.broadcast %1131 : vector<16x1xf32> to vector<16x32xf32>
    %1133 = arith.mulf %0, %1132 : vector<16x32xf32>
    %1134 = vector.broadcast %1131 : vector<16x1xf32> to vector<16x8xf32>
    %1135 = arith.mulf %1119, %1134 : vector<16x8xf32>
    %cst_166 = arith.constant dense<0.000000e+00> : vector<8x32xf32>
    %1136 = tpu.matmul %1119, %1133, %cst_166 {dimension_numbers = #tpu.dot_dimension_numbers<[0], [0], [1], [1], [0, 1, 1, 1], [], []>} : vector<16x8xf32>, vector<16x32xf32>, vector<8x32xf32> -> vector<8x32xf32>
    %cst_167 = arith.constant dense<0.000000e+00> : vector<8x8xf32>
    %1137 = tpu.matmul %1119, %1135, %cst_167 {dimension_numbers = #tpu.dot_dimension_numbers<[0], [0], [1], [1], [0, 1, 1, 1], [], []>} : vector<16x8xf32>, vector<16x8xf32>, vector<8x8xf32> -> vector<8x8xf32>
    %1138 = arith.addf %7, %1137 : vector<8x8xf32>
    %1139 = vector.extract_strided_slice %1138 {offsets = [0, 0], sizes = [1, 8], strides = [1, 1]} : vector<8x8xf32> to vector<1x8xf32>
    %1140 = vector.extract_strided_slice %7 {offsets = [0, 0], sizes = [1, 8], strides = [1, 1]} : vector<8x8xf32> to vector<1x8xf32>
    %1141 = vector.extract_strided_slice %1139 {offsets = [0, 0], sizes = [1, 1], strides = [1, 1]} : vector<1x8xf32> to vector<1x1xf32>
    %1142 = tpu.reciprocal %1141 {approx = true} : vector<1x1xf32> -> vector<1x1xf32>
    %1143 = arith.mulf %1141, %1142 : vector<1x1xf32>
    %cst_168 = arith.constant 2.000000e+00 : f32
    %1144 = vector.broadcast %cst_168 : f32 to vector<1x1xf32>
    %1145 = arith.subf %1144, %1143 : vector<1x1xf32>
    %1146 = arith.mulf %1142, %1145 : vector<1x1xf32>
    %1147 = vector.broadcast %1146 : vector<1x1xf32> to vector<1x8xf32>
    %1148 = arith.mulf %1139, %1147 : vector<1x8xf32>
    %1149 = vector.broadcast %1146 : vector<1x1xf32> to vector<1x8xf32>
    %1150 = arith.mulf %1140, %1149 : vector<1x8xf32>
    %c0_i32_169 = arith.constant 0 : i32
    %1151 = vector.broadcast %c0_i32_169 : i32 to vector<8x1xi32>
    %1152 = arith.cmpi eq, %8, %1151 : vector<8x1xi32>
    %cst_170 = arith.constant 1.000000e+00 : f32
    %1153 = vector.broadcast %cst_170 : f32 to vector<1x1xf32>
    %1154 = arith.subf %1141, %1153 : vector<1x1xf32>
    %1155 = vector.extract_strided_slice %1138 {offsets = [0, 0], sizes = [8, 1], strides = [1, 1]} : vector<8x8xf32> to vector<8x1xf32>
    %1156 = vector.shape_cast %1154 : vector<1x1xf32> to vector<1x1xf32>
    %1157 = vector.broadcast %1156 : vector<1x1xf32> to vector<8x1xf32>
    %1158 = arith.select %1152, %1157, %1155 : vector<8x1xi1>, vector<8x1xf32>
    %1159 = vector.broadcast %1158 : vector<8x1xf32> to vector<8x8xf32>
    %1160 = vector.broadcast %1148 : vector<1x8xf32> to vector<8x8xf32>
    %1161 = arith.mulf %1159, %1160 : vector<8x8xf32>
    %1162 = arith.subf %1138, %1161 : vector<8x8xf32>
    %1163 = vector.broadcast %1158 : vector<8x1xf32> to vector<8x8xf32>
    %1164 = vector.broadcast %1150 : vector<1x8xf32> to vector<8x8xf32>
    %1165 = arith.mulf %1163, %1164 : vector<8x8xf32>
    %1166 = arith.subf %7, %1165 : vector<8x8xf32>
    %1167 = vector.extract_strided_slice %1162 {offsets = [1, 0], sizes = [1, 8], strides = [1, 1]} : vector<8x8xf32> to vector<1x8xf32>
    %1168 = vector.extract_strided_slice %1166 {offsets = [1, 0], sizes = [1, 8], strides = [1, 1]} : vector<8x8xf32> to vector<1x8xf32>
    %1169 = vector.extract_strided_slice %1167 {offsets = [0, 1], sizes = [1, 1], strides = [1, 1]} : vector<1x8xf32> to vector<1x1xf32>
    %1170 = tpu.reciprocal %1169 {approx = true} : vector<1x1xf32> -> vector<1x1xf32>
    %1171 = arith.mulf %1169, %1170 : vector<1x1xf32>
    %cst_171 = arith.constant 2.000000e+00 : f32
    %1172 = vector.broadcast %cst_171 : f32 to vector<1x1xf32>
    %1173 = arith.subf %1172, %1171 : vector<1x1xf32>
    %1174 = arith.mulf %1170, %1173 : vector<1x1xf32>
    %1175 = vector.broadcast %1174 : vector<1x1xf32> to vector<1x8xf32>
    %1176 = arith.mulf %1167, %1175 : vector<1x8xf32>
    %1177 = vector.broadcast %1174 : vector<1x1xf32> to vector<1x8xf32>
    %1178 = arith.mulf %1168, %1177 : vector<1x8xf32>
    %c1_i32_172 = arith.constant 1 : i32
    %1179 = vector.broadcast %c1_i32_172 : i32 to vector<8x1xi32>
    %1180 = arith.cmpi eq, %8, %1179 : vector<8x1xi32>
    %cst_173 = arith.constant 1.000000e+00 : f32
    %1181 = vector.broadcast %cst_173 : f32 to vector<1x1xf32>
    %1182 = arith.subf %1169, %1181 : vector<1x1xf32>
    %1183 = vector.extract_strided_slice %1162 {offsets = [0, 1], sizes = [8, 1], strides = [1, 1]} : vector<8x8xf32> to vector<8x1xf32>
    %1184 = vector.shape_cast %1182 : vector<1x1xf32> to vector<1x1xf32>
    %1185 = vector.broadcast %1184 : vector<1x1xf32> to vector<8x1xf32>
    %1186 = arith.select %1180, %1185, %1183 : vector<8x1xi1>, vector<8x1xf32>
    %1187 = vector.broadcast %1186 : vector<8x1xf32> to vector<8x8xf32>
    %1188 = vector.broadcast %1176 : vector<1x8xf32> to vector<8x8xf32>
    %1189 = arith.mulf %1187, %1188 : vector<8x8xf32>
    %1190 = arith.subf %1162, %1189 : vector<8x8xf32>
    %1191 = vector.broadcast %1186 : vector<8x1xf32> to vector<8x8xf32>
    %1192 = vector.broadcast %1178 : vector<1x8xf32> to vector<8x8xf32>
    %1193 = arith.mulf %1191, %1192 : vector<8x8xf32>
    %1194 = arith.subf %1166, %1193 : vector<8x8xf32>
    %1195 = vector.extract_strided_slice %1190 {offsets = [2, 0], sizes = [1, 8], strides = [1, 1]} : vector<8x8xf32> to vector<1x8xf32>
    %1196 = vector.extract_strided_slice %1194 {offsets = [2, 0], sizes = [1, 8], strides = [1, 1]} : vector<8x8xf32> to vector<1x8xf32>
    %1197 = vector.extract_strided_slice %1195 {offsets = [0, 2], sizes = [1, 1], strides = [1, 1]} : vector<1x8xf32> to vector<1x1xf32>
    %1198 = tpu.reciprocal %1197 {approx = true} : vector<1x1xf32> -> vector<1x1xf32>
    %1199 = arith.mulf %1197, %1198 : vector<1x1xf32>
    %cst_174 = arith.constant 2.000000e+00 : f32
    %1200 = vector.broadcast %cst_174 : f32 to vector<1x1xf32>
    %1201 = arith.subf %1200, %1199 : vector<1x1xf32>
    %1202 = arith.mulf %1198, %1201 : vector<1x1xf32>
    %1203 = vector.broadcast %1202 : vector<1x1xf32> to vector<1x8xf32>
    %1204 = arith.mulf %1195, %1203 : vector<1x8xf32>
    %1205 = vector.broadcast %1202 : vector<1x1xf32> to vector<1x8xf32>
    %1206 = arith.mulf %1196, %1205 : vector<1x8xf32>
    %c2_i32_175 = arith.constant 2 : i32
    %1207 = vector.broadcast %c2_i32_175 : i32 to vector<8x1xi32>
    %1208 = arith.cmpi eq, %8, %1207 : vector<8x1xi32>
    %cst_176 = arith.constant 1.000000e+00 : f32
    %1209 = vector.broadcast %cst_176 : f32 to vector<1x1xf32>
    %1210 = arith.subf %1197, %1209 : vector<1x1xf32>
    %1211 = vector.extract_strided_slice %1190 {offsets = [0, 2], sizes = [8, 1], strides = [1, 1]} : vector<8x8xf32> to vector<8x1xf32>
    %1212 = vector.shape_cast %1210 : vector<1x1xf32> to vector<1x1xf32>
    %1213 = vector.broadcast %1212 : vector<1x1xf32> to vector<8x1xf32>
    %1214 = arith.select %1208, %1213, %1211 : vector<8x1xi1>, vector<8x1xf32>
    %1215 = vector.broadcast %1214 : vector<8x1xf32> to vector<8x8xf32>
    %1216 = vector.broadcast %1204 : vector<1x8xf32> to vector<8x8xf32>
    %1217 = arith.mulf %1215, %1216 : vector<8x8xf32>
    %1218 = arith.subf %1190, %1217 : vector<8x8xf32>
    %1219 = vector.broadcast %1214 : vector<8x1xf32> to vector<8x8xf32>
    %1220 = vector.broadcast %1206 : vector<1x8xf32> to vector<8x8xf32>
    %1221 = arith.mulf %1219, %1220 : vector<8x8xf32>
    %1222 = arith.subf %1194, %1221 : vector<8x8xf32>
    %1223 = vector.extract_strided_slice %1218 {offsets = [3, 0], sizes = [1, 8], strides = [1, 1]} : vector<8x8xf32> to vector<1x8xf32>
    %1224 = vector.extract_strided_slice %1222 {offsets = [3, 0], sizes = [1, 8], strides = [1, 1]} : vector<8x8xf32> to vector<1x8xf32>
    %1225 = vector.extract_strided_slice %1223 {offsets = [0, 3], sizes = [1, 1], strides = [1, 1]} : vector<1x8xf32> to vector<1x1xf32>
    %1226 = tpu.reciprocal %1225 {approx = true} : vector<1x1xf32> -> vector<1x1xf32>
    %1227 = arith.mulf %1225, %1226 : vector<1x1xf32>
    %cst_177 = arith.constant 2.000000e+00 : f32
    %1228 = vector.broadcast %cst_177 : f32 to vector<1x1xf32>
    %1229 = arith.subf %1228, %1227 : vector<1x1xf32>
    %1230 = arith.mulf %1226, %1229 : vector<1x1xf32>
    %1231 = vector.broadcast %1230 : vector<1x1xf32> to vector<1x8xf32>
    %1232 = arith.mulf %1223, %1231 : vector<1x8xf32>
    %1233 = vector.broadcast %1230 : vector<1x1xf32> to vector<1x8xf32>
    %1234 = arith.mulf %1224, %1233 : vector<1x8xf32>
    %c3_i32_178 = arith.constant 3 : i32
    %1235 = vector.broadcast %c3_i32_178 : i32 to vector<8x1xi32>
    %1236 = arith.cmpi eq, %8, %1235 : vector<8x1xi32>
    %cst_179 = arith.constant 1.000000e+00 : f32
    %1237 = vector.broadcast %cst_179 : f32 to vector<1x1xf32>
    %1238 = arith.subf %1225, %1237 : vector<1x1xf32>
    %1239 = vector.extract_strided_slice %1218 {offsets = [0, 3], sizes = [8, 1], strides = [1, 1]} : vector<8x8xf32> to vector<8x1xf32>
    %1240 = vector.shape_cast %1238 : vector<1x1xf32> to vector<1x1xf32>
    %1241 = vector.broadcast %1240 : vector<1x1xf32> to vector<8x1xf32>
    %1242 = arith.select %1236, %1241, %1239 : vector<8x1xi1>, vector<8x1xf32>
    %1243 = vector.broadcast %1242 : vector<8x1xf32> to vector<8x8xf32>
    %1244 = vector.broadcast %1232 : vector<1x8xf32> to vector<8x8xf32>
    %1245 = arith.mulf %1243, %1244 : vector<8x8xf32>
    %1246 = arith.subf %1218, %1245 : vector<8x8xf32>
    %1247 = vector.broadcast %1242 : vector<8x1xf32> to vector<8x8xf32>
    %1248 = vector.broadcast %1234 : vector<1x8xf32> to vector<8x8xf32>
    %1249 = arith.mulf %1247, %1248 : vector<8x8xf32>
    %1250 = arith.subf %1222, %1249 : vector<8x8xf32>
    %1251 = vector.extract_strided_slice %1246 {offsets = [4, 0], sizes = [1, 8], strides = [1, 1]} : vector<8x8xf32> to vector<1x8xf32>
    %1252 = vector.extract_strided_slice %1250 {offsets = [4, 0], sizes = [1, 8], strides = [1, 1]} : vector<8x8xf32> to vector<1x8xf32>
    %1253 = vector.extract_strided_slice %1251 {offsets = [0, 4], sizes = [1, 1], strides = [1, 1]} : vector<1x8xf32> to vector<1x1xf32>
    %1254 = tpu.reciprocal %1253 {approx = true} : vector<1x1xf32> -> vector<1x1xf32>
    %1255 = arith.mulf %1253, %1254 : vector<1x1xf32>
    %cst_180 = arith.constant 2.000000e+00 : f32
    %1256 = vector.broadcast %cst_180 : f32 to vector<1x1xf32>
    %1257 = arith.subf %1256, %1255 : vector<1x1xf32>
    %1258 = arith.mulf %1254, %1257 : vector<1x1xf32>
    %1259 = vector.broadcast %1258 : vector<1x1xf32> to vector<1x8xf32>
    %1260 = arith.mulf %1251, %1259 : vector<1x8xf32>
    %1261 = vector.broadcast %1258 : vector<1x1xf32> to vector<1x8xf32>
    %1262 = arith.mulf %1252, %1261 : vector<1x8xf32>
    %c4_i32_181 = arith.constant 4 : i32
    %1263 = vector.broadcast %c4_i32_181 : i32 to vector<8x1xi32>
    %1264 = arith.cmpi eq, %8, %1263 : vector<8x1xi32>
    %cst_182 = arith.constant 1.000000e+00 : f32
    %1265 = vector.broadcast %cst_182 : f32 to vector<1x1xf32>
    %1266 = arith.subf %1253, %1265 : vector<1x1xf32>
    %1267 = vector.extract_strided_slice %1246 {offsets = [0, 4], sizes = [8, 1], strides = [1, 1]} : vector<8x8xf32> to vector<8x1xf32>
    %1268 = vector.shape_cast %1266 : vector<1x1xf32> to vector<1x1xf32>
    %1269 = vector.broadcast %1268 : vector<1x1xf32> to vector<8x1xf32>
    %1270 = arith.select %1264, %1269, %1267 : vector<8x1xi1>, vector<8x1xf32>
    %1271 = vector.broadcast %1270 : vector<8x1xf32> to vector<8x8xf32>
    %1272 = vector.broadcast %1260 : vector<1x8xf32> to vector<8x8xf32>
    %1273 = arith.mulf %1271, %1272 : vector<8x8xf32>
    %1274 = arith.subf %1246, %1273 : vector<8x8xf32>
    %1275 = vector.broadcast %1270 : vector<8x1xf32> to vector<8x8xf32>
    %1276 = vector.broadcast %1262 : vector<1x8xf32> to vector<8x8xf32>
    %1277 = arith.mulf %1275, %1276 : vector<8x8xf32>
    %1278 = arith.subf %1250, %1277 : vector<8x8xf32>
    %1279 = vector.extract_strided_slice %1274 {offsets = [5, 0], sizes = [1, 8], strides = [1, 1]} : vector<8x8xf32> to vector<1x8xf32>
    %1280 = vector.extract_strided_slice %1278 {offsets = [5, 0], sizes = [1, 8], strides = [1, 1]} : vector<8x8xf32> to vector<1x8xf32>
    %1281 = vector.extract_strided_slice %1279 {offsets = [0, 5], sizes = [1, 1], strides = [1, 1]} : vector<1x8xf32> to vector<1x1xf32>
    %1282 = tpu.reciprocal %1281 {approx = true} : vector<1x1xf32> -> vector<1x1xf32>
    %1283 = arith.mulf %1281, %1282 : vector<1x1xf32>
    %cst_183 = arith.constant 2.000000e+00 : f32
    %1284 = vector.broadcast %cst_183 : f32 to vector<1x1xf32>
    %1285 = arith.subf %1284, %1283 : vector<1x1xf32>
    %1286 = arith.mulf %1282, %1285 : vector<1x1xf32>
    %1287 = vector.broadcast %1286 : vector<1x1xf32> to vector<1x8xf32>
    %1288 = arith.mulf %1280, %1287 : vector<1x8xf32>
    %c5_i32_184 = arith.constant 5 : i32
    %1289 = vector.broadcast %c5_i32_184 : i32 to vector<8x1xi32>
    %1290 = arith.cmpi eq, %8, %1289 : vector<8x1xi32>
    %cst_185 = arith.constant 1.000000e+00 : f32
    %1291 = vector.broadcast %cst_185 : f32 to vector<1x1xf32>
    %1292 = arith.subf %1281, %1291 : vector<1x1xf32>
    %1293 = vector.extract_strided_slice %1274 {offsets = [0, 5], sizes = [8, 1], strides = [1, 1]} : vector<8x8xf32> to vector<8x1xf32>
    %1294 = vector.shape_cast %1292 : vector<1x1xf32> to vector<1x1xf32>
    %1295 = vector.broadcast %1294 : vector<1x1xf32> to vector<8x1xf32>
    %1296 = arith.select %1290, %1295, %1293 : vector<8x1xi1>, vector<8x1xf32>
    %1297 = vector.broadcast %1296 : vector<8x1xf32> to vector<8x8xf32>
    %1298 = vector.broadcast %1288 : vector<1x8xf32> to vector<8x8xf32>
    %1299 = arith.mulf %1297, %1298 : vector<8x8xf32>
    %1300 = arith.subf %1278, %1299 : vector<8x8xf32>
    %cst_186 = arith.constant dense<0.000000e+00> : vector<8x8xf32>
    %1301 = tpu.matmul %1137, %1300, %cst_186 {dimension_numbers = #tpu.dot_dimension_numbers<[1], [0], [0], [1], [0, 0, 1, 1], [], []>} : vector<8x8xf32>, vector<8x8xf32>, vector<8x8xf32> -> vector<8x8xf32>
    %cst_187 = arith.constant dense<0.000000e+00> : vector<8x32xf32>
    %1302 = tpu.matmul %1301, %1136, %cst_187 {dimension_numbers = #tpu.dot_dimension_numbers<[1], [0], [0], [1], [0, 0, 1, 1], [], []>} : vector<8x8xf32>, vector<8x32xf32>, vector<8x32xf32> -> vector<8x32xf32>
    %1303 = arith.subf %1136, %1302 : vector<8x32xf32>
    %cst_188 = arith.constant dense<0.000000e+00> : vector<8x8xf32>
    %1304 = tpu.matmul %1301, %1137, %cst_188 {dimension_numbers = #tpu.dot_dimension_numbers<[1], [0], [0], [1], [0, 0, 1, 1], [], []>} : vector<8x8xf32>, vector<8x8xf32>, vector<8x8xf32> -> vector<8x8xf32>
    %1305 = arith.subf %1137, %1304 : vector<8x8xf32>
    %1306 = arith.subf %7, %1305 : vector<8x8xf32>
    %cst_189 = arith.constant 3.200000e+01 : f32
    %1307 = vector.broadcast %cst_189 : f32 to vector<8x8xf32>
    %1308 = arith.mulf %1307, %1306 : vector<8x8xf32>
    %cst_190 = arith.constant dense<0.000000e+00> : vector<8x8xf32>
    %1309 = tpu.matmul %1303, %1303, %cst_190 {dimension_numbers = #tpu.dot_dimension_numbers<[1], [1], [0], [0], [0, 0, 1, 0], [], []>} : vector<8x32xf32>, vector<8x32xf32>, vector<8x8xf32> -> vector<8x8xf32>
    %1310 = arith.addf %1308, %1309 : vector<8x8xf32>
    %cst_191 = arith.constant dense<0.000000e+00> : vector<16x32xf32>
    %1311 = tpu.matmul %1119, %1303, %cst_191 {dimension_numbers = #tpu.dot_dimension_numbers<[1], [0], [0], [1], [0, 0, 1, 1], [], []>} : vector<16x8xf32>, vector<8x32xf32>, vector<16x32xf32> -> vector<16x32xf32>
    %cst_192 = arith.constant 5.000000e-01 : f32
    %1312 = vector.broadcast %cst_192 : f32 to vector<16x32xf32>
    %1313 = arith.mulf %1312, %0 : vector<16x32xf32>
    %1314 = arith.subf %1313, %1311 : vector<16x32xf32>
    %1315 = arith.mulf %1133, %1314 : vector<16x32xf32>
    %1316 = vector.shape_cast %1315 : vector<16x32xf32> to vector<1x16x32xf32>
    %cst_193 = arith.constant dense<0.000000e+00> : vector<1xf32>
    %1317 = vector.multi_reduction <add>, %1316, %cst_193 [1, 2] : vector<1x16x32xf32> to vector<1xf32>
    %1318 = vector.shape_cast %1317 : vector<1xf32> to vector<1x1x1xf32>
    %1319 = vector.extract %1318[0, 0, 0] : f32 from vector<1x1x1xf32>
    %1320 = arith.mulf %1137, %1310 : vector<8x8xf32>
    %1321 = vector.shape_cast %1320 : vector<8x8xf32> to vector<1x8x8xf32>
    %cst_194 = arith.constant dense<0.000000e+00> : vector<1xf32>
    %1322 = vector.multi_reduction <add>, %1321, %cst_194 [1, 2] : vector<1x8x8xf32> to vector<1xf32>
    %1323 = vector.shape_cast %1322 : vector<1xf32> to vector<1x1x1xf32>
    %1324 = vector.extract %1323[0, 0, 0] : f32 from vector<1x1x1xf32>
    %cst_195 = arith.constant 5.000000e-01 : f32
    %1325 = arith.mulf %cst_195, %1324 : f32
    %1326 = arith.addf %1319, %1325 : f32
    %1327 = math.log %1126 : vector<16x1xf32>
    %1328 = vector.shape_cast %1327 : vector<16x1xf32> to vector<1x16x1xf32>
    %cst_196 = arith.constant dense<0.000000e+00> : vector<1xf32>
    %1329 = vector.multi_reduction <add>, %1328, %cst_196 [1, 2] : vector<1x16x1xf32> to vector<1xf32>
    %1330 = vector.shape_cast %1329 : vector<1xf32> to vector<1x1x1xf32>
    %1331 = vector.extract %1330[0, 0, 0] : f32 from vector<1x1x1xf32>
    %cst_197 = arith.constant -1.600000e+01 : f32
    %1332 = arith.mulf %cst_197, %1331 : f32
    %1333 = arith.subf %1332, %1326 : f32
    %cst_198 = arith.constant 0.000000e+00 : f32
    %1334 = arith.subf %cst_198, %1333 : f32
    %c0_199 = arith.constant 0 : index
    %c2 = arith.constant 2 : index
    %1335 = memref.load %arg5[%c0_199, %c2] : memref<1x3xf32, #tpu.memory_space<smem>>
    memref.store %1334, %arg5[%c0_199, %c2] : memref<1x3xf32, #tpu.memory_space<smem>>
    %c0_200 = arith.constant 0 : index
    %c0_201 = arith.constant 0 : index
    %1336 = vector.load %arg3[%c0_200, %c0_201] : memref<16x8xf32, #tpu.memory_space<vmem>>, vector<16x8xf32>
    tpu.vector_store %arg3[%c0_200, %c0_201], %1119 {strides = array<i32>} : memref<16x8xf32, #tpu.memory_space<vmem>>, vector<16x8xf32>,
    %c0_202 = arith.constant 0 : index
    %c0_203 = arith.constant 0 : index
    %1337 = vector.load %arg4[%c0_202, %c0_203] : memref<16x1xf32, #tpu.memory_space<vmem>>, vector<16x1xf32>
    tpu.vector_store %arg4[%c0_202, %c0_203], %1126 {strides = array<i32>} : memref<16x1xf32, #tpu.memory_space<vmem>>, vector<16x1xf32>,
    return
  }
}

</mosaic_0001>

<llo_original>
// kernel: pcca_forward.1
$region0: #{pcca_forward.1}
  #allocation0 [shape = 'u32[]', space=smem, size = 0x4, offset = 0x4, fixed_abs, tag = 'smem constant byte address 0x4 - core index']
  #allocation1 [shape = 'u32[72,128]{1,0:T(1,128)}', space=vmem, size = 0x9000, scoped, tag = 'internal scratch']
  %s0 = inlined_call_operand.vmem [shape: f32[16,32], index: 0, kind: input, shape index: {}]
  %s1 = inlined_call_operand.vmem [shape: f32[16,8], index: 1, kind: input, shape index: {}]
  %s2 = inlined_call_operand.vmem [shape: f32[16,1], index: 2, kind: input, shape index: {}]
  %s3 = inlined_call_operand.vmem [shape: f32[16,8], index: 3, kind: output, shape index: {0}]
  %s4 = inlined_call_operand.vmem [shape: f32[16,1], index: 4, kind: output, shape index: {1}]
  %s5 = inlined_call_operand.hbm [shape: f32[1,3], index: 5, kind: output, shape index: {2}]
  %6 = xla_tuple %s3, %s4, %s5
  %s7 = sld [smem:[#allocation0]]
  $region38: #{pcca_forward.1} parent=0
    _
  %s9 = ssub.s32 1, %s7
  %s10 = scalar_select 0, %s9, %s7
  $region1: #{pcca_forward.1} parent=0
    #allocation2 [shape = 'u8[512]{0}', space=smem, size = 0x200, scoped, tag = 'output window, operand 2, single buffered']
    #allocation3 [shape = 's32[1]{0}', space=sflag, size = 0x4, scoped, tag = 'scoped memory for pcca_forward.1']
    %11 = vsyncpa [#allocation3], 0
    // Predicated region
    $region2: #{pcca_forward.1} parent=1 // pred_check
      _
    $region3: #{pcca_forward.1} parent=1 // pred_check_branch
      %13 = sbr.rel (0) target = $region5
    $region4: #{pcca_forward.1} parent=1 // pred_region
      _
    $region5: #{pcca_forward.1} parent=1 // pred_fallthru
      _
    // Predicated region
    $region6: #{pcca_forward.1} parent=1 // pred_check
      _
    $region7: #{pcca_forward.1} parent=1 // pred_check_branch
      %15 = sbr.rel (0) target = $region9
    $region8: #{pcca_forward.1} parent=1 // pred_region
      _
    $region9: #{pcca_forward.1} parent=1 // pred_fallthru
      _
    // Predicated region
    $region10: #{pcca_forward.1} parent=1 // pred_check
      _
    $region11: #{pcca_forward.1} parent=1 // pred_check_branch
      %17 = sbr.rel (0) target = $region13
    $region12: #{pcca_forward.1} parent=1 // pred_region
      _
    $region13: #{pcca_forward.1} parent=1 // pred_fallthru
      _
    %v18 = vld [vmem:[%s0] sm:$0xff]
    %v19 = vld [vmem:[%s0 + $0x8] sm:$0xff]
    %v20 = vld [vmem:[%s1] sm:$0xff]
    %v21 = vld [vmem:[%s1 + $0x8] sm:$0xff]
    %v22 = vld [vmem:[%s2] sm:$0xff]
    %v23 = vld [vmem:[%s2 + $0x8] sm:$0xff]
    %v24 = vlaneseq
    %v25 = vshrl.u32 %v24, 7
    %v26 = vlaneseq
    %v27 = vand.u32 %v26, 127
    %vm28 = vcmp.eq.s32.totalorder %v25, %v27
    %v29 = vsel %vm28, 1, 0
    %v30 = vcvt.s32.f32 %v29
    %v31 = vmul.f32 %v18, %v18
    %v32 = vmul.f32 %v19, %v19
    %vm33 = vcmask 261120
    %v34 = vsel %vm33, %v31, 0.0
    %35 = vadd.xlane.f32.xlu0 %v34
    %v36 = vpop.xlane.xlu0 %35
    %v37 = vsel %vm33, %v32, 0.0
    %38 = vadd.xlane.f32.xlu0 %v37
    %v39 = vpop.xlane.xlu0 %38
    %v40 = vrcp.pop %v22
    %v41 = vrcp.pop %v23
    %v42 = vmul.f32 %v22, %v40
    %v43 = vmul.f32 %v23, %v41
    %v44 = vsub.f32 2.0, %v42
    %v45 = vsub.f32 2.0, %v43
    %v46 = vmul.f32 %v40, %v44
    %v47 = vmul.f32 %v41, %v45
    %49 = vset.pattern.permute.xlu0 0
    %50 = vperm.xlu0 %49, %v46
    %v51 = vpop.permute.xlu0 %50
    %54 = vset.pattern.permute.xlu0 0
    %55 = vperm.xlu0 %54, %v47
    %v56 = vpop.permute.xlu0 %55
    %v58 = vmul.f32 %v18, %v51
    %v59 = vmul.f32 %v19, %v56
    %v60 = vmul.f32 %v20, %v51
    %v61 = vmul.f32 %v21, %v56
    %62 = vxpose.xlu0.b32.start [1/16] %v20, 128
    %63 = vxpose.xlu0.b32.cont [2/16] %v21, 128
    %64 = vxpose.xlu0.b32.cont [3/16] 0.0, 128
    %65 = vxpose.xlu0.b32.cont [4/16] 0.0, 128
    %66 = vxpose.xlu0.b32.cont [5/16] 0.0, 128
    %67 = vxpose.xlu0.b32.cont [6/16] 0.0, 128
    %68 = vxpose.xlu0.b32.cont [7/16] 0.0, 128
    %69 = vxpose.xlu0.b32.cont [8/16] 0.0, 128
    %70 = vxpose.xlu0.b32.cont [9/16] 0.0, 128
    %71 = vxpose.xlu0.b32.cont [10/16] 0.0, 128
    %72 = vxpose.xlu0.b32.cont [11/16] 0.0, 128
    %73 = vxpose.xlu0.b32.cont [12/16] 0.0, 128
    %74 = vxpose.xlu0.b32.cont [13/16] 0.0, 128
    %75 = vxpose.xlu0.b32.cont [14/16] 0.0, 128
    %76 = vxpose.xlu0.b32.cont [15/16] 0.0, 128
    %77 = vxpose.xlu0.b32.end [16/16] 0.0, 128
    %v78 = vpop.trf.xlu0
    %v79 = vpop.trf.xlu0
    %v80 = vpop.trf.xlu0
    %v81 = vpop.trf.xlu0
    %v82 = vpop.trf.xlu0
    %v83 = vpop.trf.xlu0
    %v84 = vpop.trf.xlu0
    %v85 = vpop.trf.xlu0
    %v86 = vpop.trf.xlu0
    %v87 = vpop.trf.xlu0
    %v88 = vpop.trf.xlu0
    %v89 = vpop.trf.xlu0
    %v90 = vpop.trf.xlu0
    %v91 = vpop.trf.xlu0
    %v92 = vpop.trf.xlu0
    %v93 = vpop.trf.xlu0
    %vm94 = vcmask 130048
    %v96 = vsel %vm94, %v78, 0
    %98 = vmatpush.msra.mxu0 0.0
    %99 = vmatpush.msra.mxu0 0.0
    %100 = vmatpush.msra.mxu0 0.0
    %101 = vmatpush.msra.mxu0 0.0
    %102 = vmatpush.msra.mxu0 0.0
    %103 = vmatpush.msra.mxu0 0.0
    %104 = vmatpush.msra.mxu0 0.0
    %105 = vmatpush.msra.mxu0 0.0
    %106 = vmatpush.msra.mxu0 0.0
    %107 = vmatpush.msra.mxu0 0.0
    %108 = vmatpush.msra.mxu0 0.0
    %109 = vmatpush.msra.mxu0 0.0
    %110 = vmatpush.msra.mxu0 0.0
    %111 = vmatpush.msra.mxu0 0.0
    %112 = vmatpush.msra.mxu0 %v59
    %113 = vmatpush.msra.mxu0 %v58
    %114 = vmatmul.f32.gmra.mxu0 %v96
    %v115 = vpop.f32.mrf.mxu0
    %v116 = vadd.f32 0.0, %v115
    %117 = vdwg.mxu0
    %118 = vmatpush.msra.mxu0 0.0
    %119 = vmatpush.msra.mxu0 0.0
    %120 = vmatpush.msra.mxu0 0.0
    %121 = vmatpush.msra.mxu0 0.0
    %122 = vmatpush.msra.mxu0 0.0
    %123 = vmatpush.msra.mxu0 0.0
    %124 = vmatpush.msra.mxu0 0.0
    %125 = vmatpush.msra.mxu0 0.0
    %126 = vmatpush.msra.mxu0 0.0
    %127 = vmatpush.msra.mxu0 0.0
    %128 = vmatpush.msra.mxu0 0.0
    %129 = vmatpush.msra.mxu0 0.0
    %130 = vmatpush.msra.mxu0 0.0
    %131 = vmatpush.msra.mxu0 0.0
    %132 = vmatpush.msra.mxu0 %v61
    %133 = vmatpush.msra.mxu0 %v60
    %134 = vmatmul.f32.gmra.mxu0 %v96
    %v135 = vpop.f32.mrf.mxu0
    %v136 = vadd.f32 0.0, %v135
    %137 = vdwg.mxu0
    %v138 = vadd.f32 %v30, %v136
    %v139 = vrcp.pop %v138
    %v140 = vmul.f32 %v138, %v139
    %v141 = vsub.f32 2.0, %v140
    %v142 = vmul.f32 %v139, %v141
    %144 = vset.pattern.permute.xlu0 0
    %145 = vperm.xlu0 %144, %v142
    %v146 = vpop.permute.xlu0 %145
    %v148 = vmul.f32 %v138, %v146
    %v149 = vmul.f32 %v30, %v146
    %vm150 = vcmp.eq.s32.totalorder %v25, 0
    %v151 = vsub.f32 %v138, 1.0
    %v152 = vperm.slane %v151, 0
    %v153 = vsel %vm150, %v152, %v138
    %155 = vset.pattern.permute.xlu0 0
    %156 = vperm.xlu0 %155, %v153
    %v157 = vpop.permute.xlu0 %156
    %v159 = vperm.slane %v148, 0
    %v160 = vmul.f32 %v157, %v159
    %v161 = vsub.f32 %v138, %v160
    %v162 = vperm.slane %v149, 0
    %v163 = vmul.f32 %v157, %v162
    %v164 = vsub.f32 %v30, %v163
    %v165 = vrcp.pop %v161
    %v166 = vmul.f32 %v161, %v165
    %v167 = vsub.f32 2.0, %v166
    %v168 = vmul.f32 %v165, %v167
    %170 = vset.pattern.permute.xlu0 1
    %171 = vperm.xlu0 %170, %v168
    %v172 = vpop.permute.xlu0 %171
    %v174 = vmul.f32 %v161, %v172
    %v175 = vmul.f32 %v164, %v172
    %vm176 = vcmp.eq.s32.totalorder %v25, 1
    %v177 = vsub.f32 %v161, 1.0
    %v178 = vperm.slane %v177, 1
    %v179 = vsel %vm176, %v178, %v161
    %181 = vset.pattern.permute.xlu0 1
    %182 = vperm.xlu0 %181, %v179
    %v183 = vpop.permute.xlu0 %182
    %v185 = vperm.slane %v174, 1
    %v186 = vmul.f32 %v183, %v185
    %v187 = vsub.f32 %v161, %v186
    %v188 = vperm.slane %v175, 1
    %v189 = vmul.f32 %v183, %v188
    %v190 = vsub.f32 %v164, %v189
    %v191 = vrcp.pop %v187
    %v192 = vmul.f32 %v187, %v191
    %v193 = vsub.f32 2.0, %v192
    %v194 = vmul.f32 %v191, %v193
    %196 = vset.pattern.permute.xlu0 2
    %197 = vperm.xlu0 %196, %v194
    %v198 = vpop.permute.xlu0 %197
    %v200 = vmul.f32 %v187, %v198
    %v201 = vmul.f32 %v190, %v198
    %vm202 = vcmp.eq.s32.totalorder %v25, 2
    %v203 = vsub.f32 %v187, 1.0
    %v204 = vperm.slane %v203, 2
    %v205 = vsel %vm202, %v204, %v187
    %207 = vset.pattern.permute.xlu0 2
    %208 = vperm.xlu0 %207, %v205
    %v209 = vpop.permute.xlu0 %208
    %v211 = vperm.slane %v200, 2
    %v212 = vmul.f32 %v209, %v211
    %v213 = vsub.f32 %v187, %v212
    %v214 = vperm.slane %v201, 2
    %v215 = vmul.f32 %v209, %v214
    %v216 = vsub.f32 %v190, %v215
    %v217 = vrcp.pop %v213
    %v218 = vmul.f32 %v213, %v217
    %v219 = vsub.f32 2.0, %v218
    %v220 = vmul.f32 %v217, %v219
    %222 = vset.pattern.permute.xlu0 3
    %223 = vperm.xlu0 %222, %v220
    %v224 = vpop.permute.xlu0 %223
    %v226 = vmul.f32 %v213, %v224
    %v227 = vmul.f32 %v216, %v224
    %vm228 = vcmp.eq.s32.totalorder %v25, 3
    %v229 = vsub.f32 %v213, 1.0
    %v230 = vperm.slane %v229, 3
    %v231 = vsel %vm228, %v230, %v213
    %233 = vset.pattern.permute.xlu0 3
    %234 = vperm.xlu0 %233, %v231
    %v235 = vpop.permute.xlu0 %234
    %v237 = vperm.slane %v226, 3
    %v238 = vmul.f32 %v235, %v237
    %v239 = vsub.f32 %v213, %v238
    %v240 = vperm.slane %v227, 3
    %v241 = vmul.f32 %v235, %v240
    %v242 = vsub.f32 %v216, %v241
    %v243 = vrcp.pop %v239
    %v244 = vmul.f32 %v239, %v243
    %v245 = vsub.f32 2.0, %v244
    %v246 = vmul.f32 %v243, %v245
    %248 = vset.pattern.permute.xlu0 4
    %249 = vperm.xlu0 %248, %v246
    %v250 = vpop.permute.xlu0 %249
    %v252 = vmul.f32 %v239, %v250
    %v253 = vmul.f32 %v242, %v250
    %vm254 = vcmp.eq.s32.totalorder %v25, 4
    %v255 = vsub.f32 %v239, 1.0
    %v256 = vperm.slane %v255, 4
    %v257 = vsel %vm254, %v256, %v239
    %259 = vset.pattern.permute.xlu0 4
    %260 = vperm.xlu0 %259, %v257
    %v261 = vpop.permute.xlu0 %260
    %v263 = vperm.slane %v252, 4
    %v264 = vmul.f32 %v261, %v263
    %v265 = vsub.f32 %v239, %v264
    %v266 = vperm.slane %v253, 4
    %v267 = vmul.f32 %v261, %v266
    %v268 = vsub.f32 %v242, %v267
    %v269 = vrcp.pop %v265
    %v270 = vmul.f32 %v265, %v269
    %v271 = vsub.f32 2.0, %v270
    %v272 = vmul.f32 %v269, %v271
    %274 = vset.pattern.permute.xlu0 5
    %275 = vperm.xlu0 %274, %v272
    %v276 = vpop.permute.xlu0 %275
    %v278 = vmul.f32 %v268, %v276
    %vm279 = vcmp.eq.s32.totalorder %v25, 5
    %v280 = vsub.f32 %v265, 1.0
    %v281 = vperm.slane %v280, 5
    %v282 = vsel %vm279, %v281, %v265
    %284 = vset.pattern.permute.xlu0 5
    %285 = vperm.xlu0 %284, %v282
    %v286 = vpop.permute.xlu0 %285
    %v288 = vperm.slane %v278, 5
    %v289 = vmul.f32 %v286, %v288
    %v290 = vsub.f32 %v268, %v289
    %vm291 = vcmask 64512
    %v293 = vsel %vm291, %v136, 0
    %295 = vmatpush.msra.mxu0 0.0
    %296 = vmatpush.msra.mxu0 0.0
    %297 = vmatpush.msra.mxu0 0.0
    %298 = vmatpush.msra.mxu0 0.0
    %299 = vmatpush.msra.mxu0 0.0
    %300 = vmatpush.msra.mxu0 0.0
    %301 = vmatpush.msra.mxu0 0.0
    %302 = vmatpush.msra.mxu0 0.0
    %303 = vmatpush.msra.mxu0 0.0
    %304 = vmatpush.msra.mxu0 0.0
    %305 = vmatpush.msra.mxu0 0.0
    %306 = vmatpush.msra.mxu0 0.0
    %307 = vmatpush.msra.mxu0 0.0
    %308 = vmatpush.msra.mxu0 0.0
    %309 = vmatpush.msra.mxu0 0.0
    %310 = vmatpush.msra.mxu0 %v290
    %311 = vmatmul.f32.gmra.mxu0 %v293
    %v312 = vpop.f32.mrf.mxu0
    %v313 = vadd.f32 0.0, %v312
    %314 = vdwg.mxu0
    %v316 = vsel %vm291, %v313, 0
    %318 = vmatpush.msra.mxu0 0.0
    %319 = vmatpush.msra.mxu0 0.0
    %320 = vmatpush.msra.mxu0 0.0
    %321 = vmatpush.msra.mxu0 0.0
    %322 = vmatpush.msra.mxu0 0.0
    %323 = vmatpush.msra.mxu0 0.0
    %324 = vmatpush.msra.mxu0 0.0
    %325 = vmatpush.msra.mxu0 0.0
    %326 = vmatpush.msra.mxu0 0.0
    %327 = vmatpush.msra.mxu0 0.0
    %328 = vmatpush.msra.mxu0 0.0
    %329 = vmatpush.msra.mxu0 0.0
    %330 = vmatpush.msra.mxu0 0.0
    %331 = vmatpush.msra.mxu0 0.0
    %332 = vmatpush.msra.mxu0 0.0
    %333 = vmatpush.msra.mxu0 %v116
    %334 = vmatmul.f32.gmra.mxu0 %v316
    %v335 = vpop.f32.mrf.mxu0
    %v336 = vadd.f32 0.0, %v335
    %337 = vdwg.mxu0
    %v338 = vsub.f32 %v116, %v336
    %339 = vmatpush.msra.mxu0 0.0
    %340 = vmatpush.msra.mxu0 0.0
    %341 = vmatpush.msra.mxu0 0.0
    %342 = vmatpush.msra.mxu0 0.0
    %343 = vmatpush.msra.mxu0 0.0
    %344 = vmatpush.msra.mxu0 0.0
    %345 = vmatpush.msra.mxu0 0.0
    %346 = vmatpush.msra.mxu0 0.0
    %347 = vmatpush.msra.mxu0 0.0
    %348 = vmatpush.msra.mxu0 0.0
    %349 = vmatpush.msra.mxu0 0.0
    %350 = vmatpush.msra.mxu0 0.0
    %351 = vmatpush.msra.mxu0 0.0
    %352 = vmatpush.msra.mxu0 0.0
    %353 = vmatpush.msra.mxu0 0.0
    %354 = vmatpush.msra.mxu0 %v136
    %355 = vmatmul.f32.gmra.mxu0 %v316
    %v356 = vpop.f32.mrf.mxu0
    %v357 = vadd.f32 0.0, %v356
    %358 = vdwg.mxu0
    %v359 = vsub.f32 %v136, %v357
    %v360 = vsub.f32 %v30, %v359
    %v361 = vmul.f32 %v360, 32.0
    %v363 = vsel %vm33, %v338, 0
    %365 = vmatpush.xpose.msra.mxu0 0.0
    %366 = vmatpush.xpose.msra.mxu0 0.0
    %367 = vmatpush.xpose.msra.mxu0 0.0
    %368 = vmatpush.xpose.msra.mxu0 0.0
    %369 = vmatpush.xpose.msra.mxu0 0.0
    %370 = vmatpush.xpose.msra.mxu0 0.0
    %371 = vmatpush.xpose.msra.mxu0 0.0
    %372 = vmatpush.xpose.msra.mxu0 0.0
    %373 = vmatpush.xpose.msra.mxu0 0.0
    %374 = vmatpush.xpose.msra.mxu0 0.0
    %375 = vmatpush.xpose.msra.mxu0 0.0
    %376 = vmatpush.xpose.msra.mxu0 0.0
    %377 = vmatpush.xpose.msra.mxu0 0.0
    %378 = vmatpush.xpose.msra.mxu0 0.0
    %379 = vmatpush.xpose.msra.mxu0 0.0
    %380 = vmatpush.xpose.msra.mxu0 %v363
    %381 = vmatmul.f32.gmra.mxu0 %v363
    %v382 = vpop.f32.mrf.mxu0
    %v383 = vadd.f32 0.0, %v382
    %384 = vdwg.mxu0
    %v385 = vadd.f32 %v361, %v383
    %v387 = vsel %vm33, %v18, 0
    %v390 = vsel %vm33, %v19, 0
    %392 = vmatpush.xpose.msra.mxu0 0.0
    %393 = vmatpush.xpose.msra.mxu0 0.0
    %394 = vmatpush.xpose.msra.mxu0 0.0
    %395 = vmatpush.xpose.msra.mxu0 0.0
    %396 = vmatpush.xpose.msra.mxu0 0.0
    %397 = vmatpush.xpose.msra.mxu0 0.0
    %398 = vmatpush.xpose.msra.mxu0 0.0
    %399 = vmatpush.xpose.msra.mxu0 0.0
    %400 = vmatpush.xpose.msra.mxu0 0.0
    %401 = vmatpush.xpose.msra.mxu0 0.0
    %402 = vmatpush.xpose.msra.mxu0 0.0
    %403 = vmatpush.xpose.msra.mxu0 0.0
    %404 = vmatpush.xpose.msra.mxu0 0.0
    %405 = vmatpush.xpose.msra.mxu0 0.0
    %406 = vmatpush.xpose.msra.mxu0 0.0
    %407 = vmatpush.xpose.msra.mxu0 %v363
    %408 = vmatmul.f32.gmra.mxu0 %v387
    %v409 = vpop.f32.mrf.mxu0
    %v410 = vadd.f32 0.0, %v409
    %411 = vmatmul.f32.gmra.mxu0 %v390
    %v412 = vpop.f32.mrf.mxu0
    %v413 = vadd.f32 0.0, %v412
    %414 = vdwg.mxu0
    %v415 = vrcp.pop %v385
    %v416 = vmul.f32 %v385, %v415
    %v417 = vsub.f32 2.0, %v416
    %v418 = vmul.f32 %v415, %v417
    %420 = vset.pattern.permute.xlu0 0
    %421 = vperm.xlu0 %420, %v418
    %v422 = vpop.permute.xlu0 %421
    %v424 = vmul.f32 %v385, %v422
    %v425 = vmul.f32 %v30, %v422
    %v426 = vsub.f32 %v385, 1.0
    %v427 = vperm.slane %v426, 0
    %v428 = vsel %vm150, %v427, %v385
    %430 = vset.pattern.permute.xlu0 0
    %431 = vperm.xlu0 %430, %v428
    %v432 = vpop.permute.xlu0 %431
    %v434 = vperm.slane %v424, 0
    %v435 = vmul.f32 %v432, %v434
    %v436 = vsub.f32 %v385, %v435
    %v437 = vperm.slane %v425, 0
    %v438 = vmul.f32 %v432, %v437
    %v439 = vsub.f32 %v30, %v438
    %v440 = vrcp.pop %v436
    %v441 = vmul.f32 %v436, %v440
    %v442 = vsub.f32 2.0, %v441
    %v443 = vmul.f32 %v440, %v442
    %445 = vset.pattern.permute.xlu0 1
    %446 = vperm.xlu0 %445, %v443
    %v447 = vpop.permute.xlu0 %446
    %v449 = vmul.f32 %v436, %v447
    %v450 = vmul.f32 %v439, %v447
    %v451 = vsub.f32 %v436, 1.0
    %v452 = vperm.slane %v451, 1
    %v453 = vsel %vm176, %v452, %v436
    %455 = vset.pattern.permute.xlu0 1
    %456 = vperm.xlu0 %455, %v453
    %v457 = vpop.permute.xlu0 %456
    %v459 = vperm.slane %v449, 1
    %v460 = vmul.f32 %v457, %v459
    %v461 = vsub.f32 %v436, %v460
    %v462 = vperm.slane %v450, 1
    %v463 = vmul.f32 %v457, %v462
    %v464 = vsub.f32 %v439, %v463
    %v465 = vrcp.pop %v461
    %v466 = vmul.f32 %v461, %v465
    %v467 = vsub.f32 2.0, %v466
    %v468 = vmul.f32 %v465, %v467
    %470 = vset.pattern.permute.xlu0 2
    %471 = vperm.xlu0 %470, %v468
    %v472 = vpop.permute.xlu0 %471
    %v474 = vmul.f32 %v461, %v472
    %v475 = vmul.f32 %v464, %v472
    %v476 = vsub.f32 %v461, 1.0
    %v477 = vperm.slane %v476, 2
    %v478 = vsel %vm202, %v477, %v461
    %480 = vset.pattern.permute.xlu0 2
    %481 = vperm.xlu0 %480, %v478
    %v482 = vpop.permute.xlu0 %481
    %v484 = vperm.slane %v474, 2
    %v485 = vmul.f32 %v482, %v484
    %v486 = vsub.f32 %v461, %v485
    %v487 = vperm.slane %v475, 2
    %v488 = vmul.f32 %v482, %v487
    %v489 = vsub.f32 %v464, %v488
    %v490 = vrcp.pop %v486
    %v491 = vmul.f32 %v486, %v490
    %v492 = vsub.f32 2.0, %v491
    %v493 = vmul.f32 %v490, %v492
    %495 = vset.pattern.permute.xlu0 3
    %496 = vperm.xlu0 %495, %v493
    %v497 = vpop.permute.xlu0 %496
    %v499 = vmul.f32 %v486, %v497
    %v500 = vmul.f32 %v489, %v497
    %v501 = vsub.f32 %v486, 1.0
    %v502 = vperm.slane %v501, 3
    %v503 = vsel %vm228, %v502, %v486
    %505 = vset.pattern.permute.xlu0 3
    %506 = vperm.xlu0 %505, %v503
    %v507 = vpop.permute.xlu0 %506
    %v509 = vperm.slane %v499, 3
    %v510 = vmul.f32 %v507, %v509
    %v511 = vsub.f32 %v486, %v510
    %v512 = vperm.slane %v500, 3
    %v513 = vmul.f32 %v507, %v512
    %v514 = vsub.f32 %v489, %v513
    %v515 = vrcp.pop %v511
    %v516 = vmul.f32 %v511, %v515
    %v517 = vsub.f32 2.0, %v516
    %v518 = vmul.f32 %v515, %v517
    %520 = vset.pattern.permute.xlu0 4
    %521 = vperm.xlu0 %520, %v518
    %v522 = vpop.permute.xlu0 %521
    %v524 = vmul.f32 %v511, %v522
    %v525 = vmul.f32 %v514, %v522
    %v526 = vsub.f32 %v511, 1.0
    %v527 = vperm.slane %v526, 4
    %v528 = vsel %vm254, %v527, %v511
    %530 = vset.pattern.permute.xlu0 4
    %531 = vperm.xlu0 %530, %v528
    %v532 = vpop.permute.xlu0 %531
    %v534 = vperm.slane %v524, 4
    %v535 = vmul.f32 %v532, %v534
    %v536 = vsub.f32 %v511, %v535
    %v537 = vperm.slane %v525, 4
    %v538 = vmul.f32 %v532, %v537
    %v539 = vsub.f32 %v514, %v538
    %v540 = vrcp.pop %v536
    %v541 = vmul.f32 %v536, %v540
    %v542 = vsub.f32 2.0, %v541
    %v543 = vmul.f32 %v540, %v542
    %545 = vset.pattern.permute.xlu0 5
    %546 = vperm.xlu0 %545, %v543
    %v547 = vpop.permute.xlu0 %546
    %v549 = vmul.f32 %v539, %v547
    %v550 = vsub.f32 %v536, 1.0
    %v551 = vperm.slane %v550, 5
    %v552 = vsel %vm279, %v551, %v536
    %554 = vset.pattern.permute.xlu0 5
    %555 = vperm.xlu0 %554, %v552
    %v556 = vpop.permute.xlu0 %555
    %v558 = vperm.slane %v549, 5
    %v559 = vmul.f32 %v556, %v558
    %v560 = vsub.f32 %v539, %v559
    %v562 = vsel %vm291, %v410, 0
    %v565 = vsel %vm291, %v413, 0
    %567 = vmatpush.msra.mxu0 0.0
    %568 = vmatpush.msra.mxu0 0.0
    %569 = vmatpush.msra.mxu0 0.0
    %570 = vmatpush.msra.mxu0 0.0
    %571 = vmatpush.msra.mxu0 0.0
    %572 = vmatpush.msra.mxu0 0.0
    %573 = vmatpush.msra.mxu0 0.0
    %574 = vmatpush.msra.mxu0 0.0
    %575 = vmatpush.msra.mxu0 0.0
    %576 = vmatpush.msra.mxu0 0.0
    %577 = vmatpush.msra.mxu0 0.0
    %578 = vmatpush.msra.mxu0 0.0
    %579 = vmatpush.msra.mxu0 0.0
    %580 = vmatpush.msra.mxu0 0.0
    %581 = vmatpush.msra.mxu0 0.0
    %582 = vmatpush.msra.mxu0 %v560
    %583 = vmatmul.f32.gmra.mxu0 %v562
    %v584 = vpop.f32.mrf.mxu0
    %v585 = vadd.f32 0.0, %v584
    %586 = vmatmul.f32.gmra.mxu0 %v565
    %v587 = vpop.f32.mrf.mxu0
    %v588 = vadd.f32 0.0, %v587
    %589 = vdwg.mxu0
    %v591 = vsel %vm291, %v585, 0
    %v594 = vsel %vm291, %v588, 0
    %596 = vmatpush.msra.mxu0 0.0
    %597 = vmatpush.msra.mxu0 0.0
    %598 = vmatpush.msra.mxu0 0.0
    %599 = vmatpush.msra.mxu0 0.0
    %600 = vmatpush.msra.mxu0 0.0
    %601 = vmatpush.msra.mxu0 0.0
    %602 = vmatpush.msra.mxu0 0.0
    %603 = vmatpush.msra.mxu0 0.0
    %604 = vmatpush.msra.mxu0 0.0
    %605 = vmatpush.msra.mxu0 0.0
    %606 = vmatpush.msra.mxu0 0.0
    %607 = vmatpush.msra.mxu0 0.0
    %608 = vmatpush.msra.mxu0 0.0
    %609 = vmatpush.msra.mxu0 0.0
    %610 = vmatpush.msra.mxu0 0.0
    %611 = vmatpush.msra.mxu0 %v338
    %612 = vmatmul.f32.gmra.mxu0 %v591
    %v613 = vpop.f32.mrf.mxu0
    %v614 = vadd.f32 0.0, %v613
    %615 = vmatmul.f32.gmra.mxu0 %v594
    %v616 = vpop.f32.mrf.mxu0
    %v617 = vadd.f32 0.0, %v616
    %618 = vdwg.mxu0
    %v619 = vmul.f32 %v614, %v18
    %v620 = vmul.f32 %v617, %v19
    %v621 = vsel %vm33, %v619, 0.0
    %622 = vadd.xlane.f32.xlu0 %v621
    %v623 = vpop.xlane.xlu0 %622
    %v624 = vsel %vm33, %v620, 0.0
    %625 = vadd.xlane.f32.xlu0 %v624
    %v626 = vpop.xlane.xlu0 %625
    %v627 = vsub.f32 %v36, %v623
    %v628 = vsub.f32 %v39, %v626
    %v629 = vmul.f32 %v627, 0.03125
    %v630 = vmul.f32 %v628, 0.03125
    %v631 = vrcp.pop %v629
    %v632 = vrcp.pop %v630
    %v633 = vmul.f32 %v629, %v631
    %v634 = vmul.f32 %v630, %v632
    %v635 = vsub.f32 2.0, %v633
    %v636 = vsub.f32 2.0, %v634
    %v637 = vmul.f32 %v631, %v635
    %v638 = vmul.f32 %v632, %v636
    %v639 = vmul.f32 %v18, %v637
    %v640 = vmul.f32 %v19, %v638
    %v641 = vmul.f32 %v585, %v637
    %v642 = vmul.f32 %v588, %v638
    %643 = vxpose.xlu0.b32.start [1/16] %v585, 128
    %644 = vxpose.xlu0.b32.cont [2/16] %v588, 128
    %645 = vxpose.xlu0.b32.cont [3/16] 0.0, 128
    %646 = vxpose.xlu0.b32.cont [4/16] 0.0, 128
    %647 = vxpose.xlu0.b32.cont [5/16] 0.0, 128
    %648 = vxpose.xlu0.b32.cont [6/16] 0.0, 128
    %649 = vxpose.xlu0.b32.cont [7/16] 0.0, 128
    %650 = vxpose.xlu0.b32.cont [8/16] 0.0, 128
    %651 = vxpose.xlu0.b32.cont [9/16] 0.0, 128
    %652 = vxpose.xlu0.b32.cont [10/16] 0.0, 128
    %653 = vxpose.xlu0.b32.cont [11/16] 0.0, 128
    %654 = vxpose.xlu0.b32.cont [12/16] 0.0, 128
    %655 = vxpose.xlu0.b32.cont [13/16] 0.0, 128
    %656 = vxpose.xlu0.b32.cont [14/16] 0.0, 128
    %657 = vxpose.xlu0.b32.cont [15/16] 0.0, 128
    %658 = vxpose.xlu0.b32.end [16/16] 0.0, 128
    %v659 = vpop.trf.xlu0
    %v660 = vpop.trf.xlu0
    %v661 = vpop.trf.xlu0
    %v662 = vpop.trf.xlu0
    %v663 = vpop.trf.xlu0
    %v664 = vpop.trf.xlu0
    %v665 = vpop.trf.xlu0
    %v666 = vpop.trf.xlu0
    %v667 = vpop.trf.xlu0
    %v668 = vpop.trf.xlu0
    %v669 = vpop.trf.xlu0
    %v670 = vpop.trf.xlu0
    %v671 = vpop.trf.xlu0
    %v672 = vpop.trf.xlu0
    %v673 = vpop.trf.xlu0
    %v674 = vpop.trf.xlu0
    %v676 = vsel %vm94, %v659, 0
    %678 = vmatpush.msra.mxu0 0.0
    %679 = vmatpush.msra.mxu0 0.0
    %680 = vmatpush.msra.mxu0 0.0
    %681 = vmatpush.msra.mxu0 0.0
    %682 = vmatpush.msra.mxu0 0.0
    %683 = vmatpush.msra.mxu0 0.0
    %684 = vmatpush.msra.mxu0 0.0
    %685 = vmatpush.msra.mxu0 0.0
    %686 = vmatpush.msra.mxu0 0.0
    %687 = vmatpush.msra.mxu0 0.0
    %688 = vmatpush.msra.mxu0 0.0
    %689 = vmatpush.msra.mxu0 0.0
    %690 = vmatpush.msra.mxu0 0.0
    %691 = vmatpush.msra.mxu0 0.0
    %692 = vmatpush.msra.mxu0 %v640
    %693 = vmatpush.msra.mxu0 %v639
    %694 = vmatmul.f32.gmra.mxu0 %v676
    %v695 = vpop.f32.mrf.mxu0
    %v696 = vadd.f32 0.0, %v695
    %697 = vdwg.mxu0
    %698 = vmatpush.msra.mxu0 0.0
    %699 = vmatpush.msra.mxu0 0.0
    %700 = vmatpush.msra.mxu0 0.0
    %701 = vmatpush.msra.mxu0 0.0
    %702 = vmatpush.msra.mxu0 0.0
    %703 = vmatpush.msra.mxu0 0.0
    %704 = vmatpush.msra.mxu0 0.0
    %705 = vmatpush.msra.mxu0 0.0
    %706 = vmatpush.msra.mxu0 0.0
    %707 = vmatpush.msra.mxu0 0.0
    %708 = vmatpush.msra.mxu0 0.0
    %709 = vmatpush.msra.mxu0 0.0
    %710 = vmatpush.msra.mxu0 0.0
    %711 = vmatpush.msra.mxu0 0.0
    %712 = vmatpush.msra.mxu0 %v642
    %713 = vmatpush.msra.mxu0 %v641
    %714 = vmatmul.f32.gmra.mxu0 %v676
    %v715 = vpop.f32.mrf.mxu0
    %v716 = vadd.f32 0.0, %v715
    %717 = vdwg.mxu0
    %v718 = vadd.f32 %v30, %v716
    %v719 = vrcp.pop %v718
    %v720 = vmul.f32 %v718, %v719
    %v721 = vsub.f32 2.0, %v720
    %v722 = vmul.f32 %v719, %v721
    %724 = vset.pattern.permute.xlu0 0
    %725 = vperm.xlu0 %724, %v722
    %v726 = vpop.permute.xlu0 %725
    %v728 = vmul.f32 %v718, %v726
    %v729 = vmul.f32 %v30, %v726
    %v730 = vsub.f32 %v718, 1.0
    %v731 = vperm.slane %v730, 0
    %v732 = vsel %vm150, %v731, %v718
    %734 = vset.pattern.permute.xlu0 0
    %735 = vperm.xlu0 %734, %v732
    %v736 = vpop.permute.xlu0 %735
    %v738 = vperm.slane %v728, 0
    %v739 = vmul.f32 %v736, %v738
    %v740 = vsub.f32 %v718, %v739
    %v741 = vperm.slane %v729, 0
    %v742 = vmul.f32 %v736, %v741
    %v743 = vsub.f32 %v30, %v742
    %v744 = vrcp.pop %v740
    %v745 = vmul.f32 %v740, %v744
    %v746 = vsub.f32 2.0, %v745
    %v747 = vmul.f32 %v744, %v746
    %749 = vset.pattern.permute.xlu0 1
    %750 = vperm.xlu0 %749, %v747
    %v751 = vpop.permute.xlu0 %750
    %v753 = vmul.f32 %v740, %v751
    %v754 = vmul.f32 %v743, %v751
    %v755 = vsub.f32 %v740, 1.0
    %v756 = vperm.slane %v755, 1
    %v757 = vsel %vm176, %v756, %v740
    %759 = vset.pattern.permute.xlu0 1
    %760 = vperm.xlu0 %759, %v757
    %v761 = vpop.permute.xlu0 %760
    %v763 = vperm.slane %v753, 1
    %v764 = vmul.f32 %v761, %v763
    %v765 = vsub.f32 %v740, %v764
    %v766 = vperm.slane %v754, 1
    %v767 = vmul.f32 %v761, %v766
    %v768 = vsub.f32 %v743, %v767
    %v769 = vrcp.pop %v765
    %v770 = vmul.f32 %v765, %v769
    %v771 = vsub.f32 2.0, %v770
    %v772 = vmul.f32 %v769, %v771
    %774 = vset.pattern.permute.xlu0 2
    %775 = vperm.xlu0 %774, %v772
    %v776 = vpop.permute.xlu0 %775
    %v778 = vmul.f32 %v765, %v776
    %v779 = vmul.f32 %v768, %v776
    %v780 = vsub.f32 %v765, 1.0
    %v781 = vperm.slane %v780, 2
    %v782 = vsel %vm202, %v781, %v765
    %784 = vset.pattern.permute.xlu0 2
    %785 = vperm.xlu0 %784, %v782
    %v786 = vpop.permute.xlu0 %785
    %v788 = vperm.slane %v778, 2
    %v789 = vmul.f32 %v786, %v788
    %v790 = vsub.f32 %v765, %v789
    %v791 = vperm.slane %v779, 2
    %v792 = vmul.f32 %v786, %v791
    %v793 = vsub.f32 %v768, %v792
    %v794 = vrcp.pop %v790
    %v795 = vmul.f32 %v790, %v794
    %v796 = vsub.f32 2.0, %v795
    %v797 = vmul.f32 %v794, %v796
    %799 = vset.pattern.permute.xlu0 3
    %800 = vperm.xlu0 %799, %v797
    %v801 = vpop.permute.xlu0 %800
    %v803 = vmul.f32 %v790, %v801
    %v804 = vmul.f32 %v793, %v801
    %v805 = vsub.f32 %v790, 1.0
    %v806 = vperm.slane %v805, 3
    %v807 = vsel %vm228, %v806, %v790
    %809 = vset.pattern.permute.xlu0 3
    %810 = vperm.xlu0 %809, %v807
    %v811 = vpop.permute.xlu0 %810
    %v813 = vperm.slane %v803, 3
    %v814 = vmul.f32 %v811, %v813
    %v815 = vsub.f32 %v790, %v814
    %v816 = vperm.slane %v804, 3
    %v817 = vmul.f32 %v811, %v816
    %v818 = vsub.f32 %v793, %v817
    %v819 = vrcp.pop %v815
    %v820 = vmul.f32 %v815, %v819
    %v821 = vsub.f32 2.0, %v820
    %v822 = vmul.f32 %v819, %v821
    %824 = vset.pattern.permute.xlu0 4
    %825 = vperm.xlu0 %824, %v822
    %v826 = vpop.permute.xlu0 %825
    %v828 = vmul.f32 %v815, %v826
    %v829 = vmul.f32 %v818, %v826
    %v830 = vsub.f32 %v815, 1.0
    %v831 = vperm.slane %v830, 4
    %v832 = vsel %vm254, %v831, %v815
    %834 = vset.pattern.permute.xlu0 4
    %835 = vperm.xlu0 %834, %v832
    %v836 = vpop.permute.xlu0 %835
    %v838 = vperm.slane %v828, 4
    %v839 = vmul.f32 %v836, %v838
    %v840 = vsub.f32 %v815, %v839
    %v841 = vperm.slane %v829, 4
    %v842 = vmul.f32 %v836, %v841
    %v843 = vsub.f32 %v818, %v842
    %v844 = vrcp.pop %v840
    %v845 = vmul.f32 %v840, %v844
    %v846 = vsub.f32 2.0, %v845
    %v847 = vmul.f32 %v844, %v846
    %849 = vset.pattern.permute.xlu0 5
    %850 = vperm.xlu0 %849, %v847
    %v851 = vpop.permute.xlu0 %850
    %v853 = vmul.f32 %v843, %v851
    %v854 = vsub.f32 %v840, 1.0
    %v855 = vperm.slane %v854, 5
    %v856 = vsel %vm279, %v855, %v840
    %858 = vset.pattern.permute.xlu0 5
    %859 = vperm.xlu0 %858, %v856
    %v860 = vpop.permute.xlu0 %859
    %v862 = vperm.slane %v853, 5
    %v863 = vmul.f32 %v860, %v862
    %v864 = vsub.f32 %v843, %v863
    %v866 = vsel %vm291, %v716, 0
    %868 = vmatpush.msra.mxu0 0.0
    %869 = vmatpush.msra.mxu0 0.0
    %870 = vmatpush.msra.mxu0 0.0
    %871 = vmatpush.msra.mxu0 0.0
    %872 = vmatpush.msra.mxu0 0.0
    %873 = vmatpush.msra.mxu0 0.0
    %874 = vmatpush.msra.mxu0 0.0
    %875 = vmatpush.msra.mxu0 0.0
    %876 = vmatpush.msra.mxu0 0.0
    %877 = vmatpush.msra.mxu0 0.0
    %878 = vmatpush.msra.mxu0 0.0
    %879 = vmatpush.msra.mxu0 0.0
    %880 = vmatpush.msra.mxu0 0.0
    %881 = vmatpush.msra.mxu0 0.0
    %882 = vmatpush.msra.mxu0 0.0
    %883 = vmatpush.msra.mxu0 %v864
    %884 = vmatmul.f32.gmra.mxu0 %v866
    %v885 = vpop.f32.mrf.mxu0
    %v886 = vadd.f32 0.0, %v885
    %887 = vdwg.mxu0
    %v889 = vsel %vm291, %v886, 0
    %891 = vmatpush.msra.mxu0 0.0
    %892 = vmatpush.msra.mxu0 0.0
    %893 = vmatpush.msra.mxu0 0.0
    %894 = vmatpush.msra.mxu0 0.0
    %895 = vmatpush.msra.mxu0 0.0
    %896 = vmatpush.msra.mxu0 0.0
    %897 = vmatpush.msra.mxu0 0.0
    %898 = vmatpush.msra.mxu0 0.0
    %899 = vmatpush.msra.mxu0 0.0
    %900 = vmatpush.msra.mxu0 0.0
    %901 = vmatpush.msra.mxu0 0.0
    %902 = vmatpush.msra.mxu0 0.0
    %903 = vmatpush.msra.mxu0 0.0
    %904 = vmatpush.msra.mxu0 0.0
    %905 = vmatpush.msra.mxu0 0.0
    %906 = vmatpush.msra.mxu0 %v696
    %907 = vmatmul.f32.gmra.mxu0 %v889
    %v908 = vpop.f32.mrf.mxu0
    %v909 = vadd.f32 0.0, %v908
    %910 = vdwg.mxu0
    %v911 = vsub.f32 %v696, %v909
    %912 = vmatpush.msra.mxu0 0.0
    %913 = vmatpush.msra.mxu0 0.0
    %914 = vmatpush.msra.mxu0 0.0
    %915 = vmatpush.msra.mxu0 0.0
    %916 = vmatpush.msra.mxu0 0.0
    %917 = vmatpush.msra.mxu0 0.0
    %918 = vmatpush.msra.mxu0 0.0
    %919 = vmatpush.msra.mxu0 0.0
    %920 = vmatpush.msra.mxu0 0.0
    %921 = vmatpush.msra.mxu0 0.0
    %922 = vmatpush.msra.mxu0 0.0
    %923 = vmatpush.msra.mxu0 0.0
    %924 = vmatpush.msra.mxu0 0.0
    %925 = vmatpush.msra.mxu0 0.0
    %926 = vmatpush.msra.mxu0 0.0
    %927 = vmatpush.msra.mxu0 %v716
    %928 = vmatmul.f32.gmra.mxu0 %v889
    %v929 = vpop.f32.mrf.mxu0
    %v930 = vadd.f32 0.0, %v929
    %931 = vdwg.mxu0
    %v932 = vsub.f32 %v716, %v930
    %v933 = vsub.f32 %v30, %v932
    %v934 = vmul.f32 %v933, 32.0
    %v936 = vsel %vm33, %v911, 0
    %938 = vmatpush.xpose.msra.mxu0 0.0
    %939 = vmatpush.xpose.msra.mxu0 0.0
    %940 = vmatpush.xpose.msra.mxu0 0.0
    %941 = vmatpush.xpose.msra.mxu0 0.0
    %942 = vmatpush.xpose.msra.mxu0 0.0
    %943 = vmatpush.xpose.msra.mxu0 0.0
    %944 = vmatpush.xpose.msra.mxu0 0.0
    %945 = vmatpush.xpose.msra.mxu0 0.0
    %946 = vmatpush.xpose.msra.mxu0 0.0
    %947 = vmatpush.xpose.msra.mxu0 0.0
    %948 = vmatpush.xpose.msra.mxu0 0.0
    %949 = vmatpush.xpose.msra.mxu0 0.0
    %950 = vmatpush.xpose.msra.mxu0 0.0
    %951 = vmatpush.xpose.msra.mxu0 0.0
    %952 = vmatpush.xpose.msra.mxu0 0.0
    %953 = vmatpush.xpose.msra.mxu0 %v936
    %954 = vmatmul.f32.gmra.mxu0 %v936
    %v955 = vpop.f32.mrf.mxu0
    %v956 = vadd.f32 0.0, %v955
    %957 = vdwg.mxu0
    %v958 = vadd.f32 %v934, %v956
    %959 = vmatpush.msra.mxu0 0.0
    %960 = vmatpush.msra.mxu0 0.0
    %961 = vmatpush.msra.mxu0 0.0
    %962 = vmatpush.msra.mxu0 0.0
    %963 = vmatpush.msra.mxu0 0.0
    %964 = vmatpush.msra.mxu0 0.0
    %965 = vmatpush.msra.mxu0 0.0
    %966 = vmatpush.msra.mxu0 0.0
    %967 = vmatpush.msra.mxu0 0.0
    %968 = vmatpush.msra.mxu0 0.0
    %969 = vmatpush.msra.mxu0 0.0
    %970 = vmatpush.msra.mxu0 0.0
    %971 = vmatpush.msra.mxu0 0.0
    %972 = vmatpush.msra.mxu0 0.0
    %973 = vmatpush.msra.mxu0 0.0
    %974 = vmatpush.msra.mxu0 %v911
    %975 = vmatmul.f32.gmra.mxu0 %v591
    %v976 = vpop.f32.mrf.mxu0
    %v977 = vadd.f32 0.0, %v976
    %978 = vmatmul.f32.gmra.mxu0 %v594
    %v979 = vpop.f32.mrf.mxu0
    %v980 = vadd.f32 0.0, %v979
    %981 = vdwg.mxu0
    %v982 = vmul.f32 %v18, 0.5
    %v983 = vmul.f32 %v19, 0.5
    %v984 = vsub.f32 %v982, %v977
    %v985 = vsub.f32 %v983, %v980
    %v986 = vmul.f32 %v639, %v984
    %v987 = vmul.f32 %v640, %v985
    %v988 = vsel %vm33, %v986, 0.0
    %v989 = vsel %vm33, %v987, 0.0
    %v990 = vadd.f32 %v988, %v989
    %991 = vadd.xlane.f32.xlu0 %v990
    %v992 = vpop.xlane.xlu0 %991
    %v993 = vrot.slane %v992, 4
    %v994 = vadd.f32 %v992, %v993
    %v995 = vrot.slane %v994, 2
    %v996 = vadd.f32 %v994, %v995
    %v997 = vrot.slane %v996, 1
    %v998 = vadd.f32 %v996, %v997
    %s999 = vtos %v998
    %v1000 = vmul.f32 %v716, %v958
    %v1001 = vsel %vm291, %v1000, 0.0
    %1002 = vadd.xlane.f32.xlu0 %v1001
    %v1003 = vpop.xlane.xlu0 %1002
    %v1004 = vrot.slane %v1003, 4
    %v1005 = vadd.f32 %v1003, %v1004
    %v1006 = vrot.slane %v1005, 2
    %v1007 = vadd.f32 %v1005, %v1006
    %v1008 = vrot.slane %v1007, 1
    %v1009 = vadd.f32 %v1007, %v1008
    %s1010 = vtos %v1009
    %s1011 = smul.f32 %s1010, 0.5
    %s1012 = sadd.f32 %s999, %s1011
    %v1013 = vlog2.pop %v629
    %v1014 = vmul.f32 %v1013, 0.6931472
    %v1015 = vlog2.pop %v630
    %v1016 = vmul.f32 %v1015, 0.6931472
    %vm1017 = vcmask 7168
    %v1018 = vsel %vm1017, %v1014, 0.0
    %v1019 = vsel %vm1017, %v1016, 0.0
    %v1020 = vadd.f32 %v1018, %v1019
    %1021 = vadd.xlane.f32.xlu0 %v1020
    %v1022 = vpop.xlane.xlu0 %1021
    %v1023 = vrot.slane %v1022, 4
    %v1024 = vadd.f32 %v1022, %v1023
    %v1025 = vrot.slane %v1024, 2
    %v1026 = vadd.f32 %v1024, %v1025
    %v1027 = vrot.slane %v1026, 1
    %v1028 = vadd.f32 %v1026, %v1027
    %s1029 = vtos %v1028
    %s1030 = smul.f32 %s1029, -16.0
    %s1031 = ssub.f32 %s1030, %s1012
    %s1032 = ssub.f32 0.0, %s1031
    %s1033 = scalar_lea.smem [#allocation2], 0
    %1034 = sst [smem:[%s1033]] %s1032
    %1035 = vmatpush.xpose.msra.mxu0 0.0
    %1036 = vmatpush.xpose.msra.mxu0 0.0
    %1037 = vmatpush.xpose.msra.mxu0 0.0
    %1038 = vmatpush.xpose.msra.mxu0 0.0
    %1039 = vmatpush.xpose.msra.mxu0 0.0
    %1040 = vmatpush.xpose.msra.mxu0 0.0
    %1041 = vmatpush.xpose.msra.mxu0 0.0
    %1042 = vmatpush.xpose.msra.mxu0 0.0
    %1043 = vmatpush.xpose.msra.mxu0 0.0
    %1044 = vmatpush.xpose.msra.mxu0 0.0
    %1045 = vmatpush.xpose.msra.mxu0 0.0
    %1046 = vmatpush.xpose.msra.mxu0 0.0
    %1047 = vmatpush.xpose.msra.mxu0 0.0
    %1048 = vmatpush.xpose.msra.mxu0 0.0
    %1049 = vmatpush.xpose.msra.mxu0 0.0
    %1050 = vmatpush.xpose.msra.mxu0 %v936
    %1051 = vmatmul.f32.gmra.mxu0 %v387
    %v1052 = vpop.f32.mrf.mxu0
    %v1053 = vadd.f32 0.0, %v1052
    %1054 = vmatmul.f32.gmra.mxu0 %v390
    %v1055 = vpop.f32.mrf.mxu0
    %v1056 = vadd.f32 0.0, %v1055
    %1057 = vdwg.mxu0
    %v1058 = vrcp.pop %v958
    %v1059 = vmul.f32 %v958, %v1058
    %v1060 = vsub.f32 2.0, %v1059
    %v1061 = vmul.f32 %v1058, %v1060
    %1063 = vset.pattern.permute.xlu0 0
    %1064 = vperm.xlu0 %1063, %v1061
    %v1065 = vpop.permute.xlu0 %1064
    %v1067 = vmul.f32 %v958, %v1065
    %v1068 = vmul.f32 %v30, %v1065
    %v1069 = vsub.f32 %v958, 1.0
    %v1070 = vperm.slane %v1069, 0
    %v1071 = vsel %vm150, %v1070, %v958
    %1073 = vset.pattern.permute.xlu0 0
    %1074 = vperm.xlu0 %1073, %v1071
    %v1075 = vpop.permute.xlu0 %1074
    %v1077 = vperm.slane %v1067, 0
    %v1078 = vmul.f32 %v1075, %v1077
    %v1079 = vsub.f32 %v958, %v1078
    %v1080 = vperm.slane %v1068, 0
    %v1081 = vmul.f32 %v1075, %v1080
    %v1082 = vsub.f32 %v30, %v1081
    %v1083 = vrcp.pop %v1079
    %v1084 = vmul.f32 %v1079, %v1083
    %v1085 = vsub.f32 2.0, %v1084
    %v1086 = vmul.f32 %v1083, %v1085
    %1088 = vset.pattern.permute.xlu0 1
    %1089 = vperm.xlu0 %1088, %v1086
    %v1090 = vpop.permute.xlu0 %1089
    %v1092 = vmul.f32 %v1079, %v1090
    %v1093 = vmul.f32 %v1082, %v1090
    %v1094 = vsub.f32 %v1079, 1.0
    %v1095 = vperm.slane %v1094, 1
    %v1096 = vsel %vm176, %v1095, %v1079
    %1098 = vset.pattern.permute.xlu0 1
    %1099 = vperm.xlu0 %1098, %v1096
    %v1100 = vpop.permute.xlu0 %1099
    %v1102 = vperm.slane %v1092, 1
    %v1103 = vmul.f32 %v1100, %v1102
    %v1104 = vsub.f32 %v1079, %v1103
    %v1105 = vperm.slane %v1093, 1
    %v1106 = vmul.f32 %v1100, %v1105
    %v1107 = vsub.f32 %v1082, %v1106
    %v1108 = vrcp.pop %v1104
    %v1109 = vmul.f32 %v1104, %v1108
    %v1110 = vsub.f32 2.0, %v1109
    %v1111 = vmul.f32 %v1108, %v1110
    %1113 = vset.pattern.permute.xlu0 2
    %1114 = vperm.xlu0 %1113, %v1111
    %v1115 = vpop.permute.xlu0 %1114
    %v1117 = vmul.f32 %v1104, %v1115
    %v1118 = vmul.f32 %v1107, %v1115
    %v1119 = vsub.f32 %v1104, 1.0
    %v1120 = vperm.slane %v1119, 2
    %v1121 = vsel %vm202, %v1120, %v1104
    %1123 = vset.pattern.permute.xlu0 2
    %1124 = vperm.xlu0 %1123, %v1121
    %v1125 = vpop.permute.xlu0 %1124
    %v1127 = vperm.slane %v1117, 2
    %v1128 = vmul.f32 %v1125, %v1127
    %v1129 = vsub.f32 %v1104, %v1128
    %v1130 = vperm.slane %v1118, 2
    %v1131 = vmul.f32 %v1125, %v1130
    %v1132 = vsub.f32 %v1107, %v1131
    %v1133 = vrcp.pop %v1129
    %v1134 = vmul.f32 %v1129, %v1133
    %v1135 = vsub.f32 2.0, %v1134
    %v1136 = vmul.f32 %v1133, %v1135
    %1138 = vset.pattern.permute.xlu0 3
    %1139 = vperm.xlu0 %1138, %v1136
    %v1140 = vpop.permute.xlu0 %1139
    %v1142 = vmul.f32 %v1129, %v1140
    %v1143 = vmul.f32 %v1132, %v1140
    %v1144 = vsub.f32 %v1129, 1.0
    %v1145 = vperm.slane %v1144, 3
    %v1146 = vsel %vm228, %v1145, %v1129
    %1148 = vset.pattern.permute.xlu0 3
    %1149 = vperm.xlu0 %1148, %v1146
    %v1150 = vpop.permute.xlu0 %1149
    %v1152 = vperm.slane %v1142, 3
    %v1153 = vmul.f32 %v1150, %v1152
    %v1154 = vsub.f32 %v1129, %v1153
    %v1155 = vperm.slane %v1143, 3
    %v1156 = vmul.f32 %v1150, %v1155
    %v1157 = vsub.f32 %v1132, %v1156
    %v1158 = vrcp.pop %v1154
    %v1159 = vmul.f32 %v1154, %v1158
    %v1160 = vsub.f32 2.0, %v1159
    %v1161 = vmul.f32 %v1158, %v1160
    %1163 = vset.pattern.permute.xlu0 4
    %1164 = vperm.xlu0 %1163, %v1161
    %v1165 = vpop.permute.xlu0 %1164
    %v1167 = vmul.f32 %v1154, %v1165
    %v1168 = vmul.f32 %v1157, %v1165
    %v1169 = vsub.f32 %v1154, 1.0
    %v1170 = vperm.slane %v1169, 4
    %v1171 = vsel %vm254, %v1170, %v1154
    %1173 = vset.pattern.permute.xlu0 4
    %1174 = vperm.xlu0 %1173, %v1171
    %v1175 = vpop.permute.xlu0 %1174
    %v1177 = vperm.slane %v1167, 4
    %v1178 = vmul.f32 %v1175, %v1177
    %v1179 = vsub.f32 %v1154, %v1178
    %v1180 = vperm.slane %v1168, 4
    %v1181 = vmul.f32 %v1175, %v1180
    %v1182 = vsub.f32 %v1157, %v1181
    %v1183 = vrcp.pop %v1179
    %v1184 = vmul.f32 %v1179, %v1183
    %v1185 = vsub.f32 2.0, %v1184
    %v1186 = vmul.f32 %v1183, %v1185
    %1188 = vset.pattern.permute.xlu0 5
    %1189 = vperm.xlu0 %1188, %v1186
    %v1190 = vpop.permute.xlu0 %1189
    %v1192 = vmul.f32 %v1182, %v1190
    %v1193 = vsub.f32 %v1179, 1.0
    %v1194 = vperm.slane %v1193, 5
    %v1195 = vsel %vm279, %v1194, %v1179
    %1197 = vset.pattern.permute.xlu0 5
    %1198 = vperm.xlu0 %1197, %v1195
    %v1199 = vpop.permute.xlu0 %1198
    %v1201 = vperm.slane %v1192, 5
    %v1202 = vmul.f32 %v1199, %v1201
    %v1203 = vsub.f32 %v1182, %v1202
    %v1205 = vsel %vm291, %v1053, 0
    %v1208 = vsel %vm291, %v1056, 0
    %1210 = vmatpush.msra.mxu0 0.0
    %1211 = vmatpush.msra.mxu0 0.0
    %1212 = vmatpush.msra.mxu0 0.0
    %1213 = vmatpush.msra.mxu0 0.0
    %1214 = vmatpush.msra.mxu0 0.0
    %1215 = vmatpush.msra.mxu0 0.0
    %1216 = vmatpush.msra.mxu0 0.0
    %1217 = vmatpush.msra.mxu0 0.0
    %1218 = vmatpush.msra.mxu0 0.0
    %1219 = vmatpush.msra.mxu0 0.0
    %1220 = vmatpush.msra.mxu0 0.0
    %1221 = vmatpush.msra.mxu0 0.0
    %1222 = vmatpush.msra.mxu0 0.0
    %1223 = vmatpush.msra.mxu0 0.0
    %1224 = vmatpush.msra.mxu0 0.0
    %1225 = vmatpush.msra.mxu0 %v1203
    %1226 = vmatmul.f32.gmra.mxu0 %v1205
    %v1227 = vpop.f32.mrf.mxu0
    %v1228 = vadd.f32 0.0, %v1227
    %1229 = vmatmul.f32.gmra.mxu0 %v1208
    %v1230 = vpop.f32.mrf.mxu0
    %v1231 = vadd.f32 0.0, %v1230
    %1232 = vdwg.mxu0
    %v1234 = vsel %vm291, %v1228, 0
    %v1237 = vsel %vm291, %v1231, 0
    %1239 = vmatpush.msra.mxu0 0.0
    %1240 = vmatpush.msra.mxu0 0.0
    %1241 = vmatpush.msra.mxu0 0.0
    %1242 = vmatpush.msra.mxu0 0.0
    %1243 = vmatpush.msra.mxu0 0.0
    %1244 = vmatpush.msra.mxu0 0.0
    %1245 = vmatpush.msra.mxu0 0.0
    %1246 = vmatpush.msra.mxu0 0.0
    %1247 = vmatpush.msra.mxu0 0.0
    %1248 = vmatpush.msra.mxu0 0.0
    %1249 = vmatpush.msra.mxu0 0.0
    %1250 = vmatpush.msra.mxu0 0.0
    %1251 = vmatpush.msra.mxu0 0.0
    %1252 = vmatpush.msra.mxu0 0.0
    %1253 = vmatpush.msra.mxu0 0.0
    %1254 = vmatpush.msra.mxu0 %v911
    %1255 = vmatmul.f32.gmra.mxu0 %v1234
    %v1256 = vpop.f32.mrf.mxu0
    %v1257 = vadd.f32 0.0, %v1256
    %1258 = vmatmul.f32.gmra.mxu0 %v1237
    %v1259 = vpop.f32.mrf.mxu0
    %v1260 = vadd.f32 0.0, %v1259
    %1261 = vdwg.mxu0
    %v1262 = vmul.f32 %v1257, %v18
    %v1263 = vmul.f32 %v1260, %v19
    %v1264 = vsel %vm33, %v1262, 0.0
    %1265 = vadd.xlane.f32.xlu0 %v1264
    %v1266 = vpop.xlane.xlu0 %1265
    %v1267 = vsel %vm33, %v1263, 0.0
    %1268 = vadd.xlane.f32.xlu0 %v1267
    %v1269 = vpop.xlane.xlu0 %1268
    %v1270 = vsub.f32 %v36, %v1266
    %v1271 = vsub.f32 %v39, %v1269
    %v1272 = vmul.f32 %v1270, 0.03125
    %v1273 = vmul.f32 %v1271, 0.03125
    %v1274 = vrcp.pop %v1272
    %v1275 = vrcp.pop %v1273
    %v1276 = vmul.f32 %v1272, %v1274
    %v1277 = vmul.f32 %v1273, %v1275
    %v1278 = vsub.f32 2.0, %v1276
    %v1279 = vsub.f32 2.0, %v1277
    %v1280 = vmul.f32 %v1274, %v1278
    %v1281 = vmul.f32 %v1275, %v1279
    %v1282 = vmul.f32 %v18, %v1280
    %v1283 = vmul.f32 %v19, %v1281
    %v1284 = vmul.f32 %v1228, %v1280
    %v1285 = vmul.f32 %v1231, %v1281
    %1286 = vxpose.xlu0.b32.start [1/16] %v1228, 128
    %1287 = vxpose.xlu0.b32.cont [2/16] %v1231, 128
    %1288 = vxpose.xlu0.b32.cont [3/16] 0.0, 128
    %1289 = vxpose.xlu0.b32.cont [4/16] 0.0, 128
    %1290 = vxpose.xlu0.b32.cont [5/16] 0.0, 128
    %1291 = vxpose.xlu0.b32.cont [6/16] 0.0, 128
    %1292 = vxpose.xlu0.b32.cont [7/16] 0.0, 128
    %1293 = vxpose.xlu0.b32.cont [8/16] 0.0, 128
    %1294 = vxpose.xlu0.b32.cont [9/16] 0.0, 128
    %1295 = vxpose.xlu0.b32.cont [10/16] 0.0, 128
    %1296 = vxpose.xlu0.b32.cont [11/16] 0.0, 128
    %1297 = vxpose.xlu0.b32.cont [12/16] 0.0, 128
    %1298 = vxpose.xlu0.b32.cont [13/16] 0.0, 128
    %1299 = vxpose.xlu0.b32.cont [14/16] 0.0, 128
    %1300 = vxpose.xlu0.b32.cont [15/16] 0.0, 128
    %1301 = vxpose.xlu0.b32.end [16/16] 0.0, 128
    %v1302 = vpop.trf.xlu0
    %v1303 = vpop.trf.xlu0
    %v1304 = vpop.trf.xlu0
    %v1305 = vpop.trf.xlu0
    %v1306 = vpop.trf.xlu0
    %v1307 = vpop.trf.xlu0
    %v1308 = vpop.trf.xlu0
    %v1309 = vpop.trf.xlu0
    %v1310 = vpop.trf.xlu0
    %v1311 = vpop.trf.xlu0
    %v1312 = vpop.trf.xlu0
    %v1313 = vpop.trf.xlu0
    %v1314 = vpop.trf.xlu0
    %v1315 = vpop.trf.xlu0
    %v1316 = vpop.trf.xlu0
    %v1317 = vpop.trf.xlu0
    %v1319 = vsel %vm94, %v1302, 0
    %1321 = vmatpush.msra.mxu0 0.0
    %1322 = vmatpush.msra.mxu0 0.0
    %1323 = vmatpush.msra.mxu0 0.0
    %1324 = vmatpush.msra.mxu0 0.0
    %1325 = vmatpush.msra.mxu0 0.0
    %1326 = vmatpush.msra.mxu0 0.0
    %1327 = vmatpush.msra.mxu0 0.0
    %1328 = vmatpush.msra.mxu0 0.0
    %1329 = vmatpush.msra.mxu0 0.0
    %1330 = vmatpush.msra.mxu0 0.0
    %1331 = vmatpush.msra.mxu0 0.0
    %1332 = vmatpush.msra.mxu0 0.0
    %1333 = vmatpush.msra.mxu0 0.0
    %1334 = vmatpush.msra.mxu0 0.0
    %1335 = vmatpush.msra.mxu0 %v1283
    %1336 = vmatpush.msra.mxu0 %v1282
    %1337 = vmatmul.f32.gmra.mxu0 %v1319
    %v1338 = vpop.f32.mrf.mxu0
    %v1339 = vadd.f32 0.0, %v1338
    %1340 = vdwg.mxu0
    %1341 = vmatpush.msra.mxu0 0.0
    %1342 = vmatpush.msra.mxu0 0.0
    %1343 = vmatpush.msra.mxu0 0.0
    %1344 = vmatpush.msra.mxu0 0.0
    %1345 = vmatpush.msra.mxu0 0.0
    %1346 = vmatpush.msra.mxu0 0.0
    %1347 = vmatpush.msra.mxu0 0.0
    %1348 = vmatpush.msra.mxu0 0.0
    %1349 = vmatpush.msra.mxu0 0.0
    %1350 = vmatpush.msra.mxu0 0.0
    %1351 = vmatpush.msra.mxu0 0.0
    %1352 = vmatpush.msra.mxu0 0.0
    %1353 = vmatpush.msra.mxu0 0.0
    %1354 = vmatpush.msra.mxu0 0.0
    %1355 = vmatpush.msra.mxu0 %v1285
    %1356 = vmatpush.msra.mxu0 %v1284
    %1357 = vmatmul.f32.gmra.mxu0 %v1319
    %v1358 = vpop.f32.mrf.mxu0
    %v1359 = vadd.f32 0.0, %v1358
    %1360 = vdwg.mxu0
    %v1361 = vadd.f32 %v30, %v1359
    %v1362 = vrcp.pop %v1361
    %v1363 = vmul.f32 %v1361, %v1362
    %v1364 = vsub.f32 2.0, %v1363
    %v1365 = vmul.f32 %v1362, %v1364
    %1367 = vset.pattern.permute.xlu0 0
    %1368 = vperm.xlu0 %1367, %v1365
    %v1369 = vpop.permute.xlu0 %1368
    %v1371 = vmul.f32 %v1361, %v1369
    %v1372 = vmul.f32 %v30, %v1369
    %v1373 = vsub.f32 %v1361, 1.0
    %v1374 = vperm.slane %v1373, 0
    %v1375 = vsel %vm150, %v1374, %v1361
    %1377 = vset.pattern.permute.xlu0 0
    %1378 = vperm.xlu0 %1377, %v1375
    %v1379 = vpop.permute.xlu0 %1378
    %v1381 = vperm.slane %v1371, 0
    %v1382 = vmul.f32 %v1379, %v1381
    %v1383 = vsub.f32 %v1361, %v1382
    %v1384 = vperm.slane %v1372, 0
    %v1385 = vmul.f32 %v1379, %v1384
    %v1386 = vsub.f32 %v30, %v1385
    %v1387 = vrcp.pop %v1383
    %v1388 = vmul.f32 %v1383, %v1387
    %v1389 = vsub.f32 2.0, %v1388
    %v1390 = vmul.f32 %v1387, %v1389
    %1392 = vset.pattern.permute.xlu0 1
    %1393 = vperm.xlu0 %1392, %v1390
    %v1394 = vpop.permute.xlu0 %1393
    %v1396 = vmul.f32 %v1383, %v1394
    %v1397 = vmul.f32 %v1386, %v1394
    %v1398 = vsub.f32 %v1383, 1.0
    %v1399 = vperm.slane %v1398, 1
    %v1400 = vsel %vm176, %v1399, %v1383
    %1402 = vset.pattern.permute.xlu0 1
    %1403 = vperm.xlu0 %1402, %v1400
    %v1404 = vpop.permute.xlu0 %1403
    %v1406 = vperm.slane %v1396, 1
    %v1407 = vmul.f32 %v1404, %v1406
    %v1408 = vsub.f32 %v1383, %v1407
    %v1409 = vperm.slane %v1397, 1
    %v1410 = vmul.f32 %v1404, %v1409
    %v1411 = vsub.f32 %v1386, %v1410
    %v1412 = vrcp.pop %v1408
    %v1413 = vmul.f32 %v1408, %v1412
    %v1414 = vsub.f32 2.0, %v1413
    %v1415 = vmul.f32 %v1412, %v1414
    %1417 = vset.pattern.permute.xlu0 2
    %1418 = vperm.xlu0 %1417, %v1415
    %v1419 = vpop.permute.xlu0 %1418
    %v1421 = vmul.f32 %v1408, %v1419
    %v1422 = vmul.f32 %v1411, %v1419
    %v1423 = vsub.f32 %v1408, 1.0
    %v1424 = vperm.slane %v1423, 2
    %v1425 = vsel %vm202, %v1424, %v1408
    %1427 = vset.pattern.permute.xlu0 2
    %1428 = vperm.xlu0 %1427, %v1425
    %v1429 = vpop.permute.xlu0 %1428
    %v1431 = vperm.slane %v1421, 2
    %v1432 = vmul.f32 %v1429, %v1431
    %v1433 = vsub.f32 %v1408, %v1432
    %v1434 = vperm.slane %v1422, 2
    %v1435 = vmul.f32 %v1429, %v1434
    %v1436 = vsub.f32 %v1411, %v1435
    %v1437 = vrcp.pop %v1433
    %v1438 = vmul.f32 %v1433, %v1437
    %v1439 = vsub.f32 2.0, %v1438
    %v1440 = vmul.f32 %v1437, %v1439
    %1442 = vset.pattern.permute.xlu0 3
    %1443 = vperm.xlu0 %1442, %v1440
    %v1444 = vpop.permute.xlu0 %1443
    %v1446 = vmul.f32 %v1433, %v1444
    %v1447 = vmul.f32 %v1436, %v1444
    %v1448 = vsub.f32 %v1433, 1.0
    %v1449 = vperm.slane %v1448, 3
    %v1450 = vsel %vm228, %v1449, %v1433
    %1452 = vset.pattern.permute.xlu0 3
    %1453 = vperm.xlu0 %1452, %v1450
    %v1454 = vpop.permute.xlu0 %1453
    %v1456 = vperm.slane %v1446, 3
    %v1457 = vmul.f32 %v1454, %v1456
    %v1458 = vsub.f32 %v1433, %v1457
    %v1459 = vperm.slane %v1447, 3
    %v1460 = vmul.f32 %v1454, %v1459
    %v1461 = vsub.f32 %v1436, %v1460
    %v1462 = vrcp.pop %v1458
    %v1463 = vmul.f32 %v1458, %v1462
    %v1464 = vsub.f32 2.0, %v1463
    %v1465 = vmul.f32 %v1462, %v1464
    %1467 = vset.pattern.permute.xlu0 4
    %1468 = vperm.xlu0 %1467, %v1465
    %v1469 = vpop.permute.xlu0 %1468
    %v1471 = vmul.f32 %v1458, %v1469
    %v1472 = vmul.f32 %v1461, %v1469
    %v1473 = vsub.f32 %v1458, 1.0
    %v1474 = vperm.slane %v1473, 4
    %v1475 = vsel %vm254, %v1474, %v1458
    %1477 = vset.pattern.permute.xlu0 4
    %1478 = vperm.xlu0 %1477, %v1475
    %v1479 = vpop.permute.xlu0 %1478
    %v1481 = vperm.slane %v1471, 4
    %v1482 = vmul.f32 %v1479, %v1481
    %v1483 = vsub.f32 %v1458, %v1482
    %v1484 = vperm.slane %v1472, 4
    %v1485 = vmul.f32 %v1479, %v1484
    %v1486 = vsub.f32 %v1461, %v1485
    %v1487 = vrcp.pop %v1483
    %v1488 = vmul.f32 %v1483, %v1487
    %v1489 = vsub.f32 2.0, %v1488
    %v1490 = vmul.f32 %v1487, %v1489
    %1492 = vset.pattern.permute.xlu0 5
    %1493 = vperm.xlu0 %1492, %v1490
    %v1494 = vpop.permute.xlu0 %1493
    %v1496 = vmul.f32 %v1486, %v1494
    %v1497 = vsub.f32 %v1483, 1.0
    %v1498 = vperm.slane %v1497, 5
    %v1499 = vsel %vm279, %v1498, %v1483
    %1501 = vset.pattern.permute.xlu0 5
    %1502 = vperm.xlu0 %1501, %v1499
    %v1503 = vpop.permute.xlu0 %1502
    %v1505 = vperm.slane %v1496, 5
    %v1506 = vmul.f32 %v1503, %v1505
    %v1507 = vsub.f32 %v1486, %v1506
    %v1509 = vsel %vm291, %v1359, 0
    %1511 = vmatpush.msra.mxu0 0.0
    %1512 = vmatpush.msra.mxu0 0.0
    %1513 = vmatpush.msra.mxu0 0.0
    %1514 = vmatpush.msra.mxu0 0.0
    %1515 = vmatpush.msra.mxu0 0.0
    %1516 = vmatpush.msra.mxu0 0.0
    %1517 = vmatpush.msra.mxu0 0.0
    %1518 = vmatpush.msra.mxu0 0.0
    %1519 = vmatpush.msra.mxu0 0.0
    %1520 = vmatpush.msra.mxu0 0.0
    %1521 = vmatpush.msra.mxu0 0.0
    %1522 = vmatpush.msra.mxu0 0.0
    %1523 = vmatpush.msra.mxu0 0.0
    %1524 = vmatpush.msra.mxu0 0.0
    %1525 = vmatpush.msra.mxu0 0.0
    %1526 = vmatpush.msra.mxu0 %v1507
    %1527 = vmatmul.f32.gmra.mxu0 %v1509
    %v1528 = vpop.f32.mrf.mxu0
    %v1529 = vadd.f32 0.0, %v1528
    %1530 = vdwg.mxu0
    %v1532 = vsel %vm291, %v1529, 0
    %1534 = vmatpush.msra.mxu0 0.0
    %1535 = vmatpush.msra.mxu0 0.0
    %1536 = vmatpush.msra.mxu0 0.0
    %1537 = vmatpush.msra.mxu0 0.0
    %1538 = vmatpush.msra.mxu0 0.0
    %1539 = vmatpush.msra.mxu0 0.0
    %1540 = vmatpush.msra.mxu0 0.0
    %1541 = vmatpush.msra.mxu0 0.0
    %1542 = vmatpush.msra.mxu0 0.0
    %1543 = vmatpush.msra.mxu0 0.0
    %1544 = vmatpush.msra.mxu0 0.0
    %1545 = vmatpush.msra.mxu0 0.0
    %1546 = vmatpush.msra.mxu0 0.0
    %1547 = vmatpush.msra.mxu0 0.0
    %1548 = vmatpush.msra.mxu0 0.0
    %1549 = vmatpush.msra.mxu0 %v1339
    %1550 = vmatmul.f32.gmra.mxu0 %v1532
    %v1551 = vpop.f32.mrf.mxu0
    %v1552 = vadd.f32 0.0, %v1551
    %1553 = vdwg.mxu0
    %v1554 = vsub.f32 %v1339, %v1552
    %1555 = vmatpush.msra.mxu0 0.0
    %1556 = vmatpush.msra.mxu0 0.0
    %1557 = vmatpush.msra.mxu0 0.0
    %1558 = vmatpush.msra.mxu0 0.0
    %1559 = vmatpush.msra.mxu0 0.0
    %1560 = vmatpush.msra.mxu0 0.0
    %1561 = vmatpush.msra.mxu0 0.0
    %1562 = vmatpush.msra.mxu0 0.0
    %1563 = vmatpush.msra.mxu0 0.0
    %1564 = vmatpush.msra.mxu0 0.0
    %1565 = vmatpush.msra.mxu0 0.0
    %1566 = vmatpush.msra.mxu0 0.0
    %1567 = vmatpush.msra.mxu0 0.0
    %1568 = vmatpush.msra.mxu0 0.0
    %1569 = vmatpush.msra.mxu0 0.0
    %1570 = vmatpush.msra.mxu0 %v1359
    %1571 = vmatmul.f32.gmra.mxu0 %v1532
    %v1572 = vpop.f32.mrf.mxu0
    %v1573 = vadd.f32 0.0, %v1572
    %1574 = vdwg.mxu0
    %v1575 = vsub.f32 %v1359, %v1573
    %v1576 = vsub.f32 %v30, %v1575
    %v1577 = vmul.f32 %v1576, 32.0
    %v1579 = vsel %vm33, %v1554, 0
    %1581 = vmatpush.xpose.msra.mxu0 0.0
    %1582 = vmatpush.xpose.msra.mxu0 0.0
    %1583 = vmatpush.xpose.msra.mxu0 0.0
    %1584 = vmatpush.xpose.msra.mxu0 0.0
    %1585 = vmatpush.xpose.msra.mxu0 0.0
    %1586 = vmatpush.xpose.msra.mxu0 0.0
    %1587 = vmatpush.xpose.msra.mxu0 0.0
    %1588 = vmatpush.xpose.msra.mxu0 0.0
    %1589 = vmatpush.xpose.msra.mxu0 0.0
    %1590 = vmatpush.xpose.msra.mxu0 0.0
    %1591 = vmatpush.xpose.msra.mxu0 0.0
    %1592 = vmatpush.xpose.msra.mxu0 0.0
    %1593 = vmatpush.xpose.msra.mxu0 0.0
    %1594 = vmatpush.xpose.msra.mxu0 0.0
    %1595 = vmatpush.xpose.msra.mxu0 0.0
    %1596 = vmatpush.xpose.msra.mxu0 %v1579
    %1597 = vmatmul.f32.gmra.mxu0 %v1579
    %v1598 = vpop.f32.mrf.mxu0
    %v1599 = vadd.f32 0.0, %v1598
    %1600 = vdwg.mxu0
    %v1601 = vadd.f32 %v1577, %v1599
    %1602 = vmatpush.msra.mxu0 0.0
    %1603 = vmatpush.msra.mxu0 0.0
    %1604 = vmatpush.msra.mxu0 0.0
    %1605 = vmatpush.msra.mxu0 0.0
    %1606 = vmatpush.msra.mxu0 0.0
    %1607 = vmatpush.msra.mxu0 0.0
    %1608 = vmatpush.msra.mxu0 0.0
    %1609 = vmatpush.msra.mxu0 0.0
    %1610 = vmatpush.msra.mxu0 0.0
    %1611 = vmatpush.msra.mxu0 0.0
    %1612 = vmatpush.msra.mxu0 0.0
    %1613 = vmatpush.msra.mxu0 0.0
    %1614 = vmatpush.msra.mxu0 0.0
    %1615 = vmatpush.msra.mxu0 0.0
    %1616 = vmatpush.msra.mxu0 0.0
    %1617 = vmatpush.msra.mxu0 %v1554
    %1618 = vmatmul.f32.gmra.mxu0 %v1234
    %v1619 = vpop.f32.mrf.mxu0
    %v1620 = vadd.f32 0.0, %v1619
    %1621 = vmatmul.f32.gmra.mxu0 %v1237
    %v1622 = vpop.f32.mrf.mxu0
    %v1623 = vadd.f32 0.0, %v1622
    %1624 = vdwg.mxu0
    %v1625 = vsub.f32 %v982, %v1620
    %v1626 = vsub.f32 %v983, %v1623
    %v1627 = vmul.f32 %v1282, %v1625
    %v1628 = vmul.f32 %v1283, %v1626
    %v1629 = vsel %vm33, %v1627, 0.0
    %v1630 = vsel %vm33, %v1628, 0.0
    %v1631 = vadd.f32 %v1629, %v1630
    %1632 = vadd.xlane.f32.xlu0 %v1631
    %v1633 = vpop.xlane.xlu0 %1632
    %v1634 = vrot.slane %v1633, 4
    %v1635 = vadd.f32 %v1633, %v1634
    %v1636 = vrot.slane %v1635, 2
    %v1637 = vadd.f32 %v1635, %v1636
    %v1638 = vrot.slane %v1637, 1
    %v1639 = vadd.f32 %v1637, %v1638
    %s1640 = vtos %v1639
    %v1641 = vmul.f32 %v1359, %v1601
    %v1642 = vsel %vm291, %v1641, 0.0
    %1643 = vadd.xlane.f32.xlu0 %v1642
    %v1644 = vpop.xlane.xlu0 %1643
    %v1645 = vrot.slane %v1644, 4
    %v1646 = vadd.f32 %v1644, %v1645
    %v1647 = vrot.slane %v1646, 2
    %v1648 = vadd.f32 %v1646, %v1647
    %v1649 = vrot.slane %v1648, 1
    %v1650 = vadd.f32 %v1648, %v1649
    %s1651 = vtos %v1650
    %s1652 = smul.f32 %s1651, 0.5
    %s1653 = sadd.f32 %s1640, %s1652
    %v1654 = vlog2.pop %v1272
    %v1655 = vmul.f32 %v1654, 0.6931472
    %v1656 = vlog2.pop %v1273
    %v1657 = vmul.f32 %v1656, 0.6931472
    %v1658 = vsel %vm1017, %v1655, 0.0
    %v1659 = vsel %vm1017, %v1657, 0.0
    %v1660 = vadd.f32 %v1658, %v1659
    %1661 = vadd.xlane.f32.xlu0 %v1660
    %v1662 = vpop.xlane.xlu0 %1661
    %v1663 = vrot.slane %v1662, 4
    %v1664 = vadd.f32 %v1662, %v1663
    %v1665 = vrot.slane %v1664, 2
    %v1666 = vadd.f32 %v1664, %v1665
    %v1667 = vrot.slane %v1666, 1
    %v1668 = vadd.f32 %v1666, %v1667
    %s1669 = vtos %v1668
    %s1670 = smul.f32 %s1669, -16.0
    %s1671 = ssub.f32 %s1670, %s1653
    %s1672 = ssub.f32 0.0, %s1671
    %s1673 = scalar_lea.smem [#allocation2], 1
    %1674 = sst [smem:[%s1673]] %s1672
    %1675 = vmatpush.xpose.msra.mxu0 0.0
    %1676 = vmatpush.xpose.msra.mxu0 0.0
    %1677 = vmatpush.xpose.msra.mxu0 0.0
    %1678 = vmatpush.xpose.msra.mxu0 0.0
    %1679 = vmatpush.xpose.msra.mxu0 0.0
    %1680 = vmatpush.xpose.msra.mxu0 0.0
    %1681 = vmatpush.xpose.msra.mxu0 0.0
    %1682 = vmatpush.xpose.msra.mxu0 0.0
    %1683 = vmatpush.xpose.msra.mxu0 0.0
    %1684 = vmatpush.xpose.msra.mxu0 0.0
    %1685 = vmatpush.xpose.msra.mxu0 0.0
    %1686 = vmatpush.xpose.msra.mxu0 0.0
    %1687 = vmatpush.xpose.msra.mxu0 0.0
    %1688 = vmatpush.xpose.msra.mxu0 0.0
    %1689 = vmatpush.xpose.msra.mxu0 0.0
    %1690 = vmatpush.xpose.msra.mxu0 %v1579
    %1691 = vmatmul.f32.gmra.mxu0 %v387
    %v1692 = vpop.f32.mrf.mxu0
    %v1693 = vadd.f32 0.0, %v1692
    %1694 = vmatmul.f32.gmra.mxu0 %v390
    %v1695 = vpop.f32.mrf.mxu0
    %v1696 = vadd.f32 0.0, %v1695
    %1697 = vdwg.mxu0
    %v1698 = vrcp.pop %v1601
    %v1699 = vmul.f32 %v1601, %v1698
    %v1700 = vsub.f32 2.0, %v1699
    %v1701 = vmul.f32 %v1698, %v1700
    %1703 = vset.pattern.permute.xlu0 0
    %1704 = vperm.xlu0 %1703, %v1701
    %v1705 = vpop.permute.xlu0 %1704
    %v1707 = vmul.f32 %v1601, %v1705
    %v1708 = vmul.f32 %v30, %v1705
    %v1709 = vsub.f32 %v1601, 1.0
    %v1710 = vperm.slane %v1709, 0
    %v1711 = vsel %vm150, %v1710, %v1601
    %1713 = vset.pattern.permute.xlu0 0
    %1714 = vperm.xlu0 %1713, %v1711
    %v1715 = vpop.permute.xlu0 %1714
    %v1717 = vperm.slane %v1707, 0
    %v1718 = vmul.f32 %v1715, %v1717
    %v1719 = vsub.f32 %v1601, %v1718
    %v1720 = vperm.slane %v1708, 0
    %v1721 = vmul.f32 %v1715, %v1720
    %v1722 = vsub.f32 %v30, %v1721
    %v1723 = vrcp.pop %v1719
    %v1724 = vmul.f32 %v1719, %v1723
    %v1725 = vsub.f32 2.0, %v1724
    %v1726 = vmul.f32 %v1723, %v1725
    %1728 = vset.pattern.permute.xlu0 1
    %1729 = vperm.xlu0 %1728, %v1726
    %v1730 = vpop.permute.xlu0 %1729
    %v1732 = vmul.f32 %v1719, %v1730
    %v1733 = vmul.f32 %v1722, %v1730
    %v1734 = vsub.f32 %v1719, 1.0
    %v1735 = vperm.slane %v1734, 1
    %v1736 = vsel %vm176, %v1735, %v1719
    %1738 = vset.pattern.permute.xlu0 1
    %1739 = vperm.xlu0 %1738, %v1736
    %v1740 = vpop.permute.xlu0 %1739
    %v1742 = vperm.slane %v1732, 1
    %v1743 = vmul.f32 %v1740, %v1742
    %v1744 = vsub.f32 %v1719, %v1743
    %v1745 = vperm.slane %v1733, 1
    %v1746 = vmul.f32 %v1740, %v1745
    %v1747 = vsub.f32 %v1722, %v1746
    %v1748 = vrcp.pop %v1744
    %v1749 = vmul.f32 %v1744, %v1748
    %v1750 = vsub.f32 2.0, %v1749
    %v1751 = vmul.f32 %v1748, %v1750
    %1753 = vset.pattern.permute.xlu0 2
    %1754 = vperm.xlu0 %1753, %v1751
    %v1755 = vpop.permute.xlu0 %1754
    %v1757 = vmul.f32 %v1744, %v1755
    %v1758 = vmul.f32 %v1747, %v1755
    %v1759 = vsub.f32 %v1744, 1.0
    %v1760 = vperm.slane %v1759, 2
    %v1761 = vsel %vm202, %v1760, %v1744
    %1763 = vset.pattern.permute.xlu0 2
    %1764 = vperm.xlu0 %1763, %v1761
    %v1765 = vpop.permute.xlu0 %1764
    %v1767 = vperm.slane %v1757, 2
    %v1768 = vmul.f32 %v1765, %v1767
    %v1769 = vsub.f32 %v1744, %v1768
    %v1770 = vperm.slane %v1758, 2
    %v1771 = vmul.f32 %v1765, %v1770
    %v1772 = vsub.f32 %v1747, %v1771
    %v1773 = vrcp.pop %v1769
    %v1774 = vmul.f32 %v1769, %v1773
    %v1775 = vsub.f32 2.0, %v1774
    %v1776 = vmul.f32 %v1773, %v1775
    %1778 = vset.pattern.permute.xlu0 3
    %1779 = vperm.xlu0 %1778, %v1776
    %v1780 = vpop.permute.xlu0 %1779
    %v1782 = vmul.f32 %v1769, %v1780
    %v1783 = vmul.f32 %v1772, %v1780
    %v1784 = vsub.f32 %v1769, 1.0
    %v1785 = vperm.slane %v1784, 3
    %v1786 = vsel %vm228, %v1785, %v1769
    %1788 = vset.pattern.permute.xlu0 3
    %1789 = vperm.xlu0 %1788, %v1786
    %v1790 = vpop.permute.xlu0 %1789
    %v1792 = vperm.slane %v1782, 3
    %v1793 = vmul.f32 %v1790, %v1792
    %v1794 = vsub.f32 %v1769, %v1793
    %v1795 = vperm.slane %v1783, 3
    %v1796 = vmul.f32 %v1790, %v1795
    %v1797 = vsub.f32 %v1772, %v1796
    %v1798 = vrcp.pop %v1794
    %v1799 = vmul.f32 %v1794, %v1798
    %v1800 = vsub.f32 2.0, %v1799
    %v1801 = vmul.f32 %v1798, %v1800
    %1803 = vset.pattern.permute.xlu0 4
    %1804 = vperm.xlu0 %1803, %v1801
    %v1805 = vpop.permute.xlu0 %1804
    %v1807 = vmul.f32 %v1794, %v1805
    %v1808 = vmul.f32 %v1797, %v1805
    %v1809 = vsub.f32 %v1794, 1.0
    %v1810 = vperm.slane %v1809, 4
    %v1811 = vsel %vm254, %v1810, %v1794
    %1813 = vset.pattern.permute.xlu0 4
    %1814 = vperm.xlu0 %1813, %v1811
    %v1815 = vpop.permute.xlu0 %1814
    %v1817 = vperm.slane %v1807, 4
    %v1818 = vmul.f32 %v1815, %v1817
    %v1819 = vsub.f32 %v1794, %v1818
    %v1820 = vperm.slane %v1808, 4
    %v1821 = vmul.f32 %v1815, %v1820
    %v1822 = vsub.f32 %v1797, %v1821
    %v1823 = vrcp.pop %v1819
    %v1824 = vmul.f32 %v1819, %v1823
    %v1825 = vsub.f32 2.0, %v1824
    %v1826 = vmul.f32 %v1823, %v1825
    %1828 = vset.pattern.permute.xlu0 5
    %1829 = vperm.xlu0 %1828, %v1826
    %v1830 = vpop.permute.xlu0 %1829
    %v1832 = vmul.f32 %v1822, %v1830
    %v1833 = vsub.f32 %v1819, 1.0
    %v1834 = vperm.slane %v1833, 5
    %v1835 = vsel %vm279, %v1834, %v1819
    %1837 = vset.pattern.permute.xlu0 5
    %1838 = vperm.xlu0 %1837, %v1835
    %v1839 = vpop.permute.xlu0 %1838
    %v1841 = vperm.slane %v1832, 5
    %v1842 = vmul.f32 %v1839, %v1841
    %v1843 = vsub.f32 %v1822, %v1842
    %v1845 = vsel %vm291, %v1693, 0
    %v1848 = vsel %vm291, %v1696, 0
    %1850 = vmatpush.msra.mxu0 0.0
    %1851 = vmatpush.msra.mxu0 0.0
    %1852 = vmatpush.msra.mxu0 0.0
    %1853 = vmatpush.msra.mxu0 0.0
    %1854 = vmatpush.msra.mxu0 0.0
    %1855 = vmatpush.msra.mxu0 0.0
    %1856 = vmatpush.msra.mxu0 0.0
    %1857 = vmatpush.msra.mxu0 0.0
    %1858 = vmatpush.msra.mxu0 0.0
    %1859 = vmatpush.msra.mxu0 0.0
    %1860 = vmatpush.msra.mxu0 0.0
    %1861 = vmatpush.msra.mxu0 0.0
    %1862 = vmatpush.msra.mxu0 0.0
    %1863 = vmatpush.msra.mxu0 0.0
    %1864 = vmatpush.msra.mxu0 0.0
    %1865 = vmatpush.msra.mxu0 %v1843
    %1866 = vmatmul.f32.gmra.mxu0 %v1845
    %v1867 = vpop.f32.mrf.mxu0
    %v1868 = vadd.f32 0.0, %v1867
    %1869 = vmatmul.f32.gmra.mxu0 %v1848
    %v1870 = vpop.f32.mrf.mxu0
    %v1871 = vadd.f32 0.0, %v1870
    %1872 = vdwg.mxu0
    %v1874 = vsel %vm291, %v1868, 0
    %v1877 = vsel %vm291, %v1871, 0
    %1879 = vmatpush.msra.mxu0 0.0
    %1880 = vmatpush.msra.mxu0 0.0
    %1881 = vmatpush.msra.mxu0 0.0
    %1882 = vmatpush.msra.mxu0 0.0
    %1883 = vmatpush.msra.mxu0 0.0
    %1884 = vmatpush.msra.mxu0 0.0
    %1885 = vmatpush.msra.mxu0 0.0
    %1886 = vmatpush.msra.mxu0 0.0
    %1887 = vmatpush.msra.mxu0 0.0
    %1888 = vmatpush.msra.mxu0 0.0
    %1889 = vmatpush.msra.mxu0 0.0
    %1890 = vmatpush.msra.mxu0 0.0
    %1891 = vmatpush.msra.mxu0 0.0
    %1892 = vmatpush.msra.mxu0 0.0
    %1893 = vmatpush.msra.mxu0 0.0
    %1894 = vmatpush.msra.mxu0 %v1554
    %1895 = vmatmul.f32.gmra.mxu0 %v1874
    %v1896 = vpop.f32.mrf.mxu0
    %v1897 = vadd.f32 0.0, %v1896
    %1898 = vmatmul.f32.gmra.mxu0 %v1877
    %v1899 = vpop.f32.mrf.mxu0
    %v1900 = vadd.f32 0.0, %v1899
    %1901 = vdwg.mxu0
    %v1902 = vmul.f32 %v1897, %v18
    %v1903 = vmul.f32 %v1900, %v19
    %v1904 = vsel %vm33, %v1902, 0.0
    %1905 = vadd.xlane.f32.xlu0 %v1904
    %v1906 = vpop.xlane.xlu0 %1905
    %v1907 = vsel %vm33, %v1903, 0.0
    %1908 = vadd.xlane.f32.xlu0 %v1907
    %v1909 = vpop.xlane.xlu0 %1908
    %v1910 = vsub.f32 %v36, %v1906
    %v1911 = vsub.f32 %v39, %v1909
    %v1912 = vmul.f32 %v1910, 0.03125
    %v1913 = vmul.f32 %v1911, 0.03125
    %v1914 = vrcp.pop %v1912
    %v1915 = vrcp.pop %v1913
    %v1916 = vmul.f32 %v1912, %v1914
    %v1917 = vmul.f32 %v1913, %v1915
    %v1918 = vsub.f32 2.0, %v1916
    %v1919 = vsub.f32 2.0, %v1917
    %v1920 = vmul.f32 %v1914, %v1918
    %v1921 = vmul.f32 %v1915, %v1919
    %v1922 = vmul.f32 %v18, %v1920
    %v1923 = vmul.f32 %v19, %v1921
    %v1924 = vmul.f32 %v1868, %v1920
    %v1925 = vmul.f32 %v1871, %v1921
    %1926 = vxpose.xlu0.b32.start [1/16] %v1868, 128
    %1927 = vxpose.xlu0.b32.cont [2/16] %v1871, 128
    %1928 = vxpose.xlu0.b32.cont [3/16] 0.0, 128
    %1929 = vxpose.xlu0.b32.cont [4/16] 0.0, 128
    %1930 = vxpose.xlu0.b32.cont [5/16] 0.0, 128
    %1931 = vxpose.xlu0.b32.cont [6/16] 0.0, 128
    %1932 = vxpose.xlu0.b32.cont [7/16] 0.0, 128
    %1933 = vxpose.xlu0.b32.cont [8/16] 0.0, 128
    %1934 = vxpose.xlu0.b32.cont [9/16] 0.0, 128
    %1935 = vxpose.xlu0.b32.cont [10/16] 0.0, 128
    %1936 = vxpose.xlu0.b32.cont [11/16] 0.0, 128
    %1937 = vxpose.xlu0.b32.cont [12/16] 0.0, 128
    %1938 = vxpose.xlu0.b32.cont [13/16] 0.0, 128
    %1939 = vxpose.xlu0.b32.cont [14/16] 0.0, 128
    %1940 = vxpose.xlu0.b32.cont [15/16] 0.0, 128
    %1941 = vxpose.xlu0.b32.end [16/16] 0.0, 128
    %v1942 = vpop.trf.xlu0
    %v1943 = vpop.trf.xlu0
    %v1944 = vpop.trf.xlu0
    %v1945 = vpop.trf.xlu0
    %v1946 = vpop.trf.xlu0
    %v1947 = vpop.trf.xlu0
    %v1948 = vpop.trf.xlu0
    %v1949 = vpop.trf.xlu0
    %v1950 = vpop.trf.xlu0
    %v1951 = vpop.trf.xlu0
    %v1952 = vpop.trf.xlu0
    %v1953 = vpop.trf.xlu0
    %v1954 = vpop.trf.xlu0
    %v1955 = vpop.trf.xlu0
    %v1956 = vpop.trf.xlu0
    %v1957 = vpop.trf.xlu0
    %v1959 = vsel %vm94, %v1942, 0
    %1961 = vmatpush.msra.mxu0 0.0
    %1962 = vmatpush.msra.mxu0 0.0
    %1963 = vmatpush.msra.mxu0 0.0
    %1964 = vmatpush.msra.mxu0 0.0
    %1965 = vmatpush.msra.mxu0 0.0
    %1966 = vmatpush.msra.mxu0 0.0
    %1967 = vmatpush.msra.mxu0 0.0
    %1968 = vmatpush.msra.mxu0 0.0
    %1969 = vmatpush.msra.mxu0 0.0
    %1970 = vmatpush.msra.mxu0 0.0
    %1971 = vmatpush.msra.mxu0 0.0
    %1972 = vmatpush.msra.mxu0 0.0
    %1973 = vmatpush.msra.mxu0 0.0
    %1974 = vmatpush.msra.mxu0 0.0
    %1975 = vmatpush.msra.mxu0 %v1923
    %1976 = vmatpush.msra.mxu0 %v1922
    %1977 = vmatmul.f32.gmra.mxu0 %v1959
    %v1978 = vpop.f32.mrf.mxu0
    %v1979 = vadd.f32 0.0, %v1978
    %1980 = vdwg.mxu0
    %1981 = vmatpush.msra.mxu0 0.0
    %1982 = vmatpush.msra.mxu0 0.0
    %1983 = vmatpush.msra.mxu0 0.0
    %1984 = vmatpush.msra.mxu0 0.0
    %1985 = vmatpush.msra.mxu0 0.0
    %1986 = vmatpush.msra.mxu0 0.0
    %1987 = vmatpush.msra.mxu0 0.0
    %1988 = vmatpush.msra.mxu0 0.0
    %1989 = vmatpush.msra.mxu0 0.0
    %1990 = vmatpush.msra.mxu0 0.0
    %1991 = vmatpush.msra.mxu0 0.0
    %1992 = vmatpush.msra.mxu0 0.0
    %1993 = vmatpush.msra.mxu0 0.0
    %1994 = vmatpush.msra.mxu0 0.0
    %1995 = vmatpush.msra.mxu0 %v1925
    %1996 = vmatpush.msra.mxu0 %v1924
    %1997 = vmatmul.f32.gmra.mxu0 %v1959
    %v1998 = vpop.f32.mrf.mxu0
    %v1999 = vadd.f32 0.0, %v1998
    %2000 = vdwg.mxu0
    %v2001 = vadd.f32 %v30, %v1999
    %v2002 = vrcp.pop %v2001
    %v2003 = vmul.f32 %v2001, %v2002
    %v2004 = vsub.f32 2.0, %v2003
    %v2005 = vmul.f32 %v2002, %v2004
    %2007 = vset.pattern.permute.xlu0 0
    %2008 = vperm.xlu0 %2007, %v2005
    %v2009 = vpop.permute.xlu0 %2008
    %v2011 = vmul.f32 %v2001, %v2009
    %v2012 = vmul.f32 %v30, %v2009
    %v2013 = vsub.f32 %v2001, 1.0
    %v2014 = vperm.slane %v2013, 0
    %v2015 = vsel %vm150, %v2014, %v2001
    %2017 = vset.pattern.permute.xlu0 0
    %2018 = vperm.xlu0 %2017, %v2015
    %v2019 = vpop.permute.xlu0 %2018
    %v2021 = vperm.slane %v2011, 0
    %v2022 = vmul.f32 %v2019, %v2021
    %v2023 = vsub.f32 %v2001, %v2022
    %v2024 = vperm.slane %v2012, 0
    %v2025 = vmul.f32 %v2019, %v2024
    %v2026 = vsub.f32 %v30, %v2025
    %v2027 = vrcp.pop %v2023
    %v2028 = vmul.f32 %v2023, %v2027
    %v2029 = vsub.f32 2.0, %v2028
    %v2030 = vmul.f32 %v2027, %v2029
    %2032 = vset.pattern.permute.xlu0 1
    %2033 = vperm.xlu0 %2032, %v2030
    %v2034 = vpop.permute.xlu0 %2033
    %v2036 = vmul.f32 %v2023, %v2034
    %v2037 = vmul.f32 %v2026, %v2034
    %v2038 = vsub.f32 %v2023, 1.0
    %v2039 = vperm.slane %v2038, 1
    %v2040 = vsel %vm176, %v2039, %v2023
    %2042 = vset.pattern.permute.xlu0 1
    %2043 = vperm.xlu0 %2042, %v2040
    %v2044 = vpop.permute.xlu0 %2043
    %v2046 = vperm.slane %v2036, 1
    %v2047 = vmul.f32 %v2044, %v2046
    %v2048 = vsub.f32 %v2023, %v2047
    %v2049 = vperm.slane %v2037, 1
    %v2050 = vmul.f32 %v2044, %v2049
    %v2051 = vsub.f32 %v2026, %v2050
    %v2052 = vrcp.pop %v2048
    %v2053 = vmul.f32 %v2048, %v2052
    %v2054 = vsub.f32 2.0, %v2053
    %v2055 = vmul.f32 %v2052, %v2054
    %2057 = vset.pattern.permute.xlu0 2
    %2058 = vperm.xlu0 %2057, %v2055
    %v2059 = vpop.permute.xlu0 %2058
    %v2061 = vmul.f32 %v2048, %v2059
    %v2062 = vmul.f32 %v2051, %v2059
    %v2063 = vsub.f32 %v2048, 1.0
    %v2064 = vperm.slane %v2063, 2
    %v2065 = vsel %vm202, %v2064, %v2048
    %2067 = vset.pattern.permute.xlu0 2
    %2068 = vperm.xlu0 %2067, %v2065
    %v2069 = vpop.permute.xlu0 %2068
    %v2071 = vperm.slane %v2061, 2
    %v2072 = vmul.f32 %v2069, %v2071
    %v2073 = vsub.f32 %v2048, %v2072
    %v2074 = vperm.slane %v2062, 2
    %v2075 = vmul.f32 %v2069, %v2074
    %v2076 = vsub.f32 %v2051, %v2075
    %v2077 = vrcp.pop %v2073
    %v2078 = vmul.f32 %v2073, %v2077
    %v2079 = vsub.f32 2.0, %v2078
    %v2080 = vmul.f32 %v2077, %v2079
    %2082 = vset.pattern.permute.xlu0 3
    %2083 = vperm.xlu0 %2082, %v2080
    %v2084 = vpop.permute.xlu0 %2083
    %v2086 = vmul.f32 %v2073, %v2084
    %v2087 = vmul.f32 %v2076, %v2084
    %v2088 = vsub.f32 %v2073, 1.0
    %v2089 = vperm.slane %v2088, 3
    %v2090 = vsel %vm228, %v2089, %v2073
    %2092 = vset.pattern.permute.xlu0 3
    %2093 = vperm.xlu0 %2092, %v2090
    %v2094 = vpop.permute.xlu0 %2093
    %v2096 = vperm.slane %v2086, 3
    %v2097 = vmul.f32 %v2094, %v2096
    %v2098 = vsub.f32 %v2073, %v2097
    %v2099 = vperm.slane %v2087, 3
    %v2100 = vmul.f32 %v2094, %v2099
    %v2101 = vsub.f32 %v2076, %v2100
    %v2102 = vrcp.pop %v2098
    %v2103 = vmul.f32 %v2098, %v2102
    %v2104 = vsub.f32 2.0, %v2103
    %v2105 = vmul.f32 %v2102, %v2104
    %2107 = vset.pattern.permute.xlu0 4
    %2108 = vperm.xlu0 %2107, %v2105
    %v2109 = vpop.permute.xlu0 %2108
    %v2111 = vmul.f32 %v2098, %v2109
    %v2112 = vmul.f32 %v2101, %v2109
    %v2113 = vsub.f32 %v2098, 1.0
    %v2114 = vperm.slane %v2113, 4
    %v2115 = vsel %vm254, %v2114, %v2098
    %2117 = vset.pattern.permute.xlu0 4
    %2118 = vperm.xlu0 %2117, %v2115
    %v2119 = vpop.permute.xlu0 %2118
    %v2121 = vperm.slane %v2111, 4
    %v2122 = vmul.f32 %v2119, %v2121
    %v2123 = vsub.f32 %v2098, %v2122
    %v2124 = vperm.slane %v2112, 4
    %v2125 = vmul.f32 %v2119, %v2124
    %v2126 = vsub.f32 %v2101, %v2125
    %v2127 = vrcp.pop %v2123
    %v2128 = vmul.f32 %v2123, %v2127
    %v2129 = vsub.f32 2.0, %v2128
    %v2130 = vmul.f32 %v2127, %v2129
    %2132 = vset.pattern.permute.xlu0 5
    %2133 = vperm.xlu0 %2132, %v2130
    %v2134 = vpop.permute.xlu0 %2133
    %v2136 = vmul.f32 %v2126, %v2134
    %v2137 = vsub.f32 %v2123, 1.0
    %v2138 = vperm.slane %v2137, 5
    %v2139 = vsel %vm279, %v2138, %v2123
    %2141 = vset.pattern.permute.xlu0 5
    %2142 = vperm.xlu0 %2141, %v2139
    %v2143 = vpop.permute.xlu0 %2142
    %v2145 = vperm.slane %v2136, 5
    %v2146 = vmul.f32 %v2143, %v2145
    %v2147 = vsub.f32 %v2126, %v2146
    %v2149 = vsel %vm291, %v1999, 0
    %2151 = vmatpush.msra.mxu0 0.0
    %2152 = vmatpush.msra.mxu0 0.0
    %2153 = vmatpush.msra.mxu0 0.0
    %2154 = vmatpush.msra.mxu0 0.0
    %2155 = vmatpush.msra.mxu0 0.0
    %2156 = vmatpush.msra.mxu0 0.0
    %2157 = vmatpush.msra.mxu0 0.0
    %2158 = vmatpush.msra.mxu0 0.0
    %2159 = vmatpush.msra.mxu0 0.0
    %2160 = vmatpush.msra.mxu0 0.0
    %2161 = vmatpush.msra.mxu0 0.0
    %2162 = vmatpush.msra.mxu0 0.0
    %2163 = vmatpush.msra.mxu0 0.0
    %2164 = vmatpush.msra.mxu0 0.0
    %2165 = vmatpush.msra.mxu0 0.0
    %2166 = vmatpush.msra.mxu0 %v2147
    %2167 = vmatmul.f32.gmra.mxu0 %v2149
    %v2168 = vpop.f32.mrf.mxu0
    %v2169 = vadd.f32 0.0, %v2168
    %2170 = vdwg.mxu0
    %v2172 = vsel %vm291, %v2169, 0
    %2174 = vmatpush.msra.mxu0 0.0
    %2175 = vmatpush.msra.mxu0 0.0
    %2176 = vmatpush.msra.mxu0 0.0
    %2177 = vmatpush.msra.mxu0 0.0
    %2178 = vmatpush.msra.mxu0 0.0
    %2179 = vmatpush.msra.mxu0 0.0
    %2180 = vmatpush.msra.mxu0 0.0
    %2181 = vmatpush.msra.mxu0 0.0
    %2182 = vmatpush.msra.mxu0 0.0
    %2183 = vmatpush.msra.mxu0 0.0
    %2184 = vmatpush.msra.mxu0 0.0
    %2185 = vmatpush.msra.mxu0 0.0
    %2186 = vmatpush.msra.mxu0 0.0
    %2187 = vmatpush.msra.mxu0 0.0
    %2188 = vmatpush.msra.mxu0 0.0
    %2189 = vmatpush.msra.mxu0 %v1979
    %2190 = vmatmul.f32.gmra.mxu0 %v2172
    %v2191 = vpop.f32.mrf.mxu0
    %v2192 = vadd.f32 0.0, %v2191
    %2193 = vdwg.mxu0
    %v2194 = vsub.f32 %v1979, %v2192
    %2195 = vmatpush.msra.mxu0 0.0
    %2196 = vmatpush.msra.mxu0 0.0
    %2197 = vmatpush.msra.mxu0 0.0
    %2198 = vmatpush.msra.mxu0 0.0
    %2199 = vmatpush.msra.mxu0 0.0
    %2200 = vmatpush.msra.mxu0 0.0
    %2201 = vmatpush.msra.mxu0 0.0
    %2202 = vmatpush.msra.mxu0 0.0
    %2203 = vmatpush.msra.mxu0 0.0
    %2204 = vmatpush.msra.mxu0 0.0
    %2205 = vmatpush.msra.mxu0 0.0
    %2206 = vmatpush.msra.mxu0 0.0
    %2207 = vmatpush.msra.mxu0 0.0
    %2208 = vmatpush.msra.mxu0 0.0
    %2209 = vmatpush.msra.mxu0 0.0
    %2210 = vmatpush.msra.mxu0 %v1999
    %2211 = vmatmul.f32.gmra.mxu0 %v2172
    %v2212 = vpop.f32.mrf.mxu0
    %v2213 = vadd.f32 0.0, %v2212
    %2214 = vdwg.mxu0
    %v2215 = vsub.f32 %v1999, %v2213
    %v2216 = vsub.f32 %v30, %v2215
    %v2217 = vmul.f32 %v2216, 32.0
    %v2219 = vsel %vm33, %v2194, 0
    %2221 = vmatpush.xpose.msra.mxu0 0.0
    %2222 = vmatpush.xpose.msra.mxu0 0.0
    %2223 = vmatpush.xpose.msra.mxu0 0.0
    %2224 = vmatpush.xpose.msra.mxu0 0.0
    %2225 = vmatpush.xpose.msra.mxu0 0.0
    %2226 = vmatpush.xpose.msra.mxu0 0.0
    %2227 = vmatpush.xpose.msra.mxu0 0.0
    %2228 = vmatpush.xpose.msra.mxu0 0.0
    %2229 = vmatpush.xpose.msra.mxu0 0.0
    %2230 = vmatpush.xpose.msra.mxu0 0.0
    %2231 = vmatpush.xpose.msra.mxu0 0.0
    %2232 = vmatpush.xpose.msra.mxu0 0.0
    %2233 = vmatpush.xpose.msra.mxu0 0.0
    %2234 = vmatpush.xpose.msra.mxu0 0.0
    %2235 = vmatpush.xpose.msra.mxu0 0.0
    %2236 = vmatpush.xpose.msra.mxu0 %v2219
    %2237 = vmatmul.f32.gmra.mxu0 %v2219
    %v2238 = vpop.f32.mrf.mxu0
    %v2239 = vadd.f32 0.0, %v2238
    %2240 = vdwg.mxu0
    %v2241 = vadd.f32 %v2217, %v2239
    %2242 = vmatpush.msra.mxu0 0.0
    %2243 = vmatpush.msra.mxu0 0.0
    %2244 = vmatpush.msra.mxu0 0.0
    %2245 = vmatpush.msra.mxu0 0.0
    %2246 = vmatpush.msra.mxu0 0.0
    %2247 = vmatpush.msra.mxu0 0.0
    %2248 = vmatpush.msra.mxu0 0.0
    %2249 = vmatpush.msra.mxu0 0.0
    %2250 = vmatpush.msra.mxu0 0.0
    %2251 = vmatpush.msra.mxu0 0.0
    %2252 = vmatpush.msra.mxu0 0.0
    %2253 = vmatpush.msra.mxu0 0.0
    %2254 = vmatpush.msra.mxu0 0.0
    %2255 = vmatpush.msra.mxu0 0.0
    %2256 = vmatpush.msra.mxu0 0.0
    %2257 = vmatpush.msra.mxu0 %v2194
    %2258 = vmatmul.f32.gmra.mxu0 %v1874
    %v2259 = vpop.f32.mrf.mxu0
    %v2260 = vadd.f32 0.0, %v2259
    %2261 = vmatmul.f32.gmra.mxu0 %v1877
    %v2262 = vpop.f32.mrf.mxu0
    %v2263 = vadd.f32 0.0, %v2262
    %2264 = vdwg.mxu0
    %v2265 = vsub.f32 %v982, %v2260
    %v2266 = vsub.f32 %v983, %v2263
    %v2267 = vmul.f32 %v1922, %v2265
    %v2268 = vmul.f32 %v1923, %v2266
    %v2269 = vsel %vm33, %v2267, 0.0
    %v2270 = vsel %vm33, %v2268, 0.0
    %v2271 = vadd.f32 %v2269, %v2270
    %2272 = vadd.xlane.f32.xlu0 %v2271
    %v2273 = vpop.xlane.xlu0 %2272
    %v2274 = vrot.slane %v2273, 4
    %v2275 = vadd.f32 %v2273, %v2274
    %v2276 = vrot.slane %v2275, 2
    %v2277 = vadd.f32 %v2275, %v2276
    %v2278 = vrot.slane %v2277, 1
    %v2279 = vadd.f32 %v2277, %v2278
    %s2280 = vtos %v2279
    %v2281 = vmul.f32 %v1999, %v2241
    %v2282 = vsel %vm291, %v2281, 0.0
    %2283 = vadd.xlane.f32.xlu0 %v2282
    %v2284 = vpop.xlane.xlu0 %2283
    %v2285 = vrot.slane %v2284, 4
    %v2286 = vadd.f32 %v2284, %v2285
    %v2287 = vrot.slane %v2286, 2
    %v2288 = vadd.f32 %v2286, %v2287
    %v2289 = vrot.slane %v2288, 1
    %v2290 = vadd.f32 %v2288, %v2289
    %s2291 = vtos %v2290
    %s2292 = smul.f32 %s2291, 0.5
    %s2293 = sadd.f32 %s2280, %s2292
    %v2294 = vlog2.pop %v1912
    %v2295 = vmul.f32 %v2294, 0.6931472
    %v2296 = vlog2.pop %v1913
    %v2297 = vmul.f32 %v2296, 0.6931472
    %v2298 = vsel %vm1017, %v2295, 0.0
    %v2299 = vsel %vm1017, %v2297, 0.0
    %v2300 = vadd.f32 %v2298, %v2299
    %2301 = vadd.xlane.f32.xlu0 %v2300
    %v2302 = vpop.xlane.xlu0 %2301
    %v2303 = vrot.slane %v2302, 4
    %v2304 = vadd.f32 %v2302, %v2303
    %v2305 = vrot.slane %v2304, 2
    %v2306 = vadd.f32 %v2304, %v2305
    %v2307 = vrot.slane %v2306, 1
    %v2308 = vadd.f32 %v2306, %v2307
    %s2309 = vtos %v2308
    %s2310 = smul.f32 %s2309, -16.0
    %s2311 = ssub.f32 %s2310, %s2293
    %s2312 = ssub.f32 0.0, %s2311
    %s2313 = scalar_lea.smem [#allocation2], 2
    %2314 = sst [smem:[%s2313]] %s2312
    %2315 = vst.msk [vmem:[%s3] sm:$0xff] %vm291, %v1868
    %2316 = vst.msk [vmem:[%s3 + $0x8] sm:$0xff] %vm291, %v1871
    %2317 = vst.msk [vmem:[%s4] sm:$0xff] %vm1017, %v1912
    %2318 = vst.msk [vmem:[%s4 + $0x8] sm:$0xff] %vm1017, %v1913
    // Predicated region
    $region14: #{pcca_forward.1} parent=1 // pred_check
      _
    $region15: #{pcca_forward.1} parent=1 // pred_check_branch
      %2320 = sbr.rel (0) target = $region17
    $region16: #{pcca_forward.1} parent=1 // pred_region
      _
    $region17: #{pcca_forward.1} parent=1 // pred_fallthru
      _
    // Predicated region
    $region18: #{pcca_forward.1} parent=1 // pred_check
      _
    $region19: #{pcca_forward.1} parent=1 // pred_check_branch
      %2322 = sbr.rel (0) target = $region21
    $region20: #{pcca_forward.1} parent=1 // pred_region
      _
    $region21: #{pcca_forward.1} parent=1 // pred_fallthru
      _
    // Predicated region
    $region22: #{pcca_forward.1} parent=1 // pred_check
      _
    $region23: #{pcca_forward.1} parent=1 // pred_check_branch
      %2324 = sbr.rel (0) target = $region25
    $region24: #{pcca_forward.1} parent=1 // pred_region
      %2326 = vsyncadd [#allocation3], 0
      %s2328 = sshll.u32 %s5, 4
      %s2329 = int_to_ptr.hbm [resolvable:$true] %s2328
      %2331 = dma.smem_to_hbm [#allocation2], 16, %s2329, [#allocation3]
    $region25: #{pcca_forward.1} parent=1 // pred_fallthru
      _
    // Predicated region
    $region26: #{pcca_forward.1} parent=1 // pred_check
      _
    $region27: #{pcca_forward.1} parent=1 // pred_check_branch
      %2333 = sbr.rel (0) target = $region29
    $region28: #{pcca_forward.1} parent=1 // pred_region
      _
    $region29: #{pcca_forward.1} parent=1 // pred_fallthru
      _
    // Predicated region
    $region30: #{pcca_forward.1} parent=1 // pred_check
      _
    $region31: #{pcca_forward.1} parent=1 // pred_check_branch
      %2335 = sbr.rel (0) target = $region33
    $region32: #{pcca_forward.1} parent=1 // pred_region
      _
    $region33: #{pcca_forward.1} parent=1 // pred_fallthru
      _
    // Predicated region
    $region34: #{pcca_forward.1} parent=1 // pred_check
      _
    $region35: #{pcca_forward.1} parent=1 // pred_check_branch
      %2337 = sbr.rel (0) target = $region37
    $region36: #{pcca_forward.1} parent=1 // pred_region
      %2339 = dma.done [#allocation3], 16
    $region37: #{pcca_forward.1} parent=1 // pred_fallthru
      _
    %2340 = sfence
    %2341 = vsyncpa [#allocation3], 1

</llo_original>
